<compile_context>
chip_gen: v6e
topology: v6e:2x2x1
jax: 0.10.0
libtpu: 0.0.40
codegen_flags: <defaults>
</compile_context>

<pallas_src>
import jax
import jax.numpy as jnp
from jax.experimental import pallas as pl
from jax.experimental.pallas import tpu as pltpu


def _round_up(x, m):
    return (x + m - 1) // m * m


def _vmem_capacity_bytes():
    """Physical VMEM of the attached TPU (falls back to the v7x 64 MiB floor)."""
    try:
        return int(pltpu.get_tpu_info().vmem_capacity_bytes)
    except Exception:
        return 64 * 1024 * 1024


def _choose_tile_v(output_dim, out_in, n_weight_bufs, weight_budget_bytes):
    """Largest 128-aligned vocab tile whose streamed bf16 weight buffers fit budget."""
    v_full = _round_up(output_dim, 128)
    per_col = n_weight_bufs * (out_in * 2 + 4)            # bf16 weight col + f32 bias elem
    max_cols = max(128, weight_budget_bytes // max(per_col, 1))
    tile = max(128, min(4096, (max_cols // 128) * 128))
    return min(tile, v_full)                              # one tile if the vocab fits


def decoder_step_kernel(
    emb_ref,      # (Bp, E)            f32
    h_ref,        # (Bp, Hd)           f32
    enc_ref,      # (Bp, S, 2He)       f32
    aw_hid_ref,   # (Hd, A_pad)        bf16  attention rows for decoder hidden
    aw_enc_ref,   # (2He, A_pad)       bf16  attention rows for encoder outputs
    ab_ref,       # (1, A_pad)         f32
    wih_ref,      # (E+2He, 3*Hd)      bf16  GRU input->hidden, gates (r,z,n)
    whh_ref,      # (Hd, 3*Hd)         bf16  GRU hidden->hidden
    bih_ref,      # (1, 3*Hd)          f32
    bhh_ref,      # (1, 3*Hd)          f32
    ow_ref,       # (Hd+2He+E, TILE_V) bf16  out-Linear tile (streamed over vocab grid)
    ob_ref,       # (1, TILE_V)        f32   (padded vocab columns = -1e30)
    probs_ref,    # out: (Bp, V_pad)   f32   resident across the vocab grid
    h_new_ref,    # out: (Bp, Hd)      f32
    x_out_ref,    # scratch: (Bp, Hd+2He+E) bf16
    m_ref,        # scratch: (Bp, 1)   f32   online-softmax running max
    l_ref,        # scratch: (Bp, 1)   f32   online-softmax running sum-of-exp
):
    f32 = jnp.float32
    bf16 = jnp.bfloat16
    j = pl.program_id(0)
    n_tiles = pl.num_programs(0)
    tile_v = ow_ref.shape[1]
    Hd = h_ref.shape[1]

    # ---- phase 0 (first vocab tile): attention + fused GRU step --------------------
    @pl.when(j == 0)
    def _():
        emb = emb_ref[...]
        h = h_ref[...]
        enc = enc_ref[...]

        # attention energies: tanh(W [h; enc_s] + b); padded A columns are exactly 0.
        e_hid = jnp.dot(h.astype(bf16), aw_hid_ref[...],
                        preferred_element_type=f32)                          # (Bp, A_pad)
        e_enc = jax.lax.dot_general(
            enc.astype(bf16), aw_enc_ref[...],
            dimension_numbers=(((2,), (0,)), ((), ())),
            preferred_element_type=f32)                                      # (Bp, S, A_pad)
        energy = jnp.tanh(e_enc + e_hid[:, None, :] + ab_ref[...][None, :, :])
        scores = jnp.sum(energy, axis=2)                                     # (Bp, S)
        scores = scores - jnp.max(scores, axis=1, keepdims=True)
        exp_s = jnp.exp(scores)
        attn = exp_s * pl.reciprocal(jnp.sum(exp_s, axis=1, keepdims=True),
                                     approx=True)                            # (Bp, S)

        # weighted encoder rep.  NOTE: for long S (hundreds+) this broadcast +
        # sublane reduce should become a batched dot_general contracting S (MXU);
        # negligible at small S.
        weighted = jnp.sum(attn[:, :, None] * enc, axis=1)                   # (Bp, 2He)

        # fused single-step GRU: one input dot and one hidden dot over all 3 gates.
        x_in = jnp.concatenate([emb, weighted], axis=1)                      # (Bp, E+2He)
        gi = jnp.dot(x_in.astype(bf16), wih_ref[...],
                     preferred_element_type=f32) + bih_ref[...]              # (Bp, 3Hd)
        gh = jnp.dot(h.astype(bf16), whh_ref[...],
                     preferred_element_type=f32) + bhh_ref[...]              # (Bp, 3Hd)
        r = jax.nn.sigmoid(gi[:, :Hd] + gh[:, :Hd])
        z = jax.nn.sigmoid(gi[:, Hd:2 * Hd] + gh[:, Hd:2 * Hd])
        n = jnp.tanh(gi[:, 2 * Hd:] + r * gh[:, 2 * Hd:])
        h_new = (1.0 - z) * n + z * h                                        # (Bp, Hd)

        h_new_ref[...] = h_new
        # out-Linear input in PyTorch order cat(output, weighted, embedded);
        # stored bf16 ONCE so the per-tile streamed dot needs no f32->bf16 cast.
        x_out_ref[...] = jnp.concatenate([h_new, weighted, emb], axis=1).astype(bf16)

        # online-softmax running statistics
        m_ref[...] = jnp.full_like(m_ref, -1e30)   # finite: avoids -inf - -inf NaN
        l_ref[...] = jnp.zeros_like(l_ref)

    # ---- every vocab tile: streamed output projection -------------------------------
    logits = jnp.dot(x_out_ref[...], ow_ref[...],
                     preferred_element_type=f32) + ob_ref[...]               # (Bp, TILE_V)
    off = pl.multiple_of(j * tile_v, tile_v)
    probs_ref[:, pl.ds(off, tile_v)] = logits

    # online softmax statistics -- small (Bp,1) updates, hidden under the weight DMA.
    m_prev = m_ref[...]
    m_new = jnp.maximum(m_prev, jnp.max(logits, axis=1, keepdims=True))
    l_ref[...] = (l_ref[...] * jnp.exp(m_prev - m_new)
                  + jnp.sum(jnp.exp(logits - m_new), axis=1, keepdims=True))
    m_ref[...] = m_new

    # ---- last tile: normalize resident logits (no extra max/sum pass) ----------------
    @pl.when(j == n_tiles - 1)
    def _():
        inv_l = 1.0 / l_ref[...]          # exact reciprocal: rows sum to 1 in f32
        probs_ref[...] = jnp.exp(probs_ref[...] - m_ref[...]) * inv_l


def init_params(key, output_dim, emb_dim, enc_hid_dim, dec_hid_dim, attn_dim):
    """Parameters already in kernel layout (transposed, fused, padded, bf16 weights)."""
    f32, bf16 = jnp.float32, jnp.bfloat16
    He2 = 2 * enc_hid_dim
    attn_in = He2 + dec_hid_dim
    rnn_in = He2 + emb_dim
    out_in = dec_hid_dim + He2 + emb_dim

    # lane padding: attn dim -> 128; vocab tile sized against device VMEM so the
    # streamed bf16 out_w buffers use a generous but v7x-safe slice of VMEM.
    A_pad = _round_up(attn_dim, 128)
    weight_budget = int(_vmem_capacity_bytes() * 0.30)
    tile_v = _choose_tile_v(output_dim, out_in, n_weight_bufs=3,
                            weight_budget_bytes=weight_budget)
    V_pad = _round_up(output_dim, tile_v)

    ks = jax.random.split(key, 9)

    def uni(k, shape, fan_in):
        s = 1.0 / jnp.sqrt(jnp.float32(fan_in))
        return jax.random.uniform(k, shape, f32, -s, s)

    attn_w = jnp.pad(uni(ks[1], (attn_in, attn_dim), attn_in),
                     ((0, 0), (0, A_pad - attn_dim)))                # zero-padded cols
    attn_b = jnp.pad(uni(ks[2], (1, attn_dim), attn_in),
                     ((0, 0), (0, A_pad - attn_dim)))

    # GRU gates stacked along the output dim in (r, z, n) order -> one fused dot each.
    w_ih = uni(ks[3], (rnn_in, 3 * dec_hid_dim), dec_hid_dim)
    w_hh = uni(ks[4], (dec_hid_dim, 3 * dec_hid_dim), dec_hid_dim)
    b_ih = uni(ks[5], (1, 3 * dec_hid_dim), dec_hid_dim)
    b_hh = uni(ks[6], (1, 3 * dec_hid_dim), dec_hid_dim)

    out_w = jnp.pad(uni(ks[7], (out_in, output_dim), out_in),
                    ((0, 0), (0, V_pad - output_dim)))               # zero-padded cols
    out_b = jnp.pad(uni(ks[8], (1, output_dim), out_in),
                    ((0, 0), (0, V_pad - output_dim)),
                    constant_values=-1e30)                           # padded vocab -> ~0 prob

    return {
        "embedding": jax.random.normal(ks[0], (output_dim, emb_dim), f32),
        # attention weight split ONCE (hidden rows vs encoder rows) -> no per-step slicing
        "aw_hid": attn_w[:dec_hid_dim, :].astype(bf16),
        "aw_enc": attn_w[dec_hid_dim:, :].astype(bf16),
        "attn_b": attn_b,                       # f32
        "w_ih": w_ih.astype(bf16),
        "w_hh": w_hh.astype(bf16),
        "b_ih": b_ih,                           # f32
        "b_hh": b_hh,                           # f32
        "out_w": out_w.astype(bf16),            # (out_in, V_pad), row order [h; weighted; emb]
        "out_b": out_b,                         # f32
        "dims": dict(E=emb_dim, He2=He2, Hd=dec_hid_dim, A=attn_dim, A_pad=A_pad,
                     V=output_dim, V_pad=V_pad, out_in=out_in, rnn_in=rnn_in,
                     tile_v=tile_v),
    }


def _estimate_vmem_bytes(d, Bp, S, n_weight_bufs):
    """Rough in-kernel VMEM footprint, used to pick vmem_limit_bytes."""
    f32b, bf16b = 4, 2
    const_in = (Bp * d["E"] + Bp * d["Hd"] + Bp * S * d["He2"]) * f32b
    const_in += (d["Hd"] + d["He2"]) * d["A_pad"] * bf16b + d["A_pad"] * f32b
    const_in += (d["rnn_in"] + d["Hd"]) * 3 * d["Hd"] * bf16b + 2 * 3 * d["Hd"] * f32b
    streamed = n_weight_bufs * (d["out_in"] * d["tile_v"] * bf16b + d["tile_v"] * f32b)
    outs = Bp * d["V_pad"] * f32b + Bp * d["Hd"] * f32b
    scratch = Bp * d["out_in"] * bf16b + 2 * Bp * f32b
    # x2 on constant-index inputs in case the non-Buffered(1) fallback double-buffers them
    return 2 * const_in + streamed + outs + scratch


def decoder_forward(params, tokens, decoder_hidden, encoder_outputs_bsh):
    """One decode step.

    tokens: (B,) int32; decoder_hidden: (B, Hd);
    encoder_outputs_bsh: (B, S, 2*He) -- batch-major.  (Transpose from the PyTorch
    (S, B, 2He) layout ONCE before the decode loop, not per step.)
    Throughput note: batch more rows (beams / parallel streams) per call so Bp
    approaches 128-256 -- the out_w HBM stream is re-read every step regardless.
    """
    d = params["dims"]
    B = tokens.shape[0]
    Bp = _round_up(max(B, 8), 8)          # sublane-pad the batch
    S = encoder_outputs_bsh.shape[1]

    # glue: embedding gather stays in plain JAX
    embedded = jnp.take(params["embedding"], tokens, axis=0)              # (B, E)
    # TODO(synk): nn.Dropout is identity in eval mode; training-mode dropout not implemented.
    emb_p = jnp.pad(embedded, ((0, Bp - B), (0, 0)))
    h_p = jnp.pad(decoder_hidden, ((0, Bp - B), (0, 0)))
    enc_p = jnp.pad(encoder_outputs_bsh, ((0, Bp - B), (0, 0), (0, 0)))

    n_tiles = d["V_pad"] // d["tile_v"]
    n_weight_bufs = 3 if n_tiles >= 3 else 2   # deeper buffering only pays when streaming

    vmem_cap = _vmem_capacity_bytes()
    est = _estimate_vmem_bytes(d, Bp, S, n_weight_bufs)
    vmem_limit = int(min(max(32 * 1024 * 1024, est + (8 << 20)), int(vmem_cap * 0.85)))

    def build(use_pipeline_mode):
        def spec(shape, imap, bufs):
            # grid-invariant inputs -> 1 buffer (saves VMEM); streamed weight -> 2-3 deep.
            if use_pipeline_mode:
                return pl.BlockSpec(shape, imap, pipeline_mode=pl.Buffered(bufs))
            return pl.BlockSpec(shape, imap)

        grid_spec = pltpu.PrefetchScalarGridSpec(
            num_scalar_prefetch=0,
            grid=(n_tiles,),
            in_specs=[
                spec((Bp, d["E"]), lambda j: (0, 0), 1),
                spec((Bp, d["Hd"]), lambda j: (0, 0), 1),
                spec((Bp, S, d["He2"]), lambda j: (0, 0, 0), 1),
                spec((d["Hd"], d["A_pad"]), lambda j: (0, 0), 1),
                spec((d["He2"], d["A_pad"]), lambda j: (0, 0), 1),
                spec((1, d["A_pad"]), lambda j: (0, 0), 1),
                spec((d["rnn_in"], 3 * d["Hd"]), lambda j: (0, 0), 1),
                spec((d["Hd"], 3 * d["Hd"]), lambda j: (0, 0), 1),
                spec((1, 3 * d["Hd"]), lambda j: (0, 0), 1),
                spec((1, 3 * d["Hd"]), lambda j: (0, 0), 1),
                # out-Linear weight/bias streamed over the vocab grid (multi-buffered DMA)
                spec((d["out_in"], d["tile_v"]), lambda j: (0, j), n_weight_bufs),
                spec((1, d["tile_v"]), lambda j: (0, j), n_weight_bufs),
            ],
            out_specs=[
                pl.BlockSpec((Bp, d["V_pad"]), lambda j: (0, 0)),   # resident across vocab grid
                pl.BlockSpec((Bp, d["Hd"]), lambda j: (0, 0)),
            ],
            scratch_shapes=[
                pltpu.VMEM((Bp, d["out_in"]), jnp.bfloat16),   # x_out (bf16, cast once)
                pltpu.VMEM((Bp, 1), jnp.float32),              # online-softmax running max
                pltpu.VMEM((Bp, 1), jnp.float32),              # online-softmax running sum
            ])

        return pl.pallas_call(
            decoder_step_kernel,
            out_shape=(jax.ShapeDtypeStruct((Bp, d["V_pad"]), jnp.float32),
                       jax.ShapeDtypeStruct((Bp, d["Hd"]), jnp.float32)),
            grid_spec=grid_spec,
            compiler_params=pltpu.CompilerParams(
                # output blocks are resident across the vocab axis -> must be "arbitrary"
                dimension_semantics=("arbitrary",),
                vmem_limit_bytes=vmem_limit),
        )

    args = (emb_p, h_p, enc_p,
            params["aw_hid"], params["aw_enc"], params["attn_b"],
            params["w_ih"], params["w_hh"], params["b_ih"], params["b_hh"],
            params["out_w"], params["out_b"])

    # Try the multi-buffered (pipeline_mode) variant first; fall back to default
    # double-buffering if the installed JAX/Mosaic rejects pipeline_mode.
    attempts = [True, False] if hasattr(pl, "Buffered") else [False]
    result, err = None, None
    for use_pm in attempts:
        try:
            result = build(use_pm)(*args)
            jax.block_until_ready(result)
            break
        except Exception as e:   # pragma: no cover - robustness fallback
            err = e
            result = None
    if result is None:
        raise err

    probs_p, h_new_p = result
    return probs_p[:B, :d["V"]], h_new_p[:B]


def decoder_reference(params, tokens, decoder_hidden, encoder_outputs_bsh):
    """Pure-JAX f32 reference mirroring the PyTorch forward (eval mode)."""
    f32 = jnp.float32
    d = params["dims"]
    Hd, V = d["Hd"], d["V"]

    emb = params["embedding"][tokens]
    enc = encoder_outputs_bsh
    B, S, _ = enc.shape

    aw = jnp.concatenate([params["aw_hid"], params["aw_enc"]], axis=0).astype(f32)
    hid_rep = jnp.broadcast_to(decoder_hidden[:, None, :], (B, S, Hd))
    energy = jnp.tanh(jnp.concatenate([hid_rep, enc], axis=-1) @ aw + params["attn_b"])
    attn = jax.nn.softmax(energy.sum(-1), axis=1)
    weighted = jnp.einsum("bs,bsh->bh", attn, enc)

    x = jnp.concatenate([emb, weighted], axis=1)
    gi = x @ params["w_ih"].astype(f32) + params["b_ih"]
    gh = decoder_hidden @ params["w_hh"].astype(f32) + params["b_hh"]
    r = jax.nn.sigmoid(gi[:, :Hd] + gh[:, :Hd])
    z = jax.nn.sigmoid(gi[:, Hd:2 * Hd] + gh[:, Hd:2 * Hd])
    n = jnp.tanh(gi[:, 2 * Hd:] + r * gh[:, 2 * Hd:])
    h_new = (1.0 - z) * n + z * decoder_hidden

    logits = (jnp.concatenate([h_new, weighted, emb], axis=1)
              @ params["out_w"].astype(f32)[:, :V] + params["out_b"][:, :V])
    return jax.nn.softmax(logits, axis=1), h_new


if __name__ == "__main__":
    B, S = 2, 8
    output_dim, emb_dim, enc_hid_dim, dec_hid_dim, attn_dim = 32, 32, 16, 32, 8

    key = jax.random.PRNGKey(0)
    kp, kt, kh, ke = jax.random.split(key, 4)
    params = init_params(kp, output_dim, emb_dim, enc_hid_dim, dec_hid_dim, attn_dim)

    tokens = jax.random.randint(kt, (B,), 0, output_dim, dtype=jnp.int32)           # (B,)
    decoder_hidden = jax.random.normal(kh, (B, dec_hid_dim), jnp.float32)            # (B, Hd)
    encoder_outputs = jax.random.normal(ke, (S, B, 2 * enc_hid_dim), jnp.float32)    # (S, B, 2He)

    # layout hoist: transpose to batch-major ONCE, outside the per-step path
    enc_bsh = jnp.transpose(encoder_outputs, (1, 0, 2))                              # (B, S, 2He)

    probs, h_new = decoder_forward(params, tokens, decoder_hidden, enc_bsh)
    jax.block_until_ready((probs, h_new))

    ref_probs, ref_h = decoder_reference(params, tokens, decoder_hidden, enc_bsh)

    assert probs.shape == (B, output_dim) and h_new.shape == (B, dec_hid_dim)
    # bf16 matmul inputs + approx reciprocal in attention -> slightly looser tolerances
    assert jnp.allclose(probs, ref_probs, atol=1.5e-2, rtol=0.0), "softmax output mismatch"
    assert jnp.allclose(h_new, ref_h, atol=3e-2, rtol=0.0), "hidden state mismatch"
    assert jnp.allclose(jnp.sum(probs, axis=1), 1.0, atol=5e-3)

    print("KERNEL_OK")
</pallas_src>

<mosaic_0001>
module attributes {stable_mosaic.version = 11 : i64} {
  func.func @decoder_step_kernel(%arg0: i32, %arg1: memref<8x32xf32, #tpu.memory_space<vmem>>, %arg2: memref<8x32xf32, #tpu.memory_space<vmem>>, %arg3: memref<8x8x32xf32, #tpu.memory_space<vmem>>, %arg4: memref<32x128xbf16, #tpu.memory_space<vmem>>, %arg5: memref<32x128xbf16, #tpu.memory_space<vmem>>, %arg6: memref<1x128xf32, #tpu.memory_space<vmem>>, %arg7: memref<64x96xbf16, #tpu.memory_space<vmem>>, %arg8: memref<32x96xbf16, #tpu.memory_space<vmem>>, %arg9: memref<1x96xf32, #tpu.memory_space<vmem>>, %arg10: memref<1x96xf32, #tpu.memory_space<vmem>>, %arg11: memref<96x128xbf16, #tpu.memory_space<vmem>>, %arg12: memref<1x128xf32, #tpu.memory_space<vmem>>, %arg13: memref<8x128xf32, #tpu.memory_space<vmem>>, %arg14: memref<8x32xf32, #tpu.memory_space<vmem>>, %arg15: memref<8x96xbf16, #tpu.memory_space<vmem>>, %arg16: memref<8x1xf32, #tpu.memory_space<vmem>>, %arg17: memref<8x1xf32, #tpu.memory_space<vmem>>) attributes {dimension_semantics = [#tpu.dimension_semantics<arbitrary>], iteration_bounds = array<i64: 1>, scalar_prefetch = 0 : i64, scratch_operands = 3 : i64, tpu.core_type = #tpu.core_type<tc>, window_params = [{pipeline_mode = #tpu.pipeline_mode<synchronous>, transform_indices = @transform_0, window_bounds = array<i64: 8, 32>}, {pipeline_mode = #tpu.pipeline_mode<synchronous>, transform_indices = @transform_1, window_bounds = array<i64: 8, 32>}, {pipeline_mode = #tpu.pipeline_mode<synchronous>, transform_indices = @transform_2, window_bounds = array<i64: 8, 8, 32>}, {pipeline_mode = #tpu.pipeline_mode<synchronous>, transform_indices = @transform_3, window_bounds = array<i64: 32, 128>}, {pipeline_mode = #tpu.pipeline_mode<synchronous>, transform_indices = @transform_4, window_bounds = array<i64: 32, 128>}, {pipeline_mode = #tpu.pipeline_mode<synchronous>, transform_indices = @transform_5, window_bounds = array<i64: 1, 128>}, {pipeline_mode = #tpu.pipeline_mode<synchronous>, transform_indices = @transform_6, window_bounds = array<i64: 64, 96>}, {pipeline_mode = #tpu.pipeline_mode<synchronous>, transform_indices = @transform_7, window_bounds = array<i64: 32, 96>}, {pipeline_mode = #tpu.pipeline_mode<synchronous>, transform_indices = @transform_8, window_bounds = array<i64: 1, 96>}, {pipeline_mode = #tpu.pipeline_mode<synchronous>, transform_indices = @transform_9, window_bounds = array<i64: 1, 96>}, {pipeline_mode = #tpu.pipeline_mode<double_buffered>, transform_indices = @transform_10, window_bounds = array<i64: 96, 128>}, {pipeline_mode = #tpu.pipeline_mode<double_buffered>, transform_indices = @transform_11, window_bounds = array<i64: 1, 128>}, {pipeline_mode = #tpu.pipeline_mode<synchronous>, transform_indices = @transform_12, window_bounds = array<i64: 8, 128>}, {pipeline_mode = #tpu.pipeline_mode<synchronous>, transform_indices = @transform_13, window_bounds = array<i64: 8, 32>}]} {
    %c0_i32 = arith.constant 0 : i32
    %0 = arith.cmpi eq, %arg0, %c0_i32 : i32
    %1 = arith.extui %0 : i1 to i32
    %c0_i32_0 = arith.constant 0 : i32
    %2 = arith.cmpi ne, %1, %c0_i32_0 : i32
    scf.if %2 {
      %c0_19 = arith.constant 0 : index
      %c0_20 = arith.constant 0 : index
      %32 = vector.load %arg1[%c0_19, %c0_20] : memref<8x32xf32, #tpu.memory_space<vmem>>, vector<8x32xf32>
      %c0_21 = arith.constant 0 : index
      %c0_22 = arith.constant 0 : index
      %33 = vector.load %arg2[%c0_21, %c0_22] : memref<8x32xf32, #tpu.memory_space<vmem>>, vector<8x32xf32>
      %c0_23 = arith.constant 0 : index
      %c0_24 = arith.constant 0 : index
      %c0_25 = arith.constant 0 : index
      %34 = vector.load %arg3[%c0_23, %c0_24, %c0_25] : memref<8x8x32xf32, #tpu.memory_space<vmem>>, vector<8x8x32xf32>
      %35 = arith.truncf %33 : vector<8x32xf32> to vector<8x32xbf16>
      %c0_26 = arith.constant 0 : index
      %c0_27 = arith.constant 0 : index
      %36 = vector.load %arg4[%c0_26, %c0_27] : memref<32x128xbf16, #tpu.memory_space<vmem>>, vector<32x128xbf16>
      %cst_28 = arith.constant dense<0.000000e+00> : vector<8x128xf32>
      %37 = tpu.matmul %35, %36, %cst_28 {dimension_numbers = #tpu.dot_dimension_numbers<[1], [0], [0], [1], [0, 0, 1, 1], [], []>} : vector<8x32xbf16>, vector<32x128xbf16>, vector<8x128xf32> -> vector<8x128xf32>
      %38 = arith.truncf %34 : vector<8x8x32xf32> to vector<8x8x32xbf16>
      %c0_29 = arith.constant 0 : index
      %c0_30 = arith.constant 0 : index
      %39 = vector.load %arg5[%c0_29, %c0_30] : memref<32x128xbf16, #tpu.memory_space<vmem>>, vector<32x128xbf16>
      %cst_31 = arith.constant dense<0.000000e+00> : vector<8x8x128xf32>
      %40 = tpu.matmul %38, %39, %cst_31 {dimension_numbers = #tpu.dot_dimension_numbers<[2], [0], [0, 1], [1], [0, 0, 0, 1, 1, 1], [], []>} : vector<8x8x32xbf16>, vector<32x128xbf16>, vector<8x8x128xf32> -> vector<8x8x128xf32>
      %41 = vector.shape_cast %37 : vector<8x128xf32> to vector<8x1x128xf32>
      %42 = vector.broadcast %41 : vector<8x1x128xf32> to vector<8x8x128xf32>
      %43 = arith.addf %40, %42 : vector<8x8x128xf32>
      %c0_32 = arith.constant 0 : index
      %c0_33 = arith.constant 0 : index
      %44 = vector.load %arg6[%c0_32, %c0_33] : memref<1x128xf32, #tpu.memory_space<vmem>>, vector<1x128xf32>
      %45 = vector.shape_cast %44 : vector<1x128xf32> to vector<1x1x128xf32>
      %46 = vector.broadcast %45 : vector<1x1x128xf32> to vector<8x8x128xf32>
      %47 = arith.addf %43, %46 : vector<8x8x128xf32>
      %48 = math.tanh %47 : vector<8x8x128xf32>
      %cst_34 = arith.constant dense<0.000000e+00> : vector<8x8xf32>
      %49 = vector.multi_reduction <add>, %48, %cst_34 [2] : vector<8x8x128xf32> to vector<8x8xf32>
      %cst_35 = arith.constant dense<0xFF800000> : vector<8xf32>
      %50 = vector.multi_reduction <maximumf>, %49, %cst_35 [1] : vector<8x8xf32> to vector<8xf32>
      %51 = vector.shape_cast %50 : vector<8xf32> to vector<8x1xf32>
      %52 = vector.broadcast %51 : vector<8x1xf32> to vector<8x8xf32>
      %53 = arith.subf %49, %52 : vector<8x8xf32>
      %54 = math.exp %53 : vector<8x8xf32>
      %cst_36 = arith.constant dense<0.000000e+00> : vector<8xf32>
      %55 = vector.multi_reduction <add>, %54, %cst_36 [1] : vector<8x8xf32> to vector<8xf32>
      %56 = vector.shape_cast %55 : vector<8xf32> to vector<8x1xf32>
      %57 = tpu.reciprocal %56 {approx = true} : vector<8x1xf32> -> vector<8x1xf32>
      %58 = vector.broadcast %57 : vector<8x1xf32> to vector<8x8xf32>
      %59 = arith.mulf %54, %58 : vector<8x8xf32>
      %60 = vector.shape_cast %59 : vector<8x8xf32> to vector<8x8x1xf32>
      %61 = vector.broadcast %60 : vector<8x8x1xf32> to vector<8x8x32xf32>
      %62 = arith.mulf %61, %34 : vector<8x8x32xf32>
      %cst_37 = arith.constant dense<0.000000e+00> : vector<8x32xf32>
      %63 = vector.multi_reduction <add>, %62, %cst_37 [1] : vector<8x8x32xf32> to vector<8x32xf32>
      %64 = tpu.concatenate %32, %63 in 1 : vector<8x32xf32>, vector<8x32xf32> -> vector<8x64xf32>
      %65 = arith.truncf %64 : vector<8x64xf32> to vector<8x64xbf16>
      %c0_38 = arith.constant 0 : index
      %c0_39 = arith.constant 0 : index
      %66 = vector.load %arg7[%c0_38, %c0_39] : memref<64x96xbf16, #tpu.memory_space<vmem>>, vector<64x96xbf16>
      %cst_40 = arith.constant dense<0.000000e+00> : vector<8x96xf32>
      %67 = tpu.matmul %65, %66, %cst_40 {dimension_numbers = #tpu.dot_dimension_numbers<[1], [0], [0], [1], [0, 0, 1, 1], [], []>} : vector<8x64xbf16>, vector<64x96xbf16>, vector<8x96xf32> -> vector<8x96xf32>
      %c0_41 = arith.constant 0 : index
      %c0_42 = arith.constant 0 : index
      %68 = vector.load %arg9[%c0_41, %c0_42] : memref<1x96xf32, #tpu.memory_space<vmem>>, vector<1x96xf32>
      %69 = vector.broadcast %68 : vector<1x96xf32> to vector<8x96xf32>
      %70 = arith.addf %67, %69 : vector<8x96xf32>
      %71 = arith.truncf %33 : vector<8x32xf32> to vector<8x32xbf16>
      %c0_43 = arith.constant 0 : index
      %c0_44 = arith.constant 0 : index
      %72 = vector.load %arg8[%c0_43, %c0_44] : memref<32x96xbf16, #tpu.memory_space<vmem>>, vector<32x96xbf16>
      %cst_45 = arith.constant dense<0.000000e+00> : vector<8x96xf32>
      %73 = tpu.matmul %71, %72, %cst_45 {dimension_numbers = #tpu.dot_dimension_numbers<[1], [0], [0], [1], [0, 0, 1, 1], [], []>} : vector<8x32xbf16>, vector<32x96xbf16>, vector<8x96xf32> -> vector<8x96xf32>
      %c0_46 = arith.constant 0 : index
      %c0_47 = arith.constant 0 : index
      %74 = vector.load %arg10[%c0_46, %c0_47] : memref<1x96xf32, #tpu.memory_space<vmem>>, vector<1x96xf32>
      %75 = vector.broadcast %74 : vector<1x96xf32> to vector<8x96xf32>
      %76 = arith.addf %73, %75 : vector<8x96xf32>
      %77 = vector.extract_strided_slice %70 {offsets = [0, 0], sizes = [8, 32], strides = [1, 1]} : vector<8x96xf32> to vector<8x32xf32>
      %78 = vector.extract_strided_slice %76 {offsets = [0, 0], sizes = [8, 32], strides = [1, 1]} : vector<8x96xf32> to vector<8x32xf32>
      %79 = arith.addf %77, %78 : vector<8x32xf32>
      %80 = arith.negf %79 : vector<8x32xf32>
      %81 = math.exp %80 : vector<8x32xf32>
      %cst_48 = arith.constant 1.000000e+00 : f32
      %82 = vector.broadcast %cst_48 : f32 to vector<8x32xf32>
      %83 = arith.addf %82, %81 : vector<8x32xf32>
      %84 = arith.divf %82, %83 : vector<8x32xf32>
      %85 = vector.extract_strided_slice %70 {offsets = [0, 32], sizes = [8, 32], strides = [1, 1]} : vector<8x96xf32> to vector<8x32xf32>
      %86 = vector.extract_strided_slice %76 {offsets = [0, 32], sizes = [8, 32], strides = [1, 1]} : vector<8x96xf32> to vector<8x32xf32>
      %87 = arith.addf %85, %86 : vector<8x32xf32>
      %88 = arith.negf %87 : vector<8x32xf32>
      %89 = math.exp %88 : vector<8x32xf32>
      %cst_49 = arith.constant 1.000000e+00 : f32
      %90 = vector.broadcast %cst_49 : f32 to vector<8x32xf32>
      %91 = arith.addf %90, %89 : vector<8x32xf32>
      %92 = arith.divf %90, %91 : vector<8x32xf32>
      %93 = vector.extract_strided_slice %70 {offsets = [0, 64], sizes = [8, 32], strides = [1, 1]} : vector<8x96xf32> to vector<8x32xf32>
      %94 = vector.extract_strided_slice %76 {offsets = [0, 64], sizes = [8, 32], strides = [1, 1]} : vector<8x96xf32> to vector<8x32xf32>
      %95 = arith.mulf %84, %94 : vector<8x32xf32>
      %96 = arith.addf %93, %95 : vector<8x32xf32>
      %97 = math.tanh %96 : vector<8x32xf32>
      %cst_50 = arith.constant 1.000000e+00 : f32
      %98 = vector.broadcast %cst_50 : f32 to vector<8x32xf32>
      %99 = arith.subf %98, %92 : vector<8x32xf32>
      %100 = arith.mulf %99, %97 : vector<8x32xf32>
      %101 = arith.mulf %92, %33 : vector<8x32xf32>
      %102 = arith.addf %100, %101 : vector<8x32xf32>
      %c0_51 = arith.constant 0 : index
      %c0_52 = arith.constant 0 : index
      %103 = vector.load %arg14[%c0_51, %c0_52] : memref<8x32xf32, #tpu.memory_space<vmem>>, vector<8x32xf32>
      tpu.vector_store %arg14[%c0_51, %c0_52], %102 {strides = array<i32>} : memref<8x32xf32, #tpu.memory_space<vmem>>, vector<8x32xf32>,
      %104 = tpu.concatenate %102, %63, %32 in 1 : vector<8x32xf32>, vector<8x32xf32>, vector<8x32xf32> -> vector<8x96xf32>
      %105 = arith.truncf %104 : vector<8x96xf32> to vector<8x96xbf16>
      %c0_53 = arith.constant 0 : index
      %c0_54 = arith.constant 0 : index
      %106 = vector.load %arg15[%c0_53, %c0_54] : memref<8x96xbf16, #tpu.memory_space<vmem>>, vector<8x96xbf16>
      tpu.vector_store %arg15[%c0_53, %c0_54], %105 {strides = array<i32>} : memref<8x96xbf16, #tpu.memory_space<vmem>>, vector<8x96xbf16>,
      %cst_55 = arith.constant -1.000000e+30 : f32
      %107 = vector.broadcast %cst_55 : f32 to vector<8x1xf32>
      %c0_56 = arith.constant 0 : index
      %c0_57 = arith.constant 0 : index
      %108 = vector.load %arg16[%c0_56, %c0_57] : memref<8x1xf32, #tpu.memory_space<vmem>>, vector<8x1xf32>
      tpu.vector_store %arg16[%c0_56, %c0_57], %107 {strides = array<i32>} : memref<8x1xf32, #tpu.memory_space<vmem>>, vector<8x1xf32>,
      %cst_58 = arith.constant 0.000000e+00 : f32
      %109 = vector.broadcast %cst_58 : f32 to vector<8x1xf32>
      %c0_59 = arith.constant 0 : index
      %c0_60 = arith.constant 0 : index
      %110 = vector.load %arg17[%c0_59, %c0_60] : memref<8x1xf32, #tpu.memory_space<vmem>>, vector<8x1xf32>
      tpu.vector_store %arg17[%c0_59, %c0_60], %109 {strides = array<i32>} : memref<8x1xf32, #tpu.memory_space<vmem>>, vector<8x1xf32>,
    } else {
    }
    %c0 = arith.constant 0 : index
    %c0_1 = arith.constant 0 : index
    %3 = vector.load %arg15[%c0, %c0_1] : memref<8x96xbf16, #tpu.memory_space<vmem>>, vector<8x96xbf16>
    %c0_2 = arith.constant 0 : index
    %c0_3 = arith.constant 0 : index
    %4 = vector.load %arg11[%c0_2, %c0_3] : memref<96x128xbf16, #tpu.memory_space<vmem>>, vector<96x128xbf16>
    %cst = arith.constant dense<0.000000e+00> : vector<8x128xf32>
    %5 = tpu.matmul %3, %4, %cst {dimension_numbers = #tpu.dot_dimension_numbers<[1], [0], [0], [1], [0, 0, 1, 1], [], []>} : vector<8x96xbf16>, vector<96x128xbf16>, vector<8x128xf32> -> vector<8x128xf32>
    %c0_4 = arith.constant 0 : index
    %c0_5 = arith.constant 0 : index
    %6 = vector.load %arg12[%c0_4, %c0_5] : memref<1x128xf32, #tpu.memory_space<vmem>>, vector<1x128xf32>
    %7 = vector.broadcast %6 : vector<1x128xf32> to vector<8x128xf32>
    %8 = arith.addf %5, %7 : vector<8x128xf32>
    %c128_i32 = arith.constant 128 : i32
    %9 = arith.muli %arg0, %c128_i32 : i32
    %10 = tpu.assume_multiple %9, 128 : i32
    %c0_6 = arith.constant 0 : index
    %11 = arith.index_cast %10 : i32 to index
    %12 = vector.load %arg13[%c0_6, %11] : memref<8x128xf32, #tpu.memory_space<vmem>>, vector<8x128xf32>
    tpu.vector_store %arg13[%c0_6, %11], %8 {strides = array<i32>} : memref<8x128xf32, #tpu.memory_space<vmem>>, vector<8x128xf32>,
    %c0_7 = arith.constant 0 : index
    %c0_8 = arith.constant 0 : index
    %13 = vector.load %arg16[%c0_7, %c0_8] : memref<8x1xf32, #tpu.memory_space<vmem>>, vector<8x1xf32>
    %cst_9 = arith.constant dense<0xFF800000> : vector<8xf32>
    %14 = vector.multi_reduction <maximumf>, %8, %cst_9 [1] : vector<8x128xf32> to vector<8xf32>
    %15 = vector.shape_cast %14 : vector<8xf32> to vector<8x1xf32>
    %16 = arith.maximumf %13, %15 : vector<8x1xf32>
    %c0_10 = arith.constant 0 : index
    %c0_11 = arith.constant 0 : index
    %17 = vector.load %arg17[%c0_10, %c0_11] : memref<8x1xf32, #tpu.memory_space<vmem>>, vector<8x1xf32>
    %18 = arith.subf %13, %16 : vector<8x1xf32>
    %19 = math.exp %18 : vector<8x1xf32>
    %20 = arith.mulf %17, %19 : vector<8x1xf32>
    %21 = vector.broadcast %16 : vector<8x1xf32> to vector<8x128xf32>
    %22 = arith.subf %8, %21 : vector<8x128xf32>
    %23 = math.exp %22 : vector<8x128xf32>
    %cst_12 = arith.constant dense<0.000000e+00> : vector<8xf32>
    %24 = vector.multi_reduction <add>, %23, %cst_12 [1] : vector<8x128xf32> to vector<8xf32>
    %25 = vector.shape_cast %24 : vector<8xf32> to vector<8x1xf32>
    %26 = arith.addf %20, %25 : vector<8x1xf32>
    %c0_13 = arith.constant 0 : index
    %c0_14 = arith.constant 0 : index
    %27 = vector.load %arg17[%c0_13, %c0_14] : memref<8x1xf32, #tpu.memory_space<vmem>>, vector<8x1xf32>
    tpu.vector_store %arg17[%c0_13, %c0_14], %26 {strides = array<i32>} : memref<8x1xf32, #tpu.memory_space<vmem>>, vector<8x1xf32>,
    %c0_15 = arith.constant 0 : index
    %c0_16 = arith.constant 0 : index
    %28 = vector.load %arg16[%c0_15, %c0_16] : memref<8x1xf32, #tpu.memory_space<vmem>>, vector<8x1xf32>
    tpu.vector_store %arg16[%c0_15, %c0_16], %16 {strides = array<i32>} : memref<8x1xf32, #tpu.memory_space<vmem>>, vector<8x1xf32>,
    %c0_i32_17 = arith.constant 0 : i32
    %29 = arith.cmpi eq, %arg0, %c0_i32_17 : i32
    %30 = arith.extui %29 : i1 to i32
    %c0_i32_18 = arith.constant 0 : i32
    %31 = arith.cmpi ne, %30, %c0_i32_18 : i32
    scf.if %31 {
      %c0_19 = arith.constant 0 : index
      %c0_20 = arith.constant 0 : index
      %32 = vector.load %arg17[%c0_19, %c0_20] : memref<8x1xf32, #tpu.memory_space<vmem>>, vector<8x1xf32>
      %cst_21 = arith.constant 1.000000e+00 : f32
      %33 = vector.broadcast %cst_21 : f32 to vector<8x1xf32>
      %34 = arith.divf %33, %32 : vector<8x1xf32>
      %c0_22 = arith.constant 0 : index
      %c0_23 = arith.constant 0 : index
      %35 = vector.load %arg13[%c0_22, %c0_23] : memref<8x128xf32, #tpu.memory_space<vmem>>, vector<8x128xf32>
      %c0_24 = arith.constant 0 : index
      %c0_25 = arith.constant 0 : index
      %36 = vector.load %arg16[%c0_24, %c0_25] : memref<8x1xf32, #tpu.memory_space<vmem>>, vector<8x1xf32>
      %37 = vector.broadcast %36 : vector<8x1xf32> to vector<8x128xf32>
      %38 = arith.subf %35, %37 : vector<8x128xf32>
      %39 = math.exp %38 : vector<8x128xf32>
      %40 = vector.broadcast %34 : vector<8x1xf32> to vector<8x128xf32>
      %41 = arith.mulf %39, %40 : vector<8x128xf32>
      %c0_26 = arith.constant 0 : index
      %c0_27 = arith.constant 0 : index
      %42 = vector.load %arg13[%c0_26, %c0_27] : memref<8x128xf32, #tpu.memory_space<vmem>>, vector<8x128xf32>
      tpu.vector_store %arg13[%c0_26, %c0_27], %41 {strides = array<i32>} : memref<8x128xf32, #tpu.memory_space<vmem>>, vector<8x128xf32>,
    } else {
    }
    return
  }
  func.func @transform_0(%arg0: i32) -> (i32, i32) {
    %c0_i32 = arith.constant 0 : i32
    %c0_i32_0 = arith.constant 0 : i32
    %c0_i32_1 = arith.constant 0 : i32
    return %c0_i32, %c0_i32_0 : i32, i32
  }
  func.func @transform_1(%arg0: i32) -> (i32, i32) {
    %c0_i32 = arith.constant 0 : i32
    %c0_i32_0 = arith.constant 0 : i32
    %c0_i32_1 = arith.constant 0 : i32
    return %c0_i32, %c0_i32_0 : i32, i32
  }
  func.func @transform_2(%arg0: i32) -> (i32, i32, i32) {
    %c0_i32 = arith.constant 0 : i32
    %c0_i32_0 = arith.constant 0 : i32
    %c0_i32_1 = arith.constant 0 : i32
    %c0_i32_2 = arith.constant 0 : i32
    return %c0_i32, %c0_i32_0, %c0_i32_1 : i32, i32, i32
  }
  func.func @transform_3(%arg0: i32) -> (i32, i32) {
    %c0_i32 = arith.constant 0 : i32
    %c0_i32_0 = arith.constant 0 : i32
    %c0_i32_1 = arith.constant 0 : i32
    return %c0_i32, %c0_i32_0 : i32, i32
  }
  func.func @transform_4(%arg0: i32) -> (i32, i32) {
    %c0_i32 = arith.constant 0 : i32
    %c0_i32_0 = arith.constant 0 : i32
    %c0_i32_1 = arith.constant 0 : i32
    return %c0_i32, %c0_i32_0 : i32, i32
  }
  func.func @transform_5(%arg0: i32) -> (i32, i32) {
    %c0_i32 = arith.constant 0 : i32
    %c0_i32_0 = arith.constant 0 : i32
    %c0_i32_1 = arith.constant 0 : i32
    return %c0_i32, %c0_i32_0 : i32, i32
  }
  func.func @transform_6(%arg0: i32) -> (i32, i32) {
    %c0_i32 = arith.constant 0 : i32
    %c0_i32_0 = arith.constant 0 : i32
    %c0_i32_1 = arith.constant 0 : i32
    return %c0_i32, %c0_i32_0 : i32, i32
  }
  func.func @transform_7(%arg0: i32) -> (i32, i32) {
    %c0_i32 = arith.constant 0 : i32
    %c0_i32_0 = arith.constant 0 : i32
    %c0_i32_1 = arith.constant 0 : i32
    return %c0_i32, %c0_i32_0 : i32, i32
  }
  func.func @transform_8(%arg0: i32) -> (i32, i32) {
    %c0_i32 = arith.constant 0 : i32
    %c0_i32_0 = arith.constant 0 : i32
    %c0_i32_1 = arith.constant 0 : i32
    return %c0_i32, %c0_i32_0 : i32, i32
  }
  func.func @transform_9(%arg0: i32) -> (i32, i32) {
    %c0_i32 = arith.constant 0 : i32
    %c0_i32_0 = arith.constant 0 : i32
    %c0_i32_1 = arith.constant 0 : i32
    return %c0_i32, %c0_i32_0 : i32, i32
  }
  func.func @transform_10(%arg0: i32) -> (i32, i32) {
    %c0_i32 = arith.constant 0 : i32
    %c0_i32_0 = arith.constant 0 : i32
    return %c0_i32, %arg0 : i32, i32
  }
  func.func @transform_11(%arg0: i32) -> (i32, i32) {
    %c0_i32 = arith.constant 0 : i32
    %c0_i32_0 = arith.constant 0 : i32
    return %c0_i32, %arg0 : i32, i32
  }
  func.func @transform_12(%arg0: i32) -> (i32, i32) {
    %c0_i32 = arith.constant 0 : i32
    %c0_i32_0 = arith.constant 0 : i32
    %c0_i32_1 = arith.constant 0 : i32
    return %c0_i32, %c0_i32_0 : i32, i32
  }
  func.func @transform_13(%arg0: i32) -> (i32, i32) {
    %c0_i32 = arith.constant 0 : i32
    %c0_i32_0 = arith.constant 0 : i32
    %c0_i32_1 = arith.constant 0 : i32
    return %c0_i32, %c0_i32_0 : i32, i32
  }
}

module attributes {stable_mosaic.version = 11 : i64} {
  func.func @decoder_step_kernel(%arg0: i32, %arg1: memref<8x32xf32, #tpu.memory_space<vmem>>, %arg2: memref<8x32xf32, #tpu.memory_space<vmem>>, %arg3: memref<8x8x32xf32, #tpu.memory_space<vmem>>, %arg4: memref<32x128xbf16, #tpu.memory_space<vmem>>, %arg5: memref<32x128xbf16, #tpu.memory_space<vmem>>, %arg6: memref<1x128xf32, #tpu.memory_space<vmem>>, %arg7: memref<64x96xbf16, #tpu.memory_space<vmem>>, %arg8: memref<32x96xbf16, #tpu.memory_space<vmem>>, %arg9: memref<1x96xf32, #tpu.memory_space<vmem>>, %arg10: memref<1x96xf32, #tpu.memory_space<vmem>>, %arg11: memref<96x128xbf16, #tpu.memory_space<vmem>>, %arg12: memref<1x128xf32, #tpu.memory_space<vmem>>, %arg13: memref<8x128xf32, #tpu.memory_space<vmem>>, %arg14: memref<8x32xf32, #tpu.memory_space<vmem>>, %arg15: memref<8x96xbf16, #tpu.memory_space<vmem>>, %arg16: memref<8x1xf32, #tpu.memory_space<vmem>>, %arg17: memref<8x1xf32, #tpu.memory_space<vmem>>) attributes {dimension_semantics = [#tpu.dimension_semantics<arbitrary>], iteration_bounds = array<i64: 1>, scalar_prefetch = 0 : i64, scratch_operands = 3 : i64, tpu.core_type = #tpu.core_type<tc>, window_params = [{pipeline_mode = #tpu.pipeline_mode<synchronous>, transform_indices = @transform_0, window_bounds = array<i64: 8, 32>}, {pipeline_mode = #tpu.pipeline_mode<synchronous>, transform_indices = @transform_1, window_bounds = array<i64: 8, 32>}, {pipeline_mode = #tpu.pipeline_mode<synchronous>, transform_indices = @transform_2, window_bounds = array<i64: 8, 8, 32>}, {pipeline_mode = #tpu.pipeline_mode<synchronous>, transform_indices = @transform_3, window_bounds = array<i64: 32, 128>}, {pipeline_mode = #tpu.pipeline_mode<synchronous>, transform_indices = @transform_4, window_bounds = array<i64: 32, 128>}, {pipeline_mode = #tpu.pipeline_mode<synchronous>, transform_indices = @transform_5, window_bounds = array<i64: 1, 128>}, {pipeline_mode = #tpu.pipeline_mode<synchronous>, transform_indices = @transform_6, window_bounds = array<i64: 64, 96>}, {pipeline_mode = #tpu.pipeline_mode<synchronous>, transform_indices = @transform_7, window_bounds = array<i64: 32, 96>}, {pipeline_mode = #tpu.pipeline_mode<synchronous>, transform_indices = @transform_8, window_bounds = array<i64: 1, 96>}, {pipeline_mode = #tpu.pipeline_mode<synchronous>, transform_indices = @transform_9, window_bounds = array<i64: 1, 96>}, {transform_indices = @transform_10, window_bounds = array<i64: 96, 128>}, {transform_indices = @transform_11, window_bounds = array<i64: 1, 128>}, {pipeline_mode = #tpu.pipeline_mode<synchronous>, transform_indices = @transform_12, window_bounds = array<i64: 8, 128>}, {pipeline_mode = #tpu.pipeline_mode<synchronous>, transform_indices = @transform_13, window_bounds = array<i64: 8, 32>}]} {
    %c0_i32 = arith.constant 0 : i32
    %0 = arith.cmpi eq, %arg0, %c0_i32 : i32
    %1 = arith.extui %0 : i1 to i32
    %c0_i32_0 = arith.constant 0 : i32
    %2 = arith.cmpi ne, %1, %c0_i32_0 : i32
    scf.if %2 {
      %c0_19 = arith.constant 0 : index
      %c0_20 = arith.constant 0 : index
      %32 = vector.load %arg1[%c0_19, %c0_20] : memref<8x32xf32, #tpu.memory_space<vmem>>, vector<8x32xf32>
      %c0_21 = arith.constant 0 : index
      %c0_22 = arith.constant 0 : index
      %33 = vector.load %arg2[%c0_21, %c0_22] : memref<8x32xf32, #tpu.memory_space<vmem>>, vector<8x32xf32>
      %c0_23 = arith.constant 0 : index
      %c0_24 = arith.constant 0 : index
      %c0_25 = arith.constant 0 : index
      %34 = vector.load %arg3[%c0_23, %c0_24, %c0_25] : memref<8x8x32xf32, #tpu.memory_space<vmem>>, vector<8x8x32xf32>
      %35 = arith.truncf %33 : vector<8x32xf32> to vector<8x32xbf16>
      %c0_26 = arith.constant 0 : index
      %c0_27 = arith.constant 0 : index
      %36 = vector.load %arg4[%c0_26, %c0_27] : memref<32x128xbf16, #tpu.memory_space<vmem>>, vector<32x128xbf16>
      %cst_28 = arith.constant dense<0.000000e+00> : vector<8x128xf32>
      %37 = tpu.matmul %35, %36, %cst_28 {dimension_numbers = #tpu.dot_dimension_numbers<[1], [0], [0], [1], [0, 0, 1, 1], [], []>} : vector<8x32xbf16>, vector<32x128xbf16>, vector<8x128xf32> -> vector<8x128xf32>
      %38 = arith.truncf %34 : vector<8x8x32xf32> to vector<8x8x32xbf16>
      %c0_29 = arith.constant 0 : index
      %c0_30 = arith.constant 0 : index
      %39 = vector.load %arg5[%c0_29, %c0_30] : memref<32x128xbf16, #tpu.memory_space<vmem>>, vector<32x128xbf16>
      %cst_31 = arith.constant dense<0.000000e+00> : vector<8x8x128xf32>
      %40 = tpu.matmul %38, %39, %cst_31 {dimension_numbers = #tpu.dot_dimension_numbers<[2], [0], [0, 1], [1], [0, 0, 0, 1, 1, 1], [], []>} : vector<8x8x32xbf16>, vector<32x128xbf16>, vector<8x8x128xf32> -> vector<8x8x128xf32>
      %41 = vector.shape_cast %37 : vector<8x128xf32> to vector<8x1x128xf32>
      %42 = vector.broadcast %41 : vector<8x1x128xf32> to vector<8x8x128xf32>
      %43 = arith.addf %40, %42 : vector<8x8x128xf32>
      %c0_32 = arith.constant 0 : index
      %c0_33 = arith.constant 0 : index
      %44 = vector.load %arg6[%c0_32, %c0_33] : memref<1x128xf32, #tpu.memory_space<vmem>>, vector<1x128xf32>
      %45 = vector.shape_cast %44 : vector<1x128xf32> to vector<1x1x128xf32>
      %46 = vector.broadcast %45 : vector<1x1x128xf32> to vector<8x8x128xf32>
      %47 = arith.addf %43, %46 : vector<8x8x128xf32>
      %48 = math.tanh %47 : vector<8x8x128xf32>
      %cst_34 = arith.constant dense<0.000000e+00> : vector<8x8xf32>
      %49 = vector.multi_reduction <add>, %48, %cst_34 [2] : vector<8x8x128xf32> to vector<8x8xf32>
      %cst_35 = arith.constant dense<0xFF800000> : vector<8xf32>
      %50 = vector.multi_reduction <maximumf>, %49, %cst_35 [1] : vector<8x8xf32> to vector<8xf32>
      %51 = vector.shape_cast %50 : vector<8xf32> to vector<8x1xf32>
      %52 = vector.broadcast %51 : vector<8x1xf32> to vector<8x8xf32>
      %53 = arith.subf %49, %52 : vector<8x8xf32>
      %54 = math.exp %53 : vector<8x8xf32>
      %cst_36 = arith.constant dense<0.000000e+00> : vector<8xf32>
      %55 = vector.multi_reduction <add>, %54, %cst_36 [1] : vector<8x8xf32> to vector<8xf32>
      %56 = vector.shape_cast %55 : vector<8xf32> to vector<8x1xf32>
      %57 = tpu.reciprocal %56 {approx = true} : vector<8x1xf32> -> vector<8x1xf32>
      %58 = vector.broadcast %57 : vector<8x1xf32> to vector<8x8xf32>
      %59 = arith.mulf %54, %58 : vector<8x8xf32>
      %60 = vector.shape_cast %59 : vector<8x8xf32> to vector<8x8x1xf32>
      %61 = vector.broadcast %60 : vector<8x8x1xf32> to vector<8x8x32xf32>
      %62 = arith.mulf %61, %34 : vector<8x8x32xf32>
      %cst_37 = arith.constant dense<0.000000e+00> : vector<8x32xf32>
      %63 = vector.multi_reduction <add>, %62, %cst_37 [1] : vector<8x8x32xf32> to vector<8x32xf32>
      %64 = tpu.concatenate %32, %63 in 1 : vector<8x32xf32>, vector<8x32xf32> -> vector<8x64xf32>
      %65 = arith.truncf %64 : vector<8x64xf32> to vector<8x64xbf16>
      %c0_38 = arith.constant 0 : index
      %c0_39 = arith.constant 0 : index
      %66 = vector.load %arg7[%c0_38, %c0_39] : memref<64x96xbf16, #tpu.memory_space<vmem>>, vector<64x96xbf16>
      %cst_40 = arith.constant dense<0.000000e+00> : vector<8x96xf32>
      %67 = tpu.matmul %65, %66, %cst_40 {dimension_numbers = #tpu.dot_dimension_numbers<[1], [0], [0], [1], [0, 0, 1, 1], [], []>} : vector<8x64xbf16>, vector<64x96xbf16>, vector<8x96xf32> -> vector<8x96xf32>
      %c0_41 = arith.constant 0 : index
      %c0_42 = arith.constant 0 : index
      %68 = vector.load %arg9[%c0_41, %c0_42] : memref<1x96xf32, #tpu.memory_space<vmem>>, vector<1x96xf32>
      %69 = vector.broadcast %68 : vector<1x96xf32> to vector<8x96xf32>
      %70 = arith.addf %67, %69 : vector<8x96xf32>
      %71 = arith.truncf %33 : vector<8x32xf32> to vector<8x32xbf16>
      %c0_43 = arith.constant 0 : index
      %c0_44 = arith.constant 0 : index
      %72 = vector.load %arg8[%c0_43, %c0_44] : memref<32x96xbf16, #tpu.memory_space<vmem>>, vector<32x96xbf16>
      %cst_45 = arith.constant dense<0.000000e+00> : vector<8x96xf32>
      %73 = tpu.matmul %71, %72, %cst_45 {dimension_numbers = #tpu.dot_dimension_numbers<[1], [0], [0], [1], [0, 0, 1, 1], [], []>} : vector<8x32xbf16>, vector<32x96xbf16>, vector<8x96xf32> -> vector<8x96xf32>
      %c0_46 = arith.constant 0 : index
      %c0_47 = arith.constant 0 : index
      %74 = vector.load %arg10[%c0_46, %c0_47] : memref<1x96xf32, #tpu.memory_space<vmem>>, vector<1x96xf32>
      %75 = vector.broadcast %74 : vector<1x96xf32> to vector<8x96xf32>
      %76 = arith.addf %73, %75 : vector<8x96xf32>
      %77 = vector.extract_strided_slice %70 {offsets = [0, 0], sizes = [8, 32], strides = [1, 1]} : vector<8x96xf32> to vector<8x32xf32>
      %78 = vector.extract_strided_slice %76 {offsets = [0, 0], sizes = [8, 32], strides = [1, 1]} : vector<8x96xf32> to vector<8x32xf32>
      %79 = arith.addf %77, %78 : vector<8x32xf32>
      %80 = arith.negf %79 : vector<8x32xf32>
      %81 = math.exp %80 : vector<8x32xf32>
      %cst_48 = arith.constant 1.000000e+00 : f32
      %82 = vector.broadcast %cst_48 : f32 to vector<8x32xf32>
      %83 = arith.addf %82, %81 : vector<8x32xf32>
      %84 = arith.divf %82, %83 : vector<8x32xf32>
      %85 = vector.extract_strided_slice %70 {offsets = [0, 32], sizes = [8, 32], strides = [1, 1]} : vector<8x96xf32> to vector<8x32xf32>
      %86 = vector.extract_strided_slice %76 {offsets = [0, 32], sizes = [8, 32], strides = [1, 1]} : vector<8x96xf32> to vector<8x32xf32>
      %87 = arith.addf %85, %86 : vector<8x32xf32>
      %88 = arith.negf %87 : vector<8x32xf32>
      %89 = math.exp %88 : vector<8x32xf32>
      %cst_49 = arith.constant 1.000000e+00 : f32
      %90 = vector.broadcast %cst_49 : f32 to vector<8x32xf32>
      %91 = arith.addf %90, %89 : vector<8x32xf32>
      %92 = arith.divf %90, %91 : vector<8x32xf32>
      %93 = vector.extract_strided_slice %70 {offsets = [0, 64], sizes = [8, 32], strides = [1, 1]} : vector<8x96xf32> to vector<8x32xf32>
      %94 = vector.extract_strided_slice %76 {offsets = [0, 64], sizes = [8, 32], strides = [1, 1]} : vector<8x96xf32> to vector<8x32xf32>
      %95 = arith.mulf %84, %94 : vector<8x32xf32>
      %96 = arith.addf %93, %95 : vector<8x32xf32>
      %97 = math.tanh %96 : vector<8x32xf32>
      %cst_50 = arith.constant 1.000000e+00 : f32
      %98 = vector.broadcast %cst_50 : f32 to vector<8x32xf32>
      %99 = arith.subf %98, %92 : vector<8x32xf32>
      %100 = arith.mulf %99, %97 : vector<8x32xf32>
      %101 = arith.mulf %92, %33 : vector<8x32xf32>
      %102 = arith.addf %100, %101 : vector<8x32xf32>
      %c0_51 = arith.constant 0 : index
      %c0_52 = arith.constant 0 : index
      %103 = vector.load %arg14[%c0_51, %c0_52] : memref<8x32xf32, #tpu.memory_space<vmem>>, vector<8x32xf32>
      tpu.vector_store %arg14[%c0_51, %c0_52], %102 {strides = array<i32>} : memref<8x32xf32, #tpu.memory_space<vmem>>, vector<8x32xf32>,
      %104 = tpu.concatenate %102, %63, %32 in 1 : vector<8x32xf32>, vector<8x32xf32>, vector<8x32xf32> -> vector<8x96xf32>
      %105 = arith.truncf %104 : vector<8x96xf32> to vector<8x96xbf16>
      %c0_53 = arith.constant 0 : index
      %c0_54 = arith.constant 0 : index
      %106 = vector.load %arg15[%c0_53, %c0_54] : memref<8x96xbf16, #tpu.memory_space<vmem>>, vector<8x96xbf16>
      tpu.vector_store %arg15[%c0_53, %c0_54], %105 {strides = array<i32>} : memref<8x96xbf16, #tpu.memory_space<vmem>>, vector<8x96xbf16>,
      %cst_55 = arith.constant -1.000000e+30 : f32
      %107 = vector.broadcast %cst_55 : f32 to vector<8x1xf32>
      %c0_56 = arith.constant 0 : index
      %c0_57 = arith.constant 0 : index
      %108 = vector.load %arg16[%c0_56, %c0_57] : memref<8x1xf32, #tpu.memory_space<vmem>>, vector<8x1xf32>
      tpu.vector_store %arg16[%c0_56, %c0_57], %107 {strides = array<i32>} : memref<8x1xf32, #tpu.memory_space<vmem>>, vector<8x1xf32>,
      %cst_58 = arith.constant 0.000000e+00 : f32
      %109 = vector.broadcast %cst_58 : f32 to vector<8x1xf32>
      %c0_59 = arith.constant 0 : index
      %c0_60 = arith.constant 0 : index
      %110 = vector.load %arg17[%c0_59, %c0_60] : memref<8x1xf32, #tpu.memory_space<vmem>>, vector<8x1xf32>
      tpu.vector_store %arg17[%c0_59, %c0_60], %109 {strides = array<i32>} : memref<8x1xf32, #tpu.memory_space<vmem>>, vector<8x1xf32>,
    } else {
    }
    %c0 = arith.constant 0 : index
    %c0_1 = arith.constant 0 : index
    %3 = vector.load %arg15[%c0, %c0_1] : memref<8x96xbf16, #tpu.memory_space<vmem>>, vector<8x96xbf16>
    %c0_2 = arith.constant 0 : index
    %c0_3 = arith.constant 0 : index
    %4 = vector.load %arg11[%c0_2, %c0_3] : memref<96x128xbf16, #tpu.memory_space<vmem>>, vector<96x128xbf16>
    %cst = arith.constant dense<0.000000e+00> : vector<8x128xf32>
    %5 = tpu.matmul %3, %4, %cst {dimension_numbers = #tpu.dot_dimension_numbers<[1], [0], [0], [1], [0, 0, 1, 1], [], []>} : vector<8x96xbf16>, vector<96x128xbf16>, vector<8x128xf32> -> vector<8x128xf32>
    %c0_4 = arith.constant 0 : index
    %c0_5 = arith.constant 0 : index
    %6 = vector.load %arg12[%c0_4, %c0_5] : memref<1x128xf32, #tpu.memory_space<vmem>>, vector<1x128xf32>
    %7 = vector.broadcast %6 : vector<1x128xf32> to vector<8x128xf32>
    %8 = arith.addf %5, %7 : vector<8x128xf32>
    %c128_i32 = arith.constant 128 : i32
    %9 = arith.muli %arg0, %c128_i32 : i32
    %10 = tpu.assume_multiple %9, 128 : i32
    %c0_6 = arith.constant 0 : index
    %11 = arith.index_cast %10 : i32 to index
    %12 = vector.load %arg13[%c0_6, %11] : memref<8x128xf32, #tpu.memory_space<vmem>>, vector<8x128xf32>
    tpu.vector_store %arg13[%c0_6, %11], %8 {strides = array<i32>} : memref<8x128xf32, #tpu.memory_space<vmem>>, vector<8x128xf32>,
    %c0_7 = arith.constant 0 : index
    %c0_8 = arith.constant 0 : index
    %13 = vector.load %arg16[%c0_7, %c0_8] : memref<8x1xf32, #tpu.memory_space<vmem>>, vector<8x1xf32>
    %cst_9 = arith.constant dense<0xFF800000> : vector<8xf32>
    %14 = vector.multi_reduction <maximumf>, %8, %cst_9 [1] : vector<8x128xf32> to vector<8xf32>
    %15 = vector.shape_cast %14 : vector<8xf32> to vector<8x1xf32>
    %16 = arith.maximumf %13, %15 : vector<8x1xf32>
    %c0_10 = arith.constant 0 : index
    %c0_11 = arith.constant 0 : index
    %17 = vector.load %arg17[%c0_10, %c0_11] : memref<8x1xf32, #tpu.memory_space<vmem>>, vector<8x1xf32>
    %18 = arith.subf %13, %16 : vector<8x1xf32>
    %19 = math.exp %18 : vector<8x1xf32>
    %20 = arith.mulf %17, %19 : vector<8x1xf32>
    %21 = vector.broadcast %16 : vector<8x1xf32> to vector<8x128xf32>
    %22 = arith.subf %8, %21 : vector<8x128xf32>
    %23 = math.exp %22 : vector<8x128xf32>
    %cst_12 = arith.constant dense<0.000000e+00> : vector<8xf32>
    %24 = vector.multi_reduction <add>, %23, %cst_12 [1] : vector<8x128xf32> to vector<8xf32>
    %25 = vector.shape_cast %24 : vector<8xf32> to vector<8x1xf32>
    %26 = arith.addf %20, %25 : vector<8x1xf32>
    %c0_13 = arith.constant 0 : index
    %c0_14 = arith.constant 0 : index
    %27 = vector.load %arg17[%c0_13, %c0_14] : memref<8x1xf32, #tpu.memory_space<vmem>>, vector<8x1xf32>
    tpu.vector_store %arg17[%c0_13, %c0_14], %26 {strides = array<i32>} : memref<8x1xf32, #tpu.memory_space<vmem>>, vector<8x1xf32>,
    %c0_15 = arith.constant 0 : index
    %c0_16 = arith.constant 0 : index
    %28 = vector.load %arg16[%c0_15, %c0_16] : memref<8x1xf32, #tpu.memory_space<vmem>>, vector<8x1xf32>
    tpu.vector_store %arg16[%c0_15, %c0_16], %16 {strides = array<i32>} : memref<8x1xf32, #tpu.memory_space<vmem>>, vector<8x1xf32>,
    %c0_i32_17 = arith.constant 0 : i32
    %29 = arith.cmpi eq, %arg0, %c0_i32_17 : i32
    %30 = arith.extui %29 : i1 to i32
    %c0_i32_18 = arith.constant 0 : i32
    %31 = arith.cmpi ne, %30, %c0_i32_18 : i32
    scf.if %31 {
      %c0_19 = arith.constant 0 : index
      %c0_20 = arith.constant 0 : index
      %32 = vector.load %arg17[%c0_19, %c0_20] : memref<8x1xf32, #tpu.memory_space<vmem>>, vector<8x1xf32>
      %cst_21 = arith.constant 1.000000e+00 : f32
      %33 = vector.broadcast %cst_21 : f32 to vector<8x1xf32>
      %34 = arith.divf %33, %32 : vector<8x1xf32>
      %c0_22 = arith.constant 0 : index
      %c0_23 = arith.constant 0 : index
      %35 = vector.load %arg13[%c0_22, %c0_23] : memref<8x128xf32, #tpu.memory_space<vmem>>, vector<8x128xf32>
      %c0_24 = arith.constant 0 : index
      %c0_25 = arith.constant 0 : index
      %36 = vector.load %arg16[%c0_24, %c0_25] : memref<8x1xf32, #tpu.memory_space<vmem>>, vector<8x1xf32>
      %37 = vector.broadcast %36 : vector<8x1xf32> to vector<8x128xf32>
      %38 = arith.subf %35, %37 : vector<8x128xf32>
      %39 = math.exp %38 : vector<8x128xf32>
      %40 = vector.broadcast %34 : vector<8x1xf32> to vector<8x128xf32>
      %41 = arith.mulf %39, %40 : vector<8x128xf32>
      %c0_26 = arith.constant 0 : index
      %c0_27 = arith.constant 0 : index
      %42 = vector.load %arg13[%c0_26, %c0_27] : memref<8x128xf32, #tpu.memory_space<vmem>>, vector<8x128xf32>
      tpu.vector_store %arg13[%c0_26, %c0_27], %41 {strides = array<i32>} : memref<8x128xf32, #tpu.memory_space<vmem>>, vector<8x128xf32>,
    } else {
    }
    return
  }
  func.func @transform_0(%arg0: i32) -> (i32, i32) {
    %c0_i32 = arith.constant 0 : i32
    %c0_i32_0 = arith.constant 0 : i32
    %c0_i32_1 = arith.constant 0 : i32
    return %c0_i32, %c0_i32_0 : i32, i32
  }
  func.func @transform_1(%arg0: i32) -> (i32, i32) {
    %c0_i32 = arith.constant 0 : i32
    %c0_i32_0 = arith.constant 0 : i32
    %c0_i32_1 = arith.constant 0 : i32
    return %c0_i32, %c0_i32_0 : i32, i32
  }
  func.func @transform_2(%arg0: i32) -> (i32, i32, i32) {
    %c0_i32 = arith.constant 0 : i32
    %c0_i32_0 = arith.constant 0 : i32
    %c0_i32_1 = arith.constant 0 : i32
    %c0_i32_2 = arith.constant 0 : i32
    return %c0_i32, %c0_i32_0, %c0_i32_1 : i32, i32, i32
  }
  func.func @transform_3(%arg0: i32) -> (i32, i32) {
    %c0_i32 = arith.constant 0 : i32
    %c0_i32_0 = arith.constant 0 : i32
    %c0_i32_1 = arith.constant 0 : i32
    return %c0_i32, %c0_i32_0 : i32, i32
  }
  func.func @transform_4(%arg0: i32) -> (i32, i32) {
    %c0_i32 = arith.constant 0 : i32
    %c0_i32_0 = arith.constant 0 : i32
    %c0_i32_1 = arith.constant 0 : i32
    return %c0_i32, %c0_i32_0 : i32, i32
  }
  func.func @transform_5(%arg0: i32) -> (i32, i32) {
    %c0_i32 = arith.constant 0 : i32
    %c0_i32_0 = arith.constant 0 : i32
    %c0_i32_1 = arith.constant 0 : i32
    return %c0_i32, %c0_i32_0 : i32, i32
  }
  func.func @transform_6(%arg0: i32) -> (i32, i32) {
    %c0_i32 = arith.constant 0 : i32
    %c0_i32_0 = arith.constant 0 : i32
    %c0_i32_1 = arith.constant 0 : i32
    return %c0_i32, %c0_i32_0 : i32, i32
  }
  func.func @transform_7(%arg0: i32) -> (i32, i32) {
    %c0_i32 = arith.constant 0 : i32
    %c0_i32_0 = arith.constant 0 : i32
    %c0_i32_1 = arith.constant 0 : i32
    return %c0_i32, %c0_i32_0 : i32, i32
  }
  func.func @transform_8(%arg0: i32) -> (i32, i32) {
    %c0_i32 = arith.constant 0 : i32
    %c0_i32_0 = arith.constant 0 : i32
    %c0_i32_1 = arith.constant 0 : i32
    return %c0_i32, %c0_i32_0 : i32, i32
  }
  func.func @transform_9(%arg0: i32) -> (i32, i32) {
    %c0_i32 = arith.constant 0 : i32
    %c0_i32_0 = arith.constant 0 : i32
    %c0_i32_1 = arith.constant 0 : i32
    return %c0_i32, %c0_i32_0 : i32, i32
  }
  func.func @transform_10(%arg0: i32) -> (i32, i32) {
    %c0_i32 = arith.constant 0 : i32
    %c0_i32_0 = arith.constant 0 : i32
    return %c0_i32, %arg0 : i32, i32
  }
  func.func @transform_11(%arg0: i32) -> (i32, i32) {
    %c0_i32 = arith.constant 0 : i32
    %c0_i32_0 = arith.constant 0 : i32
    return %c0_i32, %arg0 : i32, i32
  }
  func.func @transform_12(%arg0: i32) -> (i32, i32) {
    %c0_i32 = arith.constant 0 : i32
    %c0_i32_0 = arith.constant 0 : i32
    %c0_i32_1 = arith.constant 0 : i32
    return %c0_i32, %c0_i32_0 : i32, i32
  }
  func.func @transform_13(%arg0: i32) -> (i32, i32) {
    %c0_i32 = arith.constant 0 : i32
    %c0_i32_0 = arith.constant 0 : i32
    %c0_i32_1 = arith.constant 0 : i32
    return %c0_i32, %c0_i32_0 : i32, i32
  }
}

</mosaic_0001>

<llo_original>
// kernel: tpu_custom_call.1
$region0: #{tpu_custom_call.1}
  #allocation0 [shape = 'u32[]', space=smem, size = 0x4, offset = 0x4, fixed_abs, tag = 'smem constant byte address 0x4 - core index']
  #allocation1 [shape = 'u32[144,128]{1,0:T(1,128)}', space=vmem, size = 0x12000, scoped, tag = 'internal scratch']
  #allocation2 [shape = 'bf16[8,96]{1,0:T(8,128)(2,1)}', space=vmem, size = 0x800, scoped, tag = 'scratch operand']
  #allocation3 [shape = 'f32[8,1]{1,0:T(8,128)}', space=vmem, size = 0x1000, scoped, tag = 'scratch operand']
  #allocation4 [shape = 'f32[8,1]{1,0:T(8,128)}', space=vmem, size = 0x1000, scoped, tag = 'scratch operand']
  %s0 = inlined_call_operand.hbm [shape: f32[8,32], index: 0, kind: input, shape index: {}]
  %s1 = inlined_call_operand.hbm [shape: f32[8,32], index: 1, kind: input, shape index: {}]
  %s2 = inlined_call_operand.hbm [shape: f32[8,8,32], index: 2, kind: input, shape index: {}]
  %s3 = inlined_call_operand.hbm [shape: bf16[32,128], index: 3, kind: input, shape index: {}]
  %s4 = inlined_call_operand.hbm [shape: bf16[32,128], index: 4, kind: input, shape index: {}]
  %s5 = inlined_call_operand.vmem [shape: f32[1,128], index: 5, kind: input, shape index: {}]
  %s6 = inlined_call_operand.hbm [shape: bf16[64,96], index: 6, kind: input, shape index: {}]
  %s7 = inlined_call_operand.hbm [shape: bf16[32,96], index: 7, kind: input, shape index: {}]
  %s8 = inlined_call_operand.vmem [shape: f32[1,96], index: 8, kind: input, shape index: {}]
  %s9 = inlined_call_operand.vmem [shape: f32[1,96], index: 9, kind: input, shape index: {}]
  %s10 = inlined_call_operand.hbm [shape: bf16[96,128], index: 10, kind: input, shape index: {}]
  %s11 = inlined_call_operand.vmem [shape: f32[1,128], index: 11, kind: input, shape index: {}]
  %s12 = inlined_call_operand.hbm [shape: f32[8,128], index: 12, kind: output, shape index: {0}]
  %s13 = inlined_call_operand.hbm [shape: f32[8,32], index: 13, kind: output, shape index: {1}]
  %14 = xla_tuple %s12, %s13
  %s15 = sld [smem:[#allocation0]]
  $region106: #{tpu_custom_call.1} parent=0
    _
  %s17 = ssub.s32 1, %s15
  %s18 = scalar_select 0, %s17, %s15
  $region1: #{tpu_custom_call.1} parent=0
    #allocation5 [shape = 'u8[4096]{0}', space=vmem, size = 0x1000, scoped, tag = 'input window, operand 0, single buffered']
    #allocation6 [shape = 's32[1]{0}', space=sflag, size = 0x4, scoped, tag = 'scoped memory for tpu_custom_call.1']
    #allocation7 [shape = 's32[1]{0}', space=sflag, size = 0x4, scoped, tag = 'scoped memory for tpu_custom_call.1']
    #allocation8 [shape = 'u8[4096]{0}', space=vmem, size = 0x1000, scoped, tag = 'input window, operand 1, single buffered']
    #allocation9 [shape = 's32[1]{0}', space=sflag, size = 0x4, scoped, tag = 'scoped memory for tpu_custom_call.1']
    #allocation10 [shape = 'u8[32768]{0}', space=vmem, size = 0x8000, scoped, tag = 'input window, operand 2, single buffered']
    #allocation11 [shape = 'u8[8192]{0}', space=vmem, size = 0x2000, scoped, tag = 'input window, operand 3, single buffered']
    #allocation12 [shape = 's32[1]{0}', space=sflag, size = 0x4, scoped, tag = 'scoped memory for tpu_custom_call.1']
    #allocation13 [shape = 'u8[8192]{0}', space=vmem, size = 0x2000, scoped, tag = 'input window, operand 4, single buffered']
    #allocation14 [shape = 'u8[16384]{0}', space=vmem, size = 0x4000, scoped, tag = 'input window, operand 6, single buffered']
    #allocation15 [shape = 's32[1]{0}', space=sflag, size = 0x4, scoped, tag = 'scoped memory for tpu_custom_call.1']
    #allocation16 [shape = 'u8[8192]{0}', space=vmem, size = 0x2000, scoped, tag = 'input window, operand 7, single buffered']
    #allocation17 [shape = 'u8[24576]{0}', space=vmem, size = 0x6000, scoped, tag = 'input window, operand 10, single buffered']
    #allocation18 [shape = 's32[1]{0}', space=sflag, size = 0x4, scoped, tag = 'scoped memory for tpu_custom_call.1']
    #allocation19 [shape = 'u8[4096]{0}', space=vmem, size = 0x1000, scoped, tag = 'output window, operand 0, single buffered']
    #allocation20 [shape = 'u8[4096]{0}', space=vmem, size = 0x1000, scoped, tag = 'output window, operand 1, single buffered']
    #allocation21 [shape = 's32[1]{0}', space=sflag, size = 0x4, scoped, tag = 'scoped memory for tpu_custom_call.1']
    %19 = vsyncpa [#allocation6], 0
    %20 = vsyncpa [#allocation9], 0
    %21 = vsyncpa [#allocation12], 0
    %22 = vsyncpa [#allocation15], 0
    %23 = vsyncpa [#allocation18], 0
    %24 = vsyncpa [#allocation7], 0
    %25 = vsyncpa [#allocation21], 0
    // Predicated region
    $region2: #{tpu_custom_call.1} parent=1 // pred_check
      _
    $region3: #{tpu_custom_call.1} parent=1 // pred_check_branch
      %27 = sbr.rel (0) target = $region5
    $region4: #{tpu_custom_call.1} parent=1 // pred_region
      %s29 = ssub.s32 128, 128
      %30 = vsyncadd [#allocation6], %s29
      %s32 = sshll.u32 [#allocation5], 4
      %s33 = int_to_ptr.vmem [resolvable:$true] %s32
      %35 = dma.hbm_to_vmem [thread:$0]  %s0, 128, %s33, [#allocation6]
    $region5: #{tpu_custom_call.1} parent=1 // pred_fallthru
      _
    // Predicated region
    $region6: #{tpu_custom_call.1} parent=1 // pred_check
      _
    $region7: #{tpu_custom_call.1} parent=1 // pred_check_branch
      %37 = sbr.rel (0) target = $region9
    $region8: #{tpu_custom_call.1} parent=1 // pred_region
      %s39 = ssub.s32 128, 128
      %40 = vsyncadd [#allocation9], %s39
      %s42 = sshll.u32 [#allocation8], 4
      %s43 = int_to_ptr.vmem [resolvable:$true] %s42
      %45 = dma.hbm_to_vmem [thread:$0]  %s1, 128, %s43, [#allocation9]
    $region9: #{tpu_custom_call.1} parent=1 // pred_fallthru
      _
    // Predicated region
    $region10: #{tpu_custom_call.1} parent=1 // pred_check
      _
    $region11: #{tpu_custom_call.1} parent=1 // pred_check_branch
      %47 = sbr.rel (0) target = $region13
    $region12: #{tpu_custom_call.1} parent=1 // pred_region
      %s49 = ssub.s32 1024, 1024
      %50 = vsyncadd [#allocation9], %s49
      %s51 = sshll.u32 [#allocation10], 4
      %s52 = int_to_ptr.vmem [resolvable:$true] %s51
      %57 = dma.hbm_to_vmem [thread:$0]  %s2, 1024, %s52, [#allocation9], 128, 128, 8
    $region13: #{tpu_custom_call.1} parent=1 // pred_fallthru
      _
    // Predicated region
    $region14: #{tpu_custom_call.1} parent=1 // pred_check
      _
    $region15: #{tpu_custom_call.1} parent=1 // pred_check_branch
      %59 = sbr.rel (0) target = $region17
    $region16: #{tpu_custom_call.1} parent=1 // pred_region
      %s61 = ssub.s32 256, 256
      %62 = vsyncadd [#allocation12], %s61
      %s63 = sshll.u32 [#allocation11], 4
      %s64 = int_to_ptr.vmem [resolvable:$true] %s63
      %69 = dma.hbm_to_vmem [thread:$0]  %s3, 256, %s64, [#allocation12], 64, 64, 4
    $region17: #{tpu_custom_call.1} parent=1 // pred_fallthru
      _
    // Predicated region
    $region18: #{tpu_custom_call.1} parent=1 // pred_check
      _
    $region19: #{tpu_custom_call.1} parent=1 // pred_check_branch
      %71 = sbr.rel (0) target = $region21
    $region20: #{tpu_custom_call.1} parent=1 // pred_region
      %s73 = ssub.s32 256, 256
      %74 = vsyncadd [#allocation12], %s73
      %s75 = sshll.u32 [#allocation13], 4
      %s76 = int_to_ptr.vmem [resolvable:$true] %s75
      %81 = dma.hbm_to_vmem [thread:$0]  %s4, 256, %s76, [#allocation12], 64, 64, 4
    $region21: #{tpu_custom_call.1} parent=1 // pred_fallthru
      _
    // Predicated region
    $region22: #{tpu_custom_call.1} parent=1 // pred_check
      _
    $region23: #{tpu_custom_call.1} parent=1 // pred_check_branch
      %83 = sbr.rel (0) target = $region25
    $region24: #{tpu_custom_call.1} parent=1 // pred_region
      _
    $region25: #{tpu_custom_call.1} parent=1 // pred_fallthru
      _
    // Predicated region
    $region26: #{tpu_custom_call.1} parent=1 // pred_check
      _
    $region27: #{tpu_custom_call.1} parent=1 // pred_check_branch
      %85 = sbr.rel (0) target = $region29
    $region28: #{tpu_custom_call.1} parent=1 // pred_region
      %s87 = ssub.s32 512, 512
      %88 = vsyncadd [#allocation15], %s87
      %s89 = sshll.u32 [#allocation14], 4
      %s90 = int_to_ptr.vmem [resolvable:$true] %s89
      %95 = dma.hbm_to_vmem [thread:$0]  %s6, 512, %s90, [#allocation15], 64, 64, 4
    $region29: #{tpu_custom_call.1} parent=1 // pred_fallthru
      _
    // Predicated region
    $region30: #{tpu_custom_call.1} parent=1 // pred_check
      _
    $region31: #{tpu_custom_call.1} parent=1 // pred_check_branch
      %97 = sbr.rel (0) target = $region33
    $region32: #{tpu_custom_call.1} parent=1 // pred_region
      %s99 = ssub.s32 256, 256
      %100 = vsyncadd [#allocation15], %s99
      %s101 = sshll.u32 [#allocation16], 4
      %s102 = int_to_ptr.vmem [resolvable:$true] %s101
      %107 = dma.hbm_to_vmem [thread:$0]  %s7, 256, %s102, [#allocation15], 64, 64, 4
    $region33: #{tpu_custom_call.1} parent=1 // pred_fallthru
      _
    // Predicated region
    $region34: #{tpu_custom_call.1} parent=1 // pred_check
      _
    $region35: #{tpu_custom_call.1} parent=1 // pred_check_branch
      %109 = sbr.rel (0) target = $region37
    $region36: #{tpu_custom_call.1} parent=1 // pred_region
      _
    $region37: #{tpu_custom_call.1} parent=1 // pred_fallthru
      _
    // Predicated region
    $region38: #{tpu_custom_call.1} parent=1 // pred_check
      _
    $region39: #{tpu_custom_call.1} parent=1 // pred_check_branch
      %111 = sbr.rel (0) target = $region41
    $region40: #{tpu_custom_call.1} parent=1 // pred_region
      _
    $region41: #{tpu_custom_call.1} parent=1 // pred_fallthru
      _
    // Predicated region
    $region42: #{tpu_custom_call.1} parent=1 // pred_check
      _
    $region43: #{tpu_custom_call.1} parent=1 // pred_check_branch
      %113 = sbr.rel (0) target = $region45
    $region44: #{tpu_custom_call.1} parent=1 // pred_region
      %s115 = ssub.s32 768, 768
      %116 = vsyncadd [#allocation18], %s115
      %s117 = sshll.u32 [#allocation17], 4
      %s118 = int_to_ptr.vmem [resolvable:$true] %s117
      %123 = dma.hbm_to_vmem [thread:$0]  %s10, 768, %s118, [#allocation18], 64, 64, 4
    $region45: #{tpu_custom_call.1} parent=1 // pred_fallthru
      _
    // Predicated region
    $region46: #{tpu_custom_call.1} parent=1 // pred_check
      _
    $region47: #{tpu_custom_call.1} parent=1 // pred_check_branch
      %125 = sbr.rel (0) target = $region49
    $region48: #{tpu_custom_call.1} parent=1 // pred_region
      _
    $region49: #{tpu_custom_call.1} parent=1 // pred_fallthru
      _
    // Predicated region
    $region50: #{tpu_custom_call.1} parent=1 // pred_check
      _
    $region51: #{tpu_custom_call.1} parent=1 // pred_check_branch
      %127 = sbr.rel (0) target = $region53
    $region52: #{tpu_custom_call.1} parent=1 // pred_region
      %128 = dma.done [#allocation6], 128
    $region53: #{tpu_custom_call.1} parent=1 // pred_fallthru
      _
    // Predicated region
    $region54: #{tpu_custom_call.1} parent=1 // pred_check
      _
    $region55: #{tpu_custom_call.1} parent=1 // pred_check_branch
      %130 = sbr.rel (0) target = $region57
    $region56: #{tpu_custom_call.1} parent=1 // pred_region
      %131 = dma.done [#allocation9], 128
    $region57: #{tpu_custom_call.1} parent=1 // pred_fallthru
      _
    // Predicated region
    $region58: #{tpu_custom_call.1} parent=1 // pred_check
      _
    $region59: #{tpu_custom_call.1} parent=1 // pred_check_branch
      %133 = sbr.rel (0) target = $region61
    $region60: #{tpu_custom_call.1} parent=1 // pred_region
      %134 = dma.done [#allocation9], 1024
    $region61: #{tpu_custom_call.1} parent=1 // pred_fallthru
      _
    // Predicated region
    $region62: #{tpu_custom_call.1} parent=1 // pred_check
      _
    $region63: #{tpu_custom_call.1} parent=1 // pred_check_branch
      %136 = sbr.rel (0) target = $region65
    $region64: #{tpu_custom_call.1} parent=1 // pred_region
      %137 = dma.done [#allocation12], 256
    $region65: #{tpu_custom_call.1} parent=1 // pred_fallthru
      _
    // Predicated region
    $region66: #{tpu_custom_call.1} parent=1 // pred_check
      _
    $region67: #{tpu_custom_call.1} parent=1 // pred_check_branch
      %139 = sbr.rel (0) target = $region69
    $region68: #{tpu_custom_call.1} parent=1 // pred_region
      %140 = dma.done [#allocation12], 256
    $region69: #{tpu_custom_call.1} parent=1 // pred_fallthru
      _
    // Predicated region
    $region70: #{tpu_custom_call.1} parent=1 // pred_check
      _
    $region71: #{tpu_custom_call.1} parent=1 // pred_check_branch
      %142 = sbr.rel (0) target = $region73
    $region72: #{tpu_custom_call.1} parent=1 // pred_region
      %143 = dma.done [#allocation15], 512
    $region73: #{tpu_custom_call.1} parent=1 // pred_fallthru
      _
    // Predicated region
    $region74: #{tpu_custom_call.1} parent=1 // pred_check
      _
    $region75: #{tpu_custom_call.1} parent=1 // pred_check_branch
      %145 = sbr.rel (0) target = $region77
    $region76: #{tpu_custom_call.1} parent=1 // pred_region
      %146 = dma.done [#allocation15], 256
    $region77: #{tpu_custom_call.1} parent=1 // pred_fallthru
      _
    // Predicated region
    $region78: #{tpu_custom_call.1} parent=1 // pred_check
      _
    $region79: #{tpu_custom_call.1} parent=1 // pred_check_branch
      %148 = sbr.rel (0) target = $region81
    $region80: #{tpu_custom_call.1} parent=1 // pred_region
      %149 = dma.done [#allocation18], 768
    $region81: #{tpu_custom_call.1} parent=1 // pred_fallthru
      _
    %p151 = scmp.eq.s32.totalorder 0, 0
    // Predicated region
    $region82: #{tpu_custom_call.1} parent=1 // pred_check
      %p152 = pneg %p151
    $region83: #{tpu_custom_call.1} parent=1 // pred_check_branch
      %154 = sbr.rel (%p152) target = $region85
    $region84: #{tpu_custom_call.1} parent=1 // pred_region
      %v155 = vld [vmem:[#allocation5] sm:$0xff]
      %v156 = vld [vmem:[#allocation8] sm:$0xff]
      %v157 = vld [vmem:[#allocation10] sm:$0xff]
      %v158 = vld [vmem:[#allocation10 + $0x8] sm:$0xff]
      %v159 = vld [vmem:[#allocation10 + $0x10] sm:$0xff]
      %v160 = vld [vmem:[#allocation10 + $0x18] sm:$0xff]
      %v161 = vld [vmem:[#allocation10 + $0x20] sm:$0xff]
      %v162 = vld [vmem:[#allocation10 + $0x28] sm:$0xff]
      %v163 = vld [vmem:[#allocation10 + $0x30] sm:$0xff]
      %v164 = vld [vmem:[#allocation10 + $0x38] sm:$0xff]
      %v165 = vpack.c.bf16 %v156, %v156
      %v166 = vld [vmem:[#allocation11] sm:$0xf]
      %v167 = vld [vmem:[#allocation11 + $0x4] sm:$0xf]
      %v168 = vld [vmem:[#allocation11 + $0x8] sm:$0xf]
      %v169 = vld [vmem:[#allocation11 + $0xc] sm:$0xf]
      %v174 = vunpack.c.l.b16 %v166
      %v175 = vunpack.c.l.b16 %v167
      %v176 = vunpack.c.l.b16 %v168
      %v177 = vunpack.c.l.b16 %v169
      %v178 = vpack.c.b16 %v175, %v174
      %v179 = vpack.c.b16 %v177, %v176
      %vm182 = vcmask 261120
      %v184 = vsel %vm182, %v165, 0
      %186 = vmatprep.subr.bf16.mxu0 0
      %187 = vmatpush1.bf16.msra.mxu0 0
      %188 = vmatprep.subr.bf16.mxu0 0
      %189 = vmatpush1.bf16.msra.mxu0 0
      %190 = vmatprep.subr.bf16.mxu0 0
      %191 = vmatpush1.bf16.msra.mxu0 0
      %192 = vmatprep.subr.bf16.mxu0 0
      %193 = vmatpush1.bf16.msra.mxu0 0
      %194 = vmatprep.subr.bf16.mxu0 0
      %195 = vmatpush1.bf16.msra.mxu0 0
      %196 = vmatprep.subr.bf16.mxu0 0
      %197 = vmatpush1.bf16.msra.mxu0 0
      %198 = vmatprep.subr.bf16.mxu0 0
      %199 = vmatpush1.bf16.msra.mxu0 %v179
      %200 = vmatprep.subr.bf16.mxu0 0
      %201 = vmatpush1.bf16.msra.mxu0 %v178
      %202 = vmatprep.subr.bf16.mxu0 0
      %203 = vmatpush2.bf16.msra.mxu0 0
      %204 = vmatprep.subr.bf16.mxu0 0
      %205 = vmatpush2.bf16.msra.mxu0 0
      %206 = vmatprep.subr.bf16.mxu0 0
      %207 = vmatpush2.bf16.msra.mxu0 0
      %208 = vmatprep.subr.bf16.mxu0 0
      %209 = vmatpush2.bf16.msra.mxu0 0
      %210 = vmatprep.subr.bf16.mxu0 0
      %211 = vmatpush2.bf16.msra.mxu0 0
      %212 = vmatprep.subr.bf16.mxu0 0
      %213 = vmatpush2.bf16.msra.mxu0 0
      %214 = vmatprep.subr.bf16.mxu0 0
      %215 = vmatpush2.bf16.msra.mxu0 0
      %216 = vmatprep.subr.bf16.mxu0 0
      %217 = vmatpush2.bf16.msra.mxu0 0
      %218 = vmatprep.mubr.bf16.mxu0 0
      %219 = vmatmul.mubr.bf16.gmra.mxu0 %v184
      %v220 = vpop.f32.mrf.mxu0
      %v221 = vadd.f32 0.0, %v220
      %v222 = vpop.f32.mrf.mxu0
      %v223 = vpop.f32.mrf.mxu0
      %v224 = vpop.f32.mrf.mxu0
      %225 = vdwg.mxu0
      %v226 = vpack.c.bf16 %v157, %v157
      %v227 = vpack.c.bf16 %v158, %v158
      %v228 = vpack.c.bf16 %v159, %v159
      %v229 = vpack.c.bf16 %v160, %v160
      %v230 = vpack.c.bf16 %v161, %v161
      %v231 = vpack.c.bf16 %v162, %v162
      %v232 = vpack.c.bf16 %v163, %v163
      %v233 = vpack.c.bf16 %v164, %v164
      %v234 = vld [vmem:[#allocation13] sm:$0xf]
      %v235 = vld [vmem:[#allocation13 + $0x4] sm:$0xf]
      %v236 = vld [vmem:[#allocation13 + $0x8] sm:$0xf]
      %v237 = vld [vmem:[#allocation13 + $0xc] sm:$0xf]
      %v239 = vcombine.high %v221, %v221
      %v241 = vunpack.c.l.s4 1966171168
      %v242 = vunpack.c.0.s8 %v241
      %v243 = vlaneseq
      %v244 = vshrl.u32 %v243, 7
      %v245 = vsub.s32 %v242, %v244
      %v246 = vrot.slane %v221, %v245
      %v248 = vunpack.c.l.s4 1966171168
      %v249 = vunpack.c.0.s8 %v248
      %v250 = vlaneseq
      %v251 = vshrl.u32 %v250, 7
      %v252 = vsub.s32 %v249, %v251
      %v253 = vrot.slane %v239, %v252
      %v254 = vcombine.high %v246, %v246
      %v255 = vcombine.high %v253, %v253
      %v257 = vunpack.c.l.s4 1966171168
      %v258 = vunpack.c.0.s8 %v257
      %v259 = vlaneseq
      %v260 = vshrl.u32 %v259, 7
      %v261 = vsub.s32 %v258, %v260
      %v262 = vrot.slane %v246, %v261
      %v264 = vunpack.c.l.s4 1966171168
      %v265 = vunpack.c.0.s8 %v264
      %v266 = vlaneseq
      %v267 = vshrl.u32 %v266, 7
      %v268 = vsub.s32 %v265, %v267
      %v269 = vrot.slane %v253, %v268
      %v271 = vunpack.c.l.s4 1966171168
      %v272 = vunpack.c.0.s8 %v271
      %v273 = vlaneseq
      %v274 = vshrl.u32 %v273, 7
      %v275 = vsub.s32 %v272, %v274
      %v276 = vrot.slane %v254, %v275
      %v278 = vunpack.c.l.s4 1966171168
      %v279 = vunpack.c.0.s8 %v278
      %v280 = vlaneseq
      %v281 = vshrl.u32 %v280, 7
      %v282 = vsub.s32 %v279, %v281
      %v283 = vrot.slane %v255, %v282
      %v284 = vcombine.high %v262, %v262
      %v285 = vcombine.high %v269, %v269
      %v286 = vcombine.high %v276, %v276
      %v287 = vcombine.high %v283, %v283
      %v288 = vlaneseq
      %v289 = vshrl.u32 %v288, 7
      %v290 = vsub.s32 0, %v289
      %v291 = vrot.slane %v262, %v290
      %v292 = vlaneseq
      %v293 = vshrl.u32 %v292, 7
      %v294 = vsub.s32 0, %v293
      %v295 = vrot.slane %v276, %v294
      %v296 = vlaneseq
      %v297 = vshrl.u32 %v296, 7
      %v298 = vsub.s32 0, %v297
      %v299 = vrot.slane %v284, %v298
      %v300 = vlaneseq
      %v301 = vshrl.u32 %v300, 7
      %v302 = vsub.s32 0, %v301
      %v303 = vrot.slane %v286, %v302
      %v304 = vlaneseq
      %v305 = vshrl.u32 %v304, 7
      %v306 = vsub.s32 0, %v305
      %v307 = vrot.slane %v269, %v306
      %v308 = vlaneseq
      %v309 = vshrl.u32 %v308, 7
      %v310 = vsub.s32 0, %v309
      %v311 = vrot.slane %v283, %v310
      %v312 = vlaneseq
      %v313 = vshrl.u32 %v312, 7
      %v314 = vsub.s32 0, %v313
      %v315 = vrot.slane %v285, %v314
      %v316 = vlaneseq
      %v317 = vshrl.u32 %v316, 7
      %v318 = vsub.s32 0, %v317
      %v319 = vrot.slane %v287, %v318
      %v336 = vunpack.c.l.b16 %v226
      %v337 = vunpack.c.l.b16 %v227
      %v338 = vunpack.c.l.b16 %v228
      %v339 = vunpack.c.l.b16 %v229
      %v340 = vunpack.c.l.b16 %v230
      %v341 = vunpack.c.l.b16 %v231
      %v342 = vunpack.c.l.b16 %v232
      %v343 = vunpack.c.l.b16 %v233
      %v344 = vpack.c.b16 %v337, %v336
      %v345 = vpack.c.b16 %v339, %v338
      %v346 = vpack.c.b16 %v341, %v340
      %v347 = vpack.c.b16 %v343, %v342
      %v352 = vunpack.c.l.b16 %v234
      %v353 = vunpack.c.l.b16 %v235
      %v354 = vunpack.c.l.b16 %v236
      %v355 = vunpack.c.l.b16 %v237
      %v356 = vpack.c.b16 %v353, %v352
      %v357 = vpack.c.b16 %v355, %v354
      %v361 = vsel %vm182, %v344, 0
      %v364 = vsel %vm182, %v345, 0
      %v367 = vsel %vm182, %v346, 0
      %v370 = vsel %vm182, %v347, 0
      %372 = vmatprep.subr.bf16.mxu0 0
      %373 = vmatpush1.bf16.msra.mxu0 0
      %374 = vmatprep.subr.bf16.mxu0 0
      %375 = vmatpush1.bf16.msra.mxu0 0
      %376 = vmatprep.subr.bf16.mxu0 0
      %377 = vmatpush1.bf16.msra.mxu0 0
      %378 = vmatprep.subr.bf16.mxu0 0
      %379 = vmatpush1.bf16.msra.mxu0 0
      %380 = vmatprep.subr.bf16.mxu0 0
      %381 = vmatpush1.bf16.msra.mxu0 0
      %382 = vmatprep.subr.bf16.mxu0 0
      %383 = vmatpush1.bf16.msra.mxu0 0
      %384 = vmatprep.subr.bf16.mxu0 0
      %385 = vmatpush1.bf16.msra.mxu0 %v357
      %386 = vmatprep.subr.bf16.mxu0 0
      %387 = vmatpush1.bf16.msra.mxu0 %v356
      %388 = vmatprep.subr.bf16.mxu0 0
      %389 = vmatpush2.bf16.msra.mxu0 0
      %390 = vmatprep.subr.bf16.mxu0 0
      %391 = vmatpush2.bf16.msra.mxu0 0
      %392 = vmatprep.subr.bf16.mxu0 0
      %393 = vmatpush2.bf16.msra.mxu0 0
      %394 = vmatprep.subr.bf16.mxu0 0
      %395 = vmatpush2.bf16.msra.mxu0 0
      %396 = vmatprep.subr.bf16.mxu0 0
      %397 = vmatpush2.bf16.msra.mxu0 0
      %398 = vmatprep.subr.bf16.mxu0 0
      %399 = vmatpush2.bf16.msra.mxu0 0
      %400 = vmatprep.subr.bf16.mxu0 0
      %401 = vmatpush2.bf16.msra.mxu0 0
      %402 = vmatprep.subr.bf16.mxu0 0
      %403 = vmatpush2.bf16.msra.mxu0 0
      %404 = vmatprep.mubr.bf16.mxu0 0
      %405 = vmatmul.mubr.bf16.gmra.mxu0 %v361
      %v406 = vpop.f32.mrf.mxu0
      %v407 = vadd.f32 %v291, %v406
      %v408 = vpop.f32.mrf.mxu0
      %v409 = vpop.f32.mrf.mxu0
      %v410 = vadd.f32 %v295, %v409
      %v411 = vpop.f32.mrf.mxu0
      %412 = vmatprep.mubr.bf16.mxu0 0
      %413 = vmatmul.mubr.bf16.gmra.mxu0 %v364
      %v414 = vpop.f32.mrf.mxu0
      %v415 = vadd.f32 %v299, %v414
      %v416 = vpop.f32.mrf.mxu0
      %v417 = vpop.f32.mrf.mxu0
      %v418 = vadd.f32 %v303, %v417
      %v419 = vpop.f32.mrf.mxu0
      %420 = vmatprep.mubr.bf16.mxu0 0
      %421 = vmatmul.mubr.bf16.gmra.mxu0 %v367
      %v422 = vpop.f32.mrf.mxu0
      %v423 = vadd.f32 %v307, %v422
      %v424 = vpop.f32.mrf.mxu0
      %v425 = vpop.f32.mrf.mxu0
      %v426 = vadd.f32 %v311, %v425
      %v427 = vpop.f32.mrf.mxu0
      %428 = vmatprep.mubr.bf16.mxu0 0
      %429 = vmatmul.mubr.bf16.gmra.mxu0 %v370
      %v430 = vpop.f32.mrf.mxu0
      %v431 = vadd.f32 %v315, %v430
      %v432 = vpop.f32.mrf.mxu0
      %v433 = vpop.f32.mrf.mxu0
      %v434 = vadd.f32 %v319, %v433
      %v435 = vpop.f32.mrf.mxu0
      %436 = vdwg.mxu0
      %v437 = vld [vmem:[%s5] sm:$0x1]
      %v439 = vlaneseq
      %v440 = vshrl.u32 %v439, 7
      %v441 = vsub.s32 0, %v440
      %v442 = vrot.slane %v437, %v441
      %v444 = vadd.f32 %v407, %v442
      %v445 = vadd.f32 %v410, %v442
      %v446 = vadd.f32 %v415, %v442
      %v447 = vadd.f32 %v418, %v442
      %v448 = vadd.f32 %v423, %v442
      %v449 = vadd.f32 %v426, %v442
      %v450 = vadd.f32 %v431, %v442
      %v451 = vadd.f32 %v434, %v442
      %v452 = vtanh.pop %v444
      %v453 = vtanh.pop %v445
      %v454 = vtanh.pop %v446
      %v455 = vtanh.pop %v447
      %v456 = vtanh.pop %v448
      %v457 = vtanh.pop %v449
      %v458 = vtanh.pop %v450
      %v459 = vtanh.pop %v451
      %460 = vadd.xlane.f32.xlu0 %v452
      %v461 = vpop.xlane.xlu0 %460
      %462 = vadd.xlane.f32.xlu0 %v453
      %v463 = vpop.xlane.xlu0 %462
      %464 = vadd.xlane.f32.xlu0 %v454
      %v465 = vpop.xlane.xlu0 %464
      %466 = vadd.xlane.f32.xlu0 %v455
      %v467 = vpop.xlane.xlu0 %466
      %468 = vadd.xlane.f32.xlu0 %v456
      %v469 = vpop.xlane.xlu0 %468
      %470 = vadd.xlane.f32.xlu0 %v457
      %v471 = vpop.xlane.xlu0 %470
      %472 = vadd.xlane.f32.xlu0 %v458
      %v473 = vpop.xlane.xlu0 %472
      %474 = vadd.xlane.f32.xlu0 %v459
      %v475 = vpop.xlane.xlu0 %474
      %v484 = vlaneseq
      %v485 = vand.u32 %v484, 127
      %v486 = vlaneseq
      %v487 = vshrl.u32 %v486, 7
      %v488 = vsub.s32 %v485, %v487
      %v489 = vrot.slane %v461, %v488
      %v490 = vlaneseq
      %v491 = vshrl.u32 %v490, 7
      %v492 = vsub.s32 %v485, %v491
      %v493 = vrot.slane %v463, %v492
      %v494 = vlaneseq
      %v495 = vshrl.u32 %v494, 7
      %v496 = vsub.s32 %v485, %v495
      %v497 = vrot.slane %v465, %v496
      %v498 = vlaneseq
      %v499 = vshrl.u32 %v498, 7
      %v500 = vsub.s32 %v485, %v499
      %v501 = vrot.slane %v467, %v500
      %v502 = vlaneseq
      %v503 = vshrl.u32 %v502, 7
      %v504 = vsub.s32 %v485, %v503
      %v505 = vrot.slane %v469, %v504
      %v506 = vlaneseq
      %v507 = vshrl.u32 %v506, 7
      %v508 = vsub.s32 %v485, %v507
      %v509 = vrot.slane %v471, %v508
      %v510 = vlaneseq
      %v511 = vshrl.u32 %v510, 7
      %v512 = vsub.s32 %v485, %v511
      %v513 = vrot.slane %v473, %v512
      %v514 = vlaneseq
      %v515 = vshrl.u32 %v514, 7
      %v516 = vsub.s32 %v485, %v515
      %v517 = vrot.slane %v475, %v516
      %vm518 = vcmask 1041409
      %v519 = vsel %vm518, %v493, %v489
      %vm520 = vcmask 1042434
      %v521 = vsel %vm520, %v497, %v519
      %vm522 = vcmask 1043459
      %v523 = vsel %vm522, %v501, %v521
      %vm524 = vcmask 1044484
      %v525 = vsel %vm524, %v505, %v523
      %vm526 = vcmask 1045509
      %v527 = vsel %vm526, %v509, %v525
      %vm528 = vcmask 1046534
      %v529 = vsel %vm528, %v513, %v527
      %vm530 = vcmask 1047559
      %v531 = vsel %vm530, %v517, %v529
      %vm533 = vcmask 64512
      %v534 = vsel %vm533, %v531, -inf
      %535 = vmax.xlane.f32.xlu0 %v534
      %v536 = vpop.xlane.xlu0 %535
      %v538 = vlaneseq
      %v539 = vshrl.u32 %v538, 7
      %v540 = vsub.s32 0, %v539
      %v541 = vrot.slane %v536, %v540
      %v542 = vlaneseq
      %v543 = vshrl.u32 %v542, 7
      %v544 = vsub.s32 1, %v543
      %v545 = vrot.slane %v536, %v544
      %v546 = vlaneseq
      %v547 = vshrl.u32 %v546, 7
      %v548 = vsub.s32 2, %v547
      %v549 = vrot.slane %v536, %v548
      %v550 = vlaneseq
      %v551 = vshrl.u32 %v550, 7
      %v552 = vsub.s32 3, %v551
      %v553 = vrot.slane %v536, %v552
      %v554 = vlaneseq
      %v555 = vshrl.u32 %v554, 7
      %v556 = vsub.s32 4, %v555
      %v557 = vrot.slane %v536, %v556
      %v558 = vlaneseq
      %v559 = vshrl.u32 %v558, 7
      %v560 = vsub.s32 5, %v559
      %v561 = vrot.slane %v536, %v560
      %v562 = vlaneseq
      %v563 = vshrl.u32 %v562, 7
      %v564 = vsub.s32 6, %v563
      %v565 = vrot.slane %v536, %v564
      %v566 = vlaneseq
      %v567 = vshrl.u32 %v566, 7
      %v568 = vsub.s32 7, %v567
      %v569 = vrot.slane %v536, %v568
      %v578 = vsub.f32 %v461, %v541
      %v579 = vsub.f32 %v463, %v545
      %v580 = vsub.f32 %v465, %v549
      %v581 = vsub.f32 %v467, %v553
      %v582 = vsub.f32 %v469, %v557
      %v583 = vsub.f32 %v471, %v561
      %v584 = vsub.f32 %v473, %v565
      %v585 = vsub.f32 %v475, %v569
      %v586 = vmul.f32 %v578, 1.442695
      %v587 = vpow.pop %v586
      %v588 = vmul.f32 %v579, 1.442695
      %v589 = vpow.pop %v588
      %v590 = vmul.f32 %v580, 1.442695
      %v591 = vpow.pop %v590
      %v592 = vmul.f32 %v581, 1.442695
      %v593 = vpow.pop %v592
      %v594 = vmul.f32 %v582, 1.442695
      %v595 = vpow.pop %v594
      %v596 = vmul.f32 %v583, 1.442695
      %v597 = vpow.pop %v596
      %v598 = vmul.f32 %v584, 1.442695
      %v599 = vpow.pop %v598
      %v600 = vmul.f32 %v585, 1.442695
      %v601 = vpow.pop %v600
      %610 = vset.pattern.permute.xlu0 0
      %611 = vperm.xlu0 %610, %v587
      %v612 = vpop.permute.xlu0 %611
      %613 = vset.pattern.permute.xlu0 0
      %614 = vperm.xlu0 %613, %v589
      %v615 = vpop.permute.xlu0 %614
      %616 = vset.pattern.permute.xlu0 0
      %617 = vperm.xlu0 %616, %v591
      %v618 = vpop.permute.xlu0 %617
      %619 = vset.pattern.permute.xlu0 0
      %620 = vperm.xlu0 %619, %v593
      %v621 = vpop.permute.xlu0 %620
      %622 = vset.pattern.permute.xlu0 0
      %623 = vperm.xlu0 %622, %v595
      %v624 = vpop.permute.xlu0 %623
      %625 = vset.pattern.permute.xlu0 0
      %626 = vperm.xlu0 %625, %v597
      %v627 = vpop.permute.xlu0 %626
      %628 = vset.pattern.permute.xlu0 0
      %629 = vperm.xlu0 %628, %v599
      %v630 = vpop.permute.xlu0 %629
      %631 = vset.pattern.permute.xlu0 0
      %632 = vperm.xlu0 %631, %v601
      %v633 = vpop.permute.xlu0 %632
      %v634 = vlaneseq
      %v635 = vshrl.u32 %v634, 7
      %v636 = vsub.s32 %v485, %v635
      %v637 = vrot.slane %v612, %v636
      %v638 = vlaneseq
      %v639 = vshrl.u32 %v638, 7
      %v640 = vsub.s32 %v485, %v639
      %v641 = vrot.slane %v615, %v640
      %v642 = vlaneseq
      %v643 = vshrl.u32 %v642, 7
      %v644 = vsub.s32 %v485, %v643
      %v645 = vrot.slane %v618, %v644
      %v646 = vlaneseq
      %v647 = vshrl.u32 %v646, 7
      %v648 = vsub.s32 %v485, %v647
      %v649 = vrot.slane %v621, %v648
      %v650 = vlaneseq
      %v651 = vshrl.u32 %v650, 7
      %v652 = vsub.s32 %v485, %v651
      %v653 = vrot.slane %v624, %v652
      %v654 = vlaneseq
      %v655 = vshrl.u32 %v654, 7
      %v656 = vsub.s32 %v485, %v655
      %v657 = vrot.slane %v627, %v656
      %v658 = vlaneseq
      %v659 = vshrl.u32 %v658, 7
      %v660 = vsub.s32 %v485, %v659
      %v661 = vrot.slane %v630, %v660
      %v662 = vlaneseq
      %v663 = vshrl.u32 %v662, 7
      %v664 = vsub.s32 %v485, %v663
      %v665 = vrot.slane %v633, %v664
      %v666 = vsel %vm518, %v641, %v637
      %v667 = vsel %vm520, %v645, %v666
      %v668 = vsel %vm522, %v649, %v667
      %v669 = vsel %vm524, %v653, %v668
      %v670 = vsel %vm526, %v657, %v669
      %v671 = vsel %vm528, %v661, %v670
      %v672 = vsel %vm530, %v665, %v671
      %v674 = vsel %vm533, %v672, 0.0
      %675 = vadd.xlane.f32.xlu0 %v674
      %v676 = vpop.xlane.xlu0 %675
      %v677 = vrcp.pop %v676
      %v679 = vlaneseq
      %v680 = vshrl.u32 %v679, 7
      %v681 = vsub.s32 0, %v680
      %v682 = vrot.slane %v677, %v681
      %v683 = vlaneseq
      %v684 = vshrl.u32 %v683, 7
      %v685 = vsub.s32 1, %v684
      %v686 = vrot.slane %v677, %v685
      %v687 = vlaneseq
      %v688 = vshrl.u32 %v687, 7
      %v689 = vsub.s32 2, %v688
      %v690 = vrot.slane %v677, %v689
      %v691 = vlaneseq
      %v692 = vshrl.u32 %v691, 7
      %v693 = vsub.s32 3, %v692
      %v694 = vrot.slane %v677, %v693
      %v695 = vlaneseq
      %v696 = vshrl.u32 %v695, 7
      %v697 = vsub.s32 4, %v696
      %v698 = vrot.slane %v677, %v697
      %v699 = vlaneseq
      %v700 = vshrl.u32 %v699, 7
      %v701 = vsub.s32 5, %v700
      %v702 = vrot.slane %v677, %v701
      %v703 = vlaneseq
      %v704 = vshrl.u32 %v703, 7
      %v705 = vsub.s32 6, %v704
      %v706 = vrot.slane %v677, %v705
      %v707 = vlaneseq
      %v708 = vshrl.u32 %v707, 7
      %v709 = vsub.s32 7, %v708
      %v710 = vrot.slane %v677, %v709
      %v719 = vmul.f32 %v587, %v682
      %v720 = vmul.f32 %v589, %v686
      %v721 = vmul.f32 %v591, %v690
      %v722 = vmul.f32 %v593, %v694
      %v723 = vmul.f32 %v595, %v698
      %v724 = vmul.f32 %v597, %v702
      %v725 = vmul.f32 %v599, %v706
      %v726 = vmul.f32 %v601, %v710
      %728 = vset.pattern.permute.xlu0 0
      %729 = vperm.xlu0 %728, %v719
      %v730 = vpop.permute.xlu0 %729
      %733 = vset.pattern.permute.xlu0 0
      %734 = vperm.xlu0 %733, %v720
      %v735 = vpop.permute.xlu0 %734
      %738 = vset.pattern.permute.xlu0 0
      %739 = vperm.xlu0 %738, %v721
      %v740 = vpop.permute.xlu0 %739
      %743 = vset.pattern.permute.xlu0 0
      %744 = vperm.xlu0 %743, %v722
      %v745 = vpop.permute.xlu0 %744
      %748 = vset.pattern.permute.xlu0 0
      %749 = vperm.xlu0 %748, %v723
      %v750 = vpop.permute.xlu0 %749
      %753 = vset.pattern.permute.xlu0 0
      %754 = vperm.xlu0 %753, %v724
      %v755 = vpop.permute.xlu0 %754
      %758 = vset.pattern.permute.xlu0 0
      %759 = vperm.xlu0 %758, %v725
      %v760 = vpop.permute.xlu0 %759
      %763 = vset.pattern.permute.xlu0 0
      %764 = vperm.xlu0 %763, %v726
      %v765 = vpop.permute.xlu0 %764
      %v767 = vmul.f32 %v730, %v157
      %v768 = vmul.f32 %v735, %v158
      %v769 = vmul.f32 %v740, %v159
      %v770 = vmul.f32 %v745, %v160
      %v771 = vmul.f32 %v750, %v161
      %v772 = vmul.f32 %v755, %v162
      %v773 = vmul.f32 %v760, %v163
      %v774 = vmul.f32 %v765, %v164
      %v775 = vsel %vm182, %v767, 0.0
      %v776 = vrot.slane %v775, 4
      %v777 = vadd.f32 %v775, %v776
      %v778 = vrot.slane %v777, 2
      %v779 = vadd.f32 %v777, %v778
      %v780 = vrot.slane %v779, 1
      %v781 = vadd.f32 %v779, %v780
      %v782 = vsel %vm182, %v768, 0.0
      %v783 = vrot.slane %v782, 4
      %v784 = vadd.f32 %v782, %v783
      %v785 = vrot.slane %v784, 2
      %v786 = vadd.f32 %v784, %v785
      %v787 = vrot.slane %v786, 1
      %v788 = vadd.f32 %v786, %v787
      %v789 = vsel %vm182, %v769, 0.0
      %v790 = vrot.slane %v789, 4
      %v791 = vadd.f32 %v789, %v790
      %v792 = vrot.slane %v791, 2
      %v793 = vadd.f32 %v791, %v792
      %v794 = vrot.slane %v793, 1
      %v795 = vadd.f32 %v793, %v794
      %v796 = vsel %vm182, %v770, 0.0
      %v797 = vrot.slane %v796, 4
      %v798 = vadd.f32 %v796, %v797
      %v799 = vrot.slane %v798, 2
      %v800 = vadd.f32 %v798, %v799
      %v801 = vrot.slane %v800, 1
      %v802 = vadd.f32 %v800, %v801
      %v803 = vsel %vm182, %v771, 0.0
      %v804 = vrot.slane %v803, 4
      %v805 = vadd.f32 %v803, %v804
      %v806 = vrot.slane %v805, 2
      %v807 = vadd.f32 %v805, %v806
      %v808 = vrot.slane %v807, 1
      %v809 = vadd.f32 %v807, %v808
      %v810 = vsel %vm182, %v772, 0.0
      %v811 = vrot.slane %v810, 4
      %v812 = vadd.f32 %v810, %v811
      %v813 = vrot.slane %v812, 2
      %v814 = vadd.f32 %v812, %v813
      %v815 = vrot.slane %v814, 1
      %v816 = vadd.f32 %v814, %v815
      %v817 = vsel %vm182, %v773, 0.0
      %v818 = vrot.slane %v817, 4
      %v819 = vadd.f32 %v817, %v818
      %v820 = vrot.slane %v819, 2
      %v821 = vadd.f32 %v819, %v820
      %v822 = vrot.slane %v821, 1
      %v823 = vadd.f32 %v821, %v822
      %v824 = vsel %vm182, %v774, 0.0
      %v825 = vrot.slane %v824, 4
      %v826 = vadd.f32 %v824, %v825
      %v827 = vrot.slane %v826, 2
      %v828 = vadd.f32 %v826, %v827
      %v829 = vrot.slane %v828, 1
      %v830 = vadd.f32 %v828, %v829
      %v839 = vsel %vm518, %v788, %v781
      %v840 = vsel %vm520, %v795, %v839
      %v841 = vsel %vm522, %v802, %v840
      %v842 = vsel %vm524, %v809, %v841
      %v843 = vsel %vm526, %v816, %v842
      %v844 = vsel %vm528, %v823, %v843
      %v845 = vsel %vm530, %v830, %v844
      %846 = vrot.lane.b32.xlu0 %v845, 32
      %v847 = vpop.permute.xlu0 %846
      %v849 = vsel %vm182, %v155, %v847
      %v850 = vpack.c.bf16 %v849, %v849
      %v851 = vld [vmem:[#allocation14] sm:$0xf]
      %v852 = vld [vmem:[#allocation14 + $0x4] sm:$0xf]
      %v853 = vld [vmem:[#allocation14 + $0x8] sm:$0xf]
      %v854 = vld [vmem:[#allocation14 + $0xc] sm:$0xf]
      %v855 = vld [vmem:[#allocation14 + $0x10] sm:$0xf]
      %v856 = vld [vmem:[#allocation14 + $0x14] sm:$0xf]
      %v857 = vld [vmem:[#allocation14 + $0x18] sm:$0xf]
      %v858 = vld [vmem:[#allocation14 + $0x1c] sm:$0xf]
      %v859 = vld [vmem:[%s8] sm:$0x1]
      %v861 = vlaneseq
      %v862 = vshrl.u32 %v861, 7
      %v863 = vsub.s32 0, %v862
      %v864 = vrot.slane %v859, %v863
      %v874 = vunpack.c.l.b16 %v851
      %v875 = vunpack.c.l.b16 %v852
      %v876 = vunpack.c.l.b16 %v853
      %v877 = vunpack.c.l.b16 %v854
      %v878 = vunpack.c.l.b16 %v855
      %v879 = vunpack.c.l.b16 %v856
      %v880 = vunpack.c.l.b16 %v857
      %v881 = vunpack.c.l.b16 %v858
      %v882 = vpack.c.b16 %v875, %v874
      %v883 = vpack.c.b16 %v877, %v876
      %v884 = vpack.c.b16 %v879, %v878
      %v885 = vpack.c.b16 %v881, %v880
      %vm890 = vcmask 523264
      %v892 = vsel %vm890, %v850, 0
      %894 = vmatprep.subr.bf16.mxu0 0
      %895 = vmatpush1.bf16.msra.mxu0 0
      %896 = vmatprep.subr.bf16.mxu0 0
      %897 = vmatpush1.bf16.msra.mxu0 0
      %898 = vmatprep.subr.bf16.mxu0 0
      %899 = vmatpush1.bf16.msra.mxu0 0
      %900 = vmatprep.subr.bf16.mxu0 0
      %901 = vmatpush1.bf16.msra.mxu0 0
      %902 = vmatprep.subr.bf16.mxu0 0
      %903 = vmatpush1.bf16.msra.mxu0 %v885
      %904 = vmatprep.subr.bf16.mxu0 0
      %905 = vmatpush1.bf16.msra.mxu0 %v884
      %906 = vmatprep.subr.bf16.mxu0 0
      %907 = vmatpush1.bf16.msra.mxu0 %v883
      %908 = vmatprep.subr.bf16.mxu0 0
      %909 = vmatpush1.bf16.msra.mxu0 %v882
      %910 = vmatprep.subr.bf16.mxu0 0
      %911 = vmatpush2.bf16.msra.mxu0 0
      %912 = vmatprep.subr.bf16.mxu0 0
      %913 = vmatpush2.bf16.msra.mxu0 0
      %914 = vmatprep.subr.bf16.mxu0 0
      %915 = vmatpush2.bf16.msra.mxu0 0
      %916 = vmatprep.subr.bf16.mxu0 0
      %917 = vmatpush2.bf16.msra.mxu0 0
      %918 = vmatprep.subr.bf16.mxu0 0
      %919 = vmatpush2.bf16.msra.mxu0 0
      %920 = vmatprep.subr.bf16.mxu0 0
      %921 = vmatpush2.bf16.msra.mxu0 0
      %922 = vmatprep.subr.bf16.mxu0 0
      %923 = vmatpush2.bf16.msra.mxu0 0
      %924 = vmatprep.subr.bf16.mxu0 0
      %925 = vmatpush2.bf16.msra.mxu0 0
      %926 = vmatprep.mubr.bf16.mxu0 0
      %927 = vmatmul.mubr.bf16.gmra.mxu0 %v892
      %v928 = vpop.f32.mrf.mxu0
      %v929 = vadd.f32 %v864, %v928
      %v930 = vpop.f32.mrf.mxu0
      %v931 = vpop.f32.mrf.mxu0
      %v932 = vpop.f32.mrf.mxu0
      %933 = vdwg.mxu0
      %v934 = vld [vmem:[#allocation16] sm:$0xf]
      %v935 = vld [vmem:[#allocation16 + $0x4] sm:$0xf]
      %v936 = vld [vmem:[#allocation16 + $0x8] sm:$0xf]
      %v937 = vld [vmem:[#allocation16 + $0xc] sm:$0xf]
      %v938 = vld [vmem:[%s9] sm:$0x1]
      %v940 = vlaneseq
      %v941 = vshrl.u32 %v940, 7
      %v942 = vsub.s32 0, %v941
      %v943 = vrot.slane %v938, %v942
      %v949 = vunpack.c.l.b16 %v934
      %v950 = vunpack.c.l.b16 %v935
      %v951 = vunpack.c.l.b16 %v936
      %v952 = vunpack.c.l.b16 %v937
      %v953 = vpack.c.b16 %v950, %v949
      %v954 = vpack.c.b16 %v952, %v951
      %957 = vmatprep.subr.bf16.mxu0 0
      %958 = vmatpush1.bf16.msra.mxu0 0
      %959 = vmatprep.subr.bf16.mxu0 0
      %960 = vmatpush1.bf16.msra.mxu0 0
      %961 = vmatprep.subr.bf16.mxu0 0
      %962 = vmatpush1.bf16.msra.mxu0 0
      %963 = vmatprep.subr.bf16.mxu0 0
      %964 = vmatpush1.bf16.msra.mxu0 0
      %965 = vmatprep.subr.bf16.mxu0 0
      %966 = vmatpush1.bf16.msra.mxu0 0
      %967 = vmatprep.subr.bf16.mxu0 0
      %968 = vmatpush1.bf16.msra.mxu0 0
      %969 = vmatprep.subr.bf16.mxu0 0
      %970 = vmatpush1.bf16.msra.mxu0 %v954
      %971 = vmatprep.subr.bf16.mxu0 0
      %972 = vmatpush1.bf16.msra.mxu0 %v953
      %973 = vmatprep.subr.bf16.mxu0 0
      %974 = vmatpush2.bf16.msra.mxu0 0
      %975 = vmatprep.subr.bf16.mxu0 0
      %976 = vmatpush2.bf16.msra.mxu0 0
      %977 = vmatprep.subr.bf16.mxu0 0
      %978 = vmatpush2.bf16.msra.mxu0 0
      %979 = vmatprep.subr.bf16.mxu0 0
      %980 = vmatpush2.bf16.msra.mxu0 0
      %981 = vmatprep.subr.bf16.mxu0 0
      %982 = vmatpush2.bf16.msra.mxu0 0
      %983 = vmatprep.subr.bf16.mxu0 0
      %984 = vmatpush2.bf16.msra.mxu0 0
      %985 = vmatprep.subr.bf16.mxu0 0
      %986 = vmatpush2.bf16.msra.mxu0 0
      %987 = vmatprep.subr.bf16.mxu0 0
      %988 = vmatpush2.bf16.msra.mxu0 0
      %989 = vmatprep.mubr.bf16.mxu0 0
      %990 = vmatmul.mubr.bf16.gmra.mxu0 %v184
      %v991 = vpop.f32.mrf.mxu0
      %v992 = vadd.f32 %v943, %v991
      %v993 = vpop.f32.mrf.mxu0
      %v994 = vpop.f32.mrf.mxu0
      %v995 = vpop.f32.mrf.mxu0
      %996 = vdwg.mxu0
      %v997 = vadd.f32 %v929, %v992
      %v998 = vxor.u32 %v997, 2147483648
      %v999 = vmul.f32 %v998, 1.442695
      %v1000 = vpow.pop %v999
      %v1001 = vadd.f32 %v1000, 1.0
      %v1002 = vrcp.pop %v1001
      %v1003 = vmul.f32 1.0, %v1002
      %1005 = vrot.lane.b32.xlu0 %v992, 64
      %v1006 = vpop.permute.xlu0 %1005
      %v1008 = vmul.f32 %v1003, %v1006
      %1010 = vrot.lane.b32.xlu0 %v1008, 64
      %v1011 = vpop.permute.xlu0 %1010
      %v1013 = vadd.f32 %v929, %v1011
      %v1014 = vtanh.pop %v1013
      %v1015 = vsub.f32 1.0, %v1003
      %1017 = vrot.lane.b32.xlu0 %v1014, 96
      %v1018 = vpop.permute.xlu0 %1017
      %v1020 = vmul.f32 %v1015, %v1018
      %1022 = vrot.lane.b32.xlu0 %v156, 32
      %v1023 = vpop.permute.xlu0 %1022
      %v1025 = vmul.f32 %v1003, %v1023
      %v1026 = vadd.f32 %v1020, %v1025
      %1028 = vrot.lane.b32.xlu0 %v1026, 96
      %v1029 = vpop.permute.xlu0 %1028
      %1031 = vst.msk [vmem:[#allocation20] sm:$0xff] %vm182, %v1029
      %1033 = vrot.lane.b32.xlu0 %v155, 64
      %v1034 = vpop.permute.xlu0 %1033
      %v1036 = vsel %vm182, %v1029, %v847
      %v1037 = vsel %vm890, %v1036, %v1034
      %v1038 = vpack.c.bf16 %v1037, %v1037
      %vm1039 = vcmask 781312
      %1040 = vst.msk [vmem:[#allocation2] sm:$0xf] %vm1039, %v1038
      %vm1041 = vcmask 7168
      %1042 = vst.msk [vmem:[#allocation3] sm:$0xff] %vm1041, -1e+30
      %1043 = vst.msk [vmem:[#allocation4] sm:$0xff] %vm1041, 0.0
    $region85: #{tpu_custom_call.1} parent=1 // pred_fallthru
      _
    %v1044 = vld [vmem:[#allocation2] sm:$0xf]
    %v1045 = vld [vmem:[#allocation17] sm:$0xf]
    %v1046 = vld [vmem:[#allocation17 + $0x4] sm:$0xf]
    %v1047 = vld [vmem:[#allocation17 + $0x8] sm:$0xf]
    %v1048 = vld [vmem:[#allocation17 + $0xc] sm:$0xf]
    %v1049 = vld [vmem:[#allocation17 + $0x10] sm:$0xf]
    %v1050 = vld [vmem:[#allocation17 + $0x14] sm:$0xf]
    %v1051 = vld [vmem:[#allocation17 + $0x18] sm:$0xf]
    %v1052 = vld [vmem:[#allocation17 + $0x1c] sm:$0xf]
    %v1053 = vld [vmem:[#allocation17 + $0x20] sm:$0xf]
    %v1054 = vld [vmem:[#allocation17 + $0x24] sm:$0xf]
    %v1055 = vld [vmem:[#allocation17 + $0x28] sm:$0xf]
    %v1056 = vld [vmem:[#allocation17 + $0x2c] sm:$0xf]
    %v1057 = vld [vmem:[%s11] sm:$0x1]
    %v1059 = vlaneseq
    %v1060 = vshrl.u32 %v1059, 7
    %v1061 = vsub.s32 0, %v1060
    %v1062 = vrot.slane %v1057, %v1061
    %v1076 = vunpack.c.l.b16 %v1045
    %v1077 = vunpack.c.l.b16 %v1046
    %v1078 = vunpack.c.l.b16 %v1047
    %v1079 = vunpack.c.l.b16 %v1048
    %v1080 = vunpack.c.l.b16 %v1049
    %v1081 = vunpack.c.l.b16 %v1050
    %v1082 = vunpack.c.l.b16 %v1051
    %v1083 = vunpack.c.l.b16 %v1052
    %v1084 = vunpack.c.l.b16 %v1053
    %v1085 = vunpack.c.l.b16 %v1054
    %v1086 = vunpack.c.l.b16 %v1055
    %v1087 = vunpack.c.l.b16 %v1056
    %v1088 = vpack.c.b16 %v1077, %v1076
    %v1089 = vpack.c.b16 %v1079, %v1078
    %v1090 = vpack.c.b16 %v1081, %v1080
    %v1091 = vpack.c.b16 %v1083, %v1082
    %v1092 = vpack.c.b16 %v1085, %v1084
    %v1093 = vpack.c.b16 %v1087, %v1086
    %vm1100 = vcmask 785408
    %v1102 = vsel %vm1100, %v1044, 0
    %1104 = vmatprep.subr.bf16.mxu0 0
    %1105 = vmatpush1.bf16.msra.mxu0 0
    %1106 = vmatprep.subr.bf16.mxu0 0
    %1107 = vmatpush1.bf16.msra.mxu0 0
    %1108 = vmatprep.subr.bf16.mxu0 0
    %1109 = vmatpush1.bf16.msra.mxu0 %v1093
    %1110 = vmatprep.subr.bf16.mxu0 0
    %1111 = vmatpush1.bf16.msra.mxu0 %v1092
    %1112 = vmatprep.subr.bf16.mxu0 0
    %1113 = vmatpush1.bf16.msra.mxu0 %v1091
    %1114 = vmatprep.subr.bf16.mxu0 0
    %1115 = vmatpush1.bf16.msra.mxu0 %v1090
    %1116 = vmatprep.subr.bf16.mxu0 0
    %1117 = vmatpush1.bf16.msra.mxu0 %v1089
    %1118 = vmatprep.subr.bf16.mxu0 0
    %1119 = vmatpush1.bf16.msra.mxu0 %v1088
    %1120 = vmatprep.subr.bf16.mxu0 0
    %1121 = vmatpush2.bf16.msra.mxu0 0
    %1122 = vmatprep.subr.bf16.mxu0 0
    %1123 = vmatpush2.bf16.msra.mxu0 0
    %1124 = vmatprep.subr.bf16.mxu0 0
    %1125 = vmatpush2.bf16.msra.mxu0 0
    %1126 = vmatprep.subr.bf16.mxu0 0
    %1127 = vmatpush2.bf16.msra.mxu0 0
    %1128 = vmatprep.subr.bf16.mxu0 0
    %1129 = vmatpush2.bf16.msra.mxu0 0
    %1130 = vmatprep.subr.bf16.mxu0 0
    %1131 = vmatpush2.bf16.msra.mxu0 0
    %1132 = vmatprep.subr.bf16.mxu0 0
    %1133 = vmatpush2.bf16.msra.mxu0 0
    %1134 = vmatprep.subr.bf16.mxu0 0
    %1135 = vmatpush2.bf16.msra.mxu0 0
    %1136 = vmatprep.mubr.bf16.mxu0 0
    %1137 = vmatmul.mubr.bf16.gmra.mxu0 %v1102
    %v1138 = vpop.f32.mrf.mxu0
    %v1139 = vadd.f32 %v1062, %v1138
    %v1140 = vpop.f32.mrf.mxu0
    %v1141 = vpop.f32.mrf.mxu0
    %v1142 = vpop.f32.mrf.mxu0
    %1143 = vdwg.mxu0
    %s1144 = smul.u32 0, 128
    %s1145 = sshra.s32 %s1144, 7
    %s1146 = sand.u32 %s1144, 127
    %s1147 = scalar_lea.vmem [#allocation19], %s1145
    %1148 = vst [vmem:[%s1147] sm:$0xff] %v1139
    %v1149 = vld [vmem:[#allocation3] sm:$0xff]
    %1150 = vmax.xlane.f32.xlu0 %v1139
    %v1151 = vpop.xlane.xlu0 %1150
    %v1152 = vmax.f32 %v1149, %v1151
    %v1153 = vld [vmem:[#allocation4] sm:$0xff]
    %v1154 = vsub.f32 %v1149, %v1152
    %v1155 = vmul.f32 %v1154, 1.442695
    %v1156 = vpow.pop %v1155
    %v1157 = vmul.f32 %v1153, %v1156
    %1159 = vset.pattern.permute.xlu0 0
    %1160 = vperm.xlu0 %1159, %v1152
    %v1161 = vpop.permute.xlu0 %1160
    %v1163 = vsub.f32 %v1139, %v1161
    %v1164 = vmul.f32 %v1163, 1.442695
    %v1165 = vpow.pop %v1164
    %1166 = vadd.xlane.f32.xlu0 %v1165
    %v1167 = vpop.xlane.xlu0 %1166
    %v1168 = vadd.f32 %v1157, %v1167
    %vm1169 = vcmask 7168
    %1170 = vst.msk [vmem:[#allocation4] sm:$0xff] %vm1169, %v1168
    %1171 = vst.msk [vmem:[#allocation3] sm:$0xff] %vm1169, %v1152
    // Predicated region
    $region86: #{tpu_custom_call.1} parent=1 // pred_check
      %p1172 = pneg %p151
    $region87: #{tpu_custom_call.1} parent=1 // pred_check_branch
      %1174 = sbr.rel (%p1172) target = $region89
    $region88: #{tpu_custom_call.1} parent=1 // pred_region
      %v1175 = vld [vmem:[#allocation4] sm:$0xff]
      %v1176 = vrcp.pop %v1175
      %v1177 = vmul.f32 1.0, %v1176
      %v1178 = vld [vmem:[#allocation19] sm:$0xff]
      %v1179 = vld [vmem:[#allocation3] sm:$0xff]
      %1181 = vset.pattern.permute.xlu0 0
      %1182 = vperm.xlu0 %1181, %v1179
      %v1183 = vpop.permute.xlu0 %1182
      %v1185 = vsub.f32 %v1178, %v1183
      %v1186 = vmul.f32 %v1185, 1.442695
      %v1187 = vpow.pop %v1186
      %1189 = vset.pattern.permute.xlu0 0
      %1190 = vperm.xlu0 %1189, %v1177
      %v1191 = vpop.permute.xlu0 %1190
      %v1193 = vmul.f32 %v1187, %v1191
      %1194 = vst [vmem:[#allocation19] sm:$0xff] %v1193
    $region89: #{tpu_custom_call.1} parent=1 // pred_fallthru
      _
    // Predicated region
    $region90: #{tpu_custom_call.1} parent=1 // pred_check
      _
    $region91: #{tpu_custom_call.1} parent=1 // pred_check_branch
      %1196 = sbr.rel (0) target = $region93
    $region92: #{tpu_custom_call.1} parent=1 // pred_region
      %s1198 = ssub.s32 128, 128
      %1199 = vsyncadd [#allocation7], %s1198
      %s1201 = sshll.u32 [#allocation19], 4
      %s1202 = int_to_ptr.vmem [resolvable:$true] %s1201
      %1204 = dma.vmem_to_hbm [thread:$0]  %s1202, 128, %s12, [#allocation7]
    $region93: #{tpu_custom_call.1} parent=1 // pred_fallthru
      _
    // Predicated region
    $region94: #{tpu_custom_call.1} parent=1 // pred_check
      _
    $region95: #{tpu_custom_call.1} parent=1 // pred_check_branch
      %1206 = sbr.rel (0) target = $region97
    $region96: #{tpu_custom_call.1} parent=1 // pred_region
      %s1208 = ssub.s32 128, 128
      %1209 = vsyncadd [#allocation21], %s1208
      %s1211 = sshll.u32 [#allocation20], 4
      %s1212 = int_to_ptr.vmem [resolvable:$true] %s1211
      %1214 = dma.vmem_to_hbm [thread:$0]  %s1212, 128, %s13, [#allocation21]
    $region97: #{tpu_custom_call.1} parent=1 // pred_fallthru
      _
    // Predicated region
    $region98: #{tpu_custom_call.1} parent=1 // pred_check
      _
    $region99: #{tpu_custom_call.1} parent=1 // pred_check_branch
      %1216 = sbr.rel (0) target = $region101
    $region100: #{tpu_custom_call.1} parent=1 // pred_region
      %1217 = dma.done [#allocation7], 128
    $region101: #{tpu_custom_call.1} parent=1 // pred_fallthru
      _
    // Predicated region
    $region102: #{tpu_custom_call.1} parent=1 // pred_check
      _
    $region103: #{tpu_custom_call.1} parent=1 // pred_check_branch
      %1219 = sbr.rel (0) target = $region105
    $region104: #{tpu_custom_call.1} parent=1 // pred_region
      %1220 = dma.done [#allocation21], 128
    $region105: #{tpu_custom_call.1} parent=1 // pred_fallthru
      _
    %1221 = vsyncpa [#allocation6], 1
    %1222 = vsyncpa [#allocation9], 1
    %1223 = vsyncpa [#allocation12], 1
    %1224 = vsyncpa [#allocation15], 1
    %1225 = vsyncpa [#allocation18], 1
    %1226 = vsyncpa [#allocation7], 1
    %1227 = vsyncpa [#allocation21], 1

// kernel: tpu_custom_call.1
$region0: #{tpu_custom_call.1}
  #allocation0 [shape = 'u32[]', space=smem, size = 0x4, offset = 0x4, fixed_abs, tag = 'smem constant byte address 0x4 - core index']
  #allocation1 [shape = 'u32[144,128]{1,0:T(1,128)}', space=vmem, size = 0x12000, scoped, tag = 'internal scratch']
  #allocation2 [shape = 'bf16[8,96]{1,0:T(8,128)(2,1)}', space=vmem, size = 0x800, scoped, tag = 'scratch operand']
  #allocation3 [shape = 'f32[8,1]{1,0:T(8,128)}', space=vmem, size = 0x1000, scoped, tag = 'scratch operand']
  #allocation4 [shape = 'f32[8,1]{1,0:T(8,128)}', space=vmem, size = 0x1000, scoped, tag = 'scratch operand']
  %s0 = inlined_call_operand.hbm [shape: f32[8,32], index: 0, kind: input, shape index: {}]
  %s1 = inlined_call_operand.hbm [shape: f32[8,32], index: 1, kind: input, shape index: {}]
  %s2 = inlined_call_operand.hbm [shape: f32[8,8,32], index: 2, kind: input, shape index: {}]
  %s3 = inlined_call_operand.hbm [shape: bf16[32,128], index: 3, kind: input, shape index: {}]
  %s4 = inlined_call_operand.hbm [shape: bf16[32,128], index: 4, kind: input, shape index: {}]
  %s5 = inlined_call_operand.vmem [shape: f32[1,128], index: 5, kind: input, shape index: {}]
  %s6 = inlined_call_operand.hbm [shape: bf16[64,96], index: 6, kind: input, shape index: {}]
  %s7 = inlined_call_operand.hbm [shape: bf16[32,96], index: 7, kind: input, shape index: {}]
  %s8 = inlined_call_operand.vmem [shape: f32[1,96], index: 8, kind: input, shape index: {}]
  %s9 = inlined_call_operand.vmem [shape: f32[1,96], index: 9, kind: input, shape index: {}]
  %s10 = inlined_call_operand.hbm [shape: bf16[96,128], index: 10, kind: input, shape index: {}]
  %s11 = inlined_call_operand.vmem [shape: f32[1,128], index: 11, kind: input, shape index: {}]
  %s12 = inlined_call_operand.hbm [shape: f32[8,128], index: 12, kind: output, shape index: {0}]
  %s13 = inlined_call_operand.hbm [shape: f32[8,32], index: 13, kind: output, shape index: {1}]
  %14 = xla_tuple %s12, %s13
  %s15 = sld [smem:[#allocation0]]
  $region106: #{tpu_custom_call.1} parent=0
    _
  %s17 = ssub.s32 1, %s15
  %s18 = scalar_select 0, %s17, %s15
  $region1: #{tpu_custom_call.1} parent=0
    #allocation5 [shape = 'u8[4096]{0}', space=vmem, size = 0x1000, scoped, tag = 'input window, operand 0, single buffered']
    #allocation6 [shape = 's32[1]{0}', space=sflag, size = 0x4, scoped, tag = 'scoped memory for tpu_custom_call.1']
    #allocation7 [shape = 's32[1]{0}', space=sflag, size = 0x4, scoped, tag = 'scoped memory for tpu_custom_call.1']
    #allocation8 [shape = 'u8[4096]{0}', space=vmem, size = 0x1000, scoped, tag = 'input window, operand 1, single buffered']
    #allocation9 [shape = 's32[1]{0}', space=sflag, size = 0x4, scoped, tag = 'scoped memory for tpu_custom_call.1']
    #allocation10 [shape = 'u8[32768]{0}', space=vmem, size = 0x8000, scoped, tag = 'input window, operand 2, single buffered']
    #allocation11 [shape = 'u8[8192]{0}', space=vmem, size = 0x2000, scoped, tag = 'input window, operand 3, single buffered']
    #allocation12 [shape = 's32[1]{0}', space=sflag, size = 0x4, scoped, tag = 'scoped memory for tpu_custom_call.1']
    #allocation13 [shape = 'u8[8192]{0}', space=vmem, size = 0x2000, scoped, tag = 'input window, operand 4, single buffered']
    #allocation14 [shape = 'u8[16384]{0}', space=vmem, size = 0x4000, scoped, tag = 'input window, operand 6, single buffered']
    #allocation15 [shape = 's32[1]{0}', space=sflag, size = 0x4, scoped, tag = 'scoped memory for tpu_custom_call.1']
    #allocation16 [shape = 'u8[8192]{0}', space=vmem, size = 0x2000, scoped, tag = 'input window, operand 7, single buffered']
    #allocation17 [shape = 'u8[24576]{0}', space=vmem, size = 0x6000, scoped, tag = 'input window, operand 10, single buffered']
    #allocation18 [shape = 's32[1]{0}', space=sflag, size = 0x4, scoped, tag = 'scoped memory for tpu_custom_call.1']
    #allocation19 [shape = 'u8[4096]{0}', space=vmem, size = 0x1000, scoped, tag = 'output window, operand 0, single buffered']
    #allocation20 [shape = 'u8[4096]{0}', space=vmem, size = 0x1000, scoped, tag = 'output window, operand 1, single buffered']
    #allocation21 [shape = 's32[1]{0}', space=sflag, size = 0x4, scoped, tag = 'scoped memory for tpu_custom_call.1']
    %19 = vsyncpa [#allocation6], 0
    %20 = vsyncpa [#allocation9], 0
    %21 = vsyncpa [#allocation12], 0
    %22 = vsyncpa [#allocation15], 0
    %23 = vsyncpa [#allocation18], 0
    %24 = vsyncpa [#allocation7], 0
    %25 = vsyncpa [#allocation21], 0
    // Predicated region
    $region2: #{tpu_custom_call.1} parent=1 // pred_check
      _
    $region3: #{tpu_custom_call.1} parent=1 // pred_check_branch
      %27 = sbr.rel (0) target = $region5
    $region4: #{tpu_custom_call.1} parent=1 // pred_region
      %s29 = ssub.s32 128, 128
      %30 = vsyncadd [#allocation6], %s29
      %s32 = sshll.u32 [#allocation5], 4
      %s33 = int_to_ptr.vmem [resolvable:$true] %s32
      %35 = dma.hbm_to_vmem [thread:$0]  %s0, 128, %s33, [#allocation6]
    $region5: #{tpu_custom_call.1} parent=1 // pred_fallthru
      _
    // Predicated region
    $region6: #{tpu_custom_call.1} parent=1 // pred_check
      _
    $region7: #{tpu_custom_call.1} parent=1 // pred_check_branch
      %37 = sbr.rel (0) target = $region9
    $region8: #{tpu_custom_call.1} parent=1 // pred_region
      %s39 = ssub.s32 128, 128
      %40 = vsyncadd [#allocation9], %s39
      %s42 = sshll.u32 [#allocation8], 4
      %s43 = int_to_ptr.vmem [resolvable:$true] %s42
      %45 = dma.hbm_to_vmem [thread:$0]  %s1, 128, %s43, [#allocation9]
    $region9: #{tpu_custom_call.1} parent=1 // pred_fallthru
      _
    // Predicated region
    $region10: #{tpu_custom_call.1} parent=1 // pred_check
      _
    $region11: #{tpu_custom_call.1} parent=1 // pred_check_branch
      %47 = sbr.rel (0) target = $region13
    $region12: #{tpu_custom_call.1} parent=1 // pred_region
      %s49 = ssub.s32 1024, 1024
      %50 = vsyncadd [#allocation9], %s49
      %s51 = sshll.u32 [#allocation10], 4
      %s52 = int_to_ptr.vmem [resolvable:$true] %s51
      %57 = dma.hbm_to_vmem [thread:$0]  %s2, 1024, %s52, [#allocation9], 128, 128, 8
    $region13: #{tpu_custom_call.1} parent=1 // pred_fallthru
      _
    // Predicated region
    $region14: #{tpu_custom_call.1} parent=1 // pred_check
      _
    $region15: #{tpu_custom_call.1} parent=1 // pred_check_branch
      %59 = sbr.rel (0) target = $region17
    $region16: #{tpu_custom_call.1} parent=1 // pred_region
      %s61 = ssub.s32 256, 256
      %62 = vsyncadd [#allocation12], %s61
      %s63 = sshll.u32 [#allocation11], 4
      %s64 = int_to_ptr.vmem [resolvable:$true] %s63
      %69 = dma.hbm_to_vmem [thread:$0]  %s3, 256, %s64, [#allocation12], 64, 64, 4
    $region17: #{tpu_custom_call.1} parent=1 // pred_fallthru
      _
    // Predicated region
    $region18: #{tpu_custom_call.1} parent=1 // pred_check
      _
    $region19: #{tpu_custom_call.1} parent=1 // pred_check_branch
      %71 = sbr.rel (0) target = $region21
    $region20: #{tpu_custom_call.1} parent=1 // pred_region
      %s73 = ssub.s32 256, 256
      %74 = vsyncadd [#allocation12], %s73
      %s75 = sshll.u32 [#allocation13], 4
      %s76 = int_to_ptr.vmem [resolvable:$true] %s75
      %81 = dma.hbm_to_vmem [thread:$0]  %s4, 256, %s76, [#allocation12], 64, 64, 4
    $region21: #{tpu_custom_call.1} parent=1 // pred_fallthru
      _
    // Predicated region
    $region22: #{tpu_custom_call.1} parent=1 // pred_check
      _
    $region23: #{tpu_custom_call.1} parent=1 // pred_check_branch
      %83 = sbr.rel (0) target = $region25
    $region24: #{tpu_custom_call.1} parent=1 // pred_region
      _
    $region25: #{tpu_custom_call.1} parent=1 // pred_fallthru
      _
    // Predicated region
    $region26: #{tpu_custom_call.1} parent=1 // pred_check
      _
    $region27: #{tpu_custom_call.1} parent=1 // pred_check_branch
      %85 = sbr.rel (0) target = $region29
    $region28: #{tpu_custom_call.1} parent=1 // pred_region
      %s87 = ssub.s32 512, 512
      %88 = vsyncadd [#allocation15], %s87
      %s89 = sshll.u32 [#allocation14], 4
      %s90 = int_to_ptr.vmem [resolvable:$true] %s89
      %95 = dma.hbm_to_vmem [thread:$0]  %s6, 512, %s90, [#allocation15], 64, 64, 4
    $region29: #{tpu_custom_call.1} parent=1 // pred_fallthru
      _
    // Predicated region
    $region30: #{tpu_custom_call.1} parent=1 // pred_check
      _
    $region31: #{tpu_custom_call.1} parent=1 // pred_check_branch
      %97 = sbr.rel (0) target = $region33
    $region32: #{tpu_custom_call.1} parent=1 // pred_region
      %s99 = ssub.s32 256, 256
      %100 = vsyncadd [#allocation15], %s99
      %s101 = sshll.u32 [#allocation16], 4
      %s102 = int_to_ptr.vmem [resolvable:$true] %s101
      %107 = dma.hbm_to_vmem [thread:$0]  %s7, 256, %s102, [#allocation15], 64, 64, 4
    $region33: #{tpu_custom_call.1} parent=1 // pred_fallthru
      _
    // Predicated region
    $region34: #{tpu_custom_call.1} parent=1 // pred_check
      _
    $region35: #{tpu_custom_call.1} parent=1 // pred_check_branch
      %109 = sbr.rel (0) target = $region37
    $region36: #{tpu_custom_call.1} parent=1 // pred_region
      _
    $region37: #{tpu_custom_call.1} parent=1 // pred_fallthru
      _
    // Predicated region
    $region38: #{tpu_custom_call.1} parent=1 // pred_check
      _
    $region39: #{tpu_custom_call.1} parent=1 // pred_check_branch
      %111 = sbr.rel (0) target = $region41
    $region40: #{tpu_custom_call.1} parent=1 // pred_region
      _
    $region41: #{tpu_custom_call.1} parent=1 // pred_fallthru
      _
    // Predicated region
    $region42: #{tpu_custom_call.1} parent=1 // pred_check
      _
    $region43: #{tpu_custom_call.1} parent=1 // pred_check_branch
      %113 = sbr.rel (0) target = $region45
    $region44: #{tpu_custom_call.1} parent=1 // pred_region
      %s115 = ssub.s32 768, 768
      %116 = vsyncadd [#allocation18], %s115
      %s117 = sshll.u32 [#allocation17], 4
      %s118 = int_to_ptr.vmem [resolvable:$true] %s117
      %123 = dma.hbm_to_vmem [thread:$0]  %s10, 768, %s118, [#allocation18], 64, 64, 4
    $region45: #{tpu_custom_call.1} parent=1 // pred_fallthru
      _
    // Predicated region
    $region46: #{tpu_custom_call.1} parent=1 // pred_check
      _
    $region47: #{tpu_custom_call.1} parent=1 // pred_check_branch
      %125 = sbr.rel (0) target = $region49
    $region48: #{tpu_custom_call.1} parent=1 // pred_region
      _
    $region49: #{tpu_custom_call.1} parent=1 // pred_fallthru
      _
    // Predicated region
    $region50: #{tpu_custom_call.1} parent=1 // pred_check
      _
    $region51: #{tpu_custom_call.1} parent=1 // pred_check_branch
      %127 = sbr.rel (0) target = $region53
    $region52: #{tpu_custom_call.1} parent=1 // pred_region
      %128 = dma.done [#allocation6], 128
    $region53: #{tpu_custom_call.1} parent=1 // pred_fallthru
      _
    // Predicated region
    $region54: #{tpu_custom_call.1} parent=1 // pred_check
      _
    $region55: #{tpu_custom_call.1} parent=1 // pred_check_branch
      %130 = sbr.rel (0) target = $region57
    $region56: #{tpu_custom_call.1} parent=1 // pred_region
      %131 = dma.done [#allocation9], 128
    $region57: #{tpu_custom_call.1} parent=1 // pred_fallthru
      _
    // Predicated region
    $region58: #{tpu_custom_call.1} parent=1 // pred_check
      _
    $region59: #{tpu_custom_call.1} parent=1 // pred_check_branch
      %133 = sbr.rel (0) target = $region61
    $region60: #{tpu_custom_call.1} parent=1 // pred_region
      %134 = dma.done [#allocation9], 1024
    $region61: #{tpu_custom_call.1} parent=1 // pred_fallthru
      _
    // Predicated region
    $region62: #{tpu_custom_call.1} parent=1 // pred_check
      _
    $region63: #{tpu_custom_call.1} parent=1 // pred_check_branch
      %136 = sbr.rel (0) target = $region65
    $region64: #{tpu_custom_call.1} parent=1 // pred_region
      %137 = dma.done [#allocation12], 256
    $region65: #{tpu_custom_call.1} parent=1 // pred_fallthru
      _
    // Predicated region
    $region66: #{tpu_custom_call.1} parent=1 // pred_check
      _
    $region67: #{tpu_custom_call.1} parent=1 // pred_check_branch
      %139 = sbr.rel (0) target = $region69
    $region68: #{tpu_custom_call.1} parent=1 // pred_region
      %140 = dma.done [#allocation12], 256
    $region69: #{tpu_custom_call.1} parent=1 // pred_fallthru
      _
    // Predicated region
    $region70: #{tpu_custom_call.1} parent=1 // pred_check
      _
    $region71: #{tpu_custom_call.1} parent=1 // pred_check_branch
      %142 = sbr.rel (0) target = $region73
    $region72: #{tpu_custom_call.1} parent=1 // pred_region
      %143 = dma.done [#allocation15], 512
    $region73: #{tpu_custom_call.1} parent=1 // pred_fallthru
      _
    // Predicated region
    $region74: #{tpu_custom_call.1} parent=1 // pred_check
      _
    $region75: #{tpu_custom_call.1} parent=1 // pred_check_branch
      %145 = sbr.rel (0) target = $region77
    $region76: #{tpu_custom_call.1} parent=1 // pred_region
      %146 = dma.done [#allocation15], 256
    $region77: #{tpu_custom_call.1} parent=1 // pred_fallthru
      _
    // Predicated region
    $region78: #{tpu_custom_call.1} parent=1 // pred_check
      _
    $region79: #{tpu_custom_call.1} parent=1 // pred_check_branch
      %148 = sbr.rel (0) target = $region81
    $region80: #{tpu_custom_call.1} parent=1 // pred_region
      %149 = dma.done [#allocation18], 768
    $region81: #{tpu_custom_call.1} parent=1 // pred_fallthru
      _
    %p151 = scmp.eq.s32.totalorder 0, 0
    // Predicated region
    $region82: #{tpu_custom_call.1} parent=1 // pred_check
      %p152 = pneg %p151
    $region83: #{tpu_custom_call.1} parent=1 // pred_check_branch
      %154 = sbr.rel (%p152) target = $region85
    $region84: #{tpu_custom_call.1} parent=1 // pred_region
      %v155 = vld [vmem:[#allocation5] sm:$0xff]
      %v156 = vld [vmem:[#allocation8] sm:$0xff]
      %v157 = vld [vmem:[#allocation10] sm:$0xff]
      %v158 = vld [vmem:[#allocation10 + $0x8] sm:$0xff]
      %v159 = vld [vmem:[#allocation10 + $0x10] sm:$0xff]
      %v160 = vld [vmem:[#allocation10 + $0x18] sm:$0xff]
      %v161 = vld [vmem:[#allocation10 + $0x20] sm:$0xff]
      %v162 = vld [vmem:[#allocation10 + $0x28] sm:$0xff]
      %v163 = vld [vmem:[#allocation10 + $0x30] sm:$0xff]
      %v164 = vld [vmem:[#allocation10 + $0x38] sm:$0xff]
      %v165 = vpack.c.bf16 %v156, %v156
      %v166 = vld [vmem:[#allocation11] sm:$0xf]
      %v167 = vld [vmem:[#allocation11 + $0x4] sm:$0xf]
      %v168 = vld [vmem:[#allocation11 + $0x8] sm:$0xf]
      %v169 = vld [vmem:[#allocation11 + $0xc] sm:$0xf]
      %v174 = vunpack.c.l.b16 %v166
      %v175 = vunpack.c.l.b16 %v167
      %v176 = vunpack.c.l.b16 %v168
      %v177 = vunpack.c.l.b16 %v169
      %v178 = vpack.c.b16 %v175, %v174
      %v179 = vpack.c.b16 %v177, %v176
      %vm182 = vcmask 261120
      %v184 = vsel %vm182, %v165, 0
      %186 = vmatprep.subr.bf16.mxu0 0
      %187 = vmatpush1.bf16.msra.mxu0 0
      %188 = vmatprep.subr.bf16.mxu0 0
      %189 = vmatpush1.bf16.msra.mxu0 0
      %190 = vmatprep.subr.bf16.mxu0 0
      %191 = vmatpush1.bf16.msra.mxu0 0
      %192 = vmatprep.subr.bf16.mxu0 0
      %193 = vmatpush1.bf16.msra.mxu0 0
      %194 = vmatprep.subr.bf16.mxu0 0
      %195 = vmatpush1.bf16.msra.mxu0 0
      %196 = vmatprep.subr.bf16.mxu0 0
      %197 = vmatpush1.bf16.msra.mxu0 0
      %198 = vmatprep.subr.bf16.mxu0 0
      %199 = vmatpush1.bf16.msra.mxu0 %v179
      %200 = vmatprep.subr.bf16.mxu0 0
      %201 = vmatpush1.bf16.msra.mxu0 %v178
      %202 = vmatprep.subr.bf16.mxu0 0
      %203 = vmatpush2.bf16.msra.mxu0 0
      %204 = vmatprep.subr.bf16.mxu0 0
      %205 = vmatpush2.bf16.msra.mxu0 0
      %206 = vmatprep.subr.bf16.mxu0 0
      %207 = vmatpush2.bf16.msra.mxu0 0
      %208 = vmatprep.subr.bf16.mxu0 0
      %209 = vmatpush2.bf16.msra.mxu0 0
      %210 = vmatprep.subr.bf16.mxu0 0
      %211 = vmatpush2.bf16.msra.mxu0 0
      %212 = vmatprep.subr.bf16.mxu0 0
      %213 = vmatpush2.bf16.msra.mxu0 0
      %214 = vmatprep.subr.bf16.mxu0 0
      %215 = vmatpush2.bf16.msra.mxu0 0
      %216 = vmatprep.subr.bf16.mxu0 0
      %217 = vmatpush2.bf16.msra.mxu0 0
      %218 = vmatprep.mubr.bf16.mxu0 0
      %219 = vmatmul.mubr.bf16.gmra.mxu0 %v184
      %v220 = vpop.f32.mrf.mxu0
      %v221 = vadd.f32 0.0, %v220
      %v222 = vpop.f32.mrf.mxu0
      %v223 = vpop.f32.mrf.mxu0
      %v224 = vpop.f32.mrf.mxu0
      %225 = vdwg.mxu0
      %v226 = vpack.c.bf16 %v157, %v157
      %v227 = vpack.c.bf16 %v158, %v158
      %v228 = vpack.c.bf16 %v159, %v159
      %v229 = vpack.c.bf16 %v160, %v160
      %v230 = vpack.c.bf16 %v161, %v161
      %v231 = vpack.c.bf16 %v162, %v162
      %v232 = vpack.c.bf16 %v163, %v163
      %v233 = vpack.c.bf16 %v164, %v164
      %v234 = vld [vmem:[#allocation13] sm:$0xf]
      %v235 = vld [vmem:[#allocation13 + $0x4] sm:$0xf]
      %v236 = vld [vmem:[#allocation13 + $0x8] sm:$0xf]
      %v237 = vld [vmem:[#allocation13 + $0xc] sm:$0xf]
      %v239 = vcombine.high %v221, %v221
      %v241 = vunpack.c.l.s4 1966171168
      %v242 = vunpack.c.0.s8 %v241
      %v243 = vlaneseq
      %v244 = vshrl.u32 %v243, 7
      %v245 = vsub.s32 %v242, %v244
      %v246 = vrot.slane %v221, %v245
      %v248 = vunpack.c.l.s4 1966171168
      %v249 = vunpack.c.0.s8 %v248
      %v250 = vlaneseq
      %v251 = vshrl.u32 %v250, 7
      %v252 = vsub.s32 %v249, %v251
      %v253 = vrot.slane %v239, %v252
      %v254 = vcombine.high %v246, %v246
      %v255 = vcombine.high %v253, %v253
      %v257 = vunpack.c.l.s4 1966171168
      %v258 = vunpack.c.0.s8 %v257
      %v259 = vlaneseq
      %v260 = vshrl.u32 %v259, 7
      %v261 = vsub.s32 %v258, %v260
      %v262 = vrot.slane %v246, %v261
      %v264 = vunpack.c.l.s4 1966171168
      %v265 = vunpack.c.0.s8 %v264
      %v266 = vlaneseq
      %v267 = vshrl.u32 %v266, 7
      %v268 = vsub.s32 %v265, %v267
      %v269 = vrot.slane %v253, %v268
      %v271 = vunpack.c.l.s4 1966171168
      %v272 = vunpack.c.0.s8 %v271
      %v273 = vlaneseq
      %v274 = vshrl.u32 %v273, 7
      %v275 = vsub.s32 %v272, %v274
      %v276 = vrot.slane %v254, %v275
      %v278 = vunpack.c.l.s4 1966171168
      %v279 = vunpack.c.0.s8 %v278
      %v280 = vlaneseq
      %v281 = vshrl.u32 %v280, 7
      %v282 = vsub.s32 %v279, %v281
      %v283 = vrot.slane %v255, %v282
      %v284 = vcombine.high %v262, %v262
      %v285 = vcombine.high %v269, %v269
      %v286 = vcombine.high %v276, %v276
      %v287 = vcombine.high %v283, %v283
      %v288 = vlaneseq
      %v289 = vshrl.u32 %v288, 7
      %v290 = vsub.s32 0, %v289
      %v291 = vrot.slane %v262, %v290
      %v292 = vlaneseq
      %v293 = vshrl.u32 %v292, 7
      %v294 = vsub.s32 0, %v293
      %v295 = vrot.slane %v276, %v294
      %v296 = vlaneseq
      %v297 = vshrl.u32 %v296, 7
      %v298 = vsub.s32 0, %v297
      %v299 = vrot.slane %v284, %v298
      %v300 = vlaneseq
      %v301 = vshrl.u32 %v300, 7
      %v302 = vsub.s32 0, %v301
      %v303 = vrot.slane %v286, %v302
      %v304 = vlaneseq
      %v305 = vshrl.u32 %v304, 7
      %v306 = vsub.s32 0, %v305
      %v307 = vrot.slane %v269, %v306
      %v308 = vlaneseq
      %v309 = vshrl.u32 %v308, 7
      %v310 = vsub.s32 0, %v309
      %v311 = vrot.slane %v283, %v310
      %v312 = vlaneseq
      %v313 = vshrl.u32 %v312, 7
      %v314 = vsub.s32 0, %v313
      %v315 = vrot.slane %v285, %v314
      %v316 = vlaneseq
      %v317 = vshrl.u32 %v316, 7
      %v318 = vsub.s32 0, %v317
      %v319 = vrot.slane %v287, %v318
      %v336 = vunpack.c.l.b16 %v226
      %v337 = vunpack.c.l.b16 %v227
      %v338 = vunpack.c.l.b16 %v228
      %v339 = vunpack.c.l.b16 %v229
      %v340 = vunpack.c.l.b16 %v230
      %v341 = vunpack.c.l.b16 %v231
      %v342 = vunpack.c.l.b16 %v232
      %v343 = vunpack.c.l.b16 %v233
      %v344 = vpack.c.b16 %v337, %v336
      %v345 = vpack.c.b16 %v339, %v338
      %v346 = vpack.c.b16 %v341, %v340
      %v347 = vpack.c.b16 %v343, %v342
      %v352 = vunpack.c.l.b16 %v234
      %v353 = vunpack.c.l.b16 %v235
      %v354 = vunpack.c.l.b16 %v236
      %v355 = vunpack.c.l.b16 %v237
      %v356 = vpack.c.b16 %v353, %v352
      %v357 = vpack.c.b16 %v355, %v354
      %v361 = vsel %vm182, %v344, 0
      %v364 = vsel %vm182, %v345, 0
      %v367 = vsel %vm182, %v346, 0
      %v370 = vsel %vm182, %v347, 0
      %372 = vmatprep.subr.bf16.mxu0 0
      %373 = vmatpush1.bf16.msra.mxu0 0
      %374 = vmatprep.subr.bf16.mxu0 0
      %375 = vmatpush1.bf16.msra.mxu0 0
      %376 = vmatprep.subr.bf16.mxu0 0
      %377 = vmatpush1.bf16.msra.mxu0 0
      %378 = vmatprep.subr.bf16.mxu0 0
      %379 = vmatpush1.bf16.msra.mxu0 0
      %380 = vmatprep.subr.bf16.mxu0 0
      %381 = vmatpush1.bf16.msra.mxu0 0
      %382 = vmatprep.subr.bf16.mxu0 0
      %383 = vmatpush1.bf16.msra.mxu0 0
      %384 = vmatprep.subr.bf16.mxu0 0
      %385 = vmatpush1.bf16.msra.mxu0 %v357
      %386 = vmatprep.subr.bf16.mxu0 0
      %387 = vmatpush1.bf16.msra.mxu0 %v356
      %388 = vmatprep.subr.bf16.mxu0 0
      %389 = vmatpush2.bf16.msra.mxu0 0
      %390 = vmatprep.subr.bf16.mxu0 0
      %391 = vmatpush2.bf16.msra.mxu0 0
      %392 = vmatprep.subr.bf16.mxu0 0
      %393 = vmatpush2.bf16.msra.mxu0 0
      %394 = vmatprep.subr.bf16.mxu0 0
      %395 = vmatpush2.bf16.msra.mxu0 0
      %396 = vmatprep.subr.bf16.mxu0 0
      %397 = vmatpush2.bf16.msra.mxu0 0
      %398 = vmatprep.subr.bf16.mxu0 0
      %399 = vmatpush2.bf16.msra.mxu0 0
      %400 = vmatprep.subr.bf16.mxu0 0
      %401 = vmatpush2.bf16.msra.mxu0 0
      %402 = vmatprep.subr.bf16.mxu0 0
      %403 = vmatpush2.bf16.msra.mxu0 0
      %404 = vmatprep.mubr.bf16.mxu0 0
      %405 = vmatmul.mubr.bf16.gmra.mxu0 %v361
      %v406 = vpop.f32.mrf.mxu0
      %v407 = vadd.f32 %v291, %v406
      %v408 = vpop.f32.mrf.mxu0
      %v409 = vpop.f32.mrf.mxu0
      %v410 = vadd.f32 %v295, %v409
      %v411 = vpop.f32.mrf.mxu0
      %412 = vmatprep.mubr.bf16.mxu0 0
      %413 = vmatmul.mubr.bf16.gmra.mxu0 %v364
      %v414 = vpop.f32.mrf.mxu0
      %v415 = vadd.f32 %v299, %v414
      %v416 = vpop.f32.mrf.mxu0
      %v417 = vpop.f32.mrf.mxu0
      %v418 = vadd.f32 %v303, %v417
      %v419 = vpop.f32.mrf.mxu0
      %420 = vmatprep.mubr.bf16.mxu0 0
      %421 = vmatmul.mubr.bf16.gmra.mxu0 %v367
      %v422 = vpop.f32.mrf.mxu0
      %v423 = vadd.f32 %v307, %v422
      %v424 = vpop.f32.mrf.mxu0
      %v425 = vpop.f32.mrf.mxu0
      %v426 = vadd.f32 %v311, %v425
      %v427 = vpop.f32.mrf.mxu0
      %428 = vmatprep.mubr.bf16.mxu0 0
      %429 = vmatmul.mubr.bf16.gmra.mxu0 %v370
      %v430 = vpop.f32.mrf.mxu0
      %v431 = vadd.f32 %v315, %v430
      %v432 = vpop.f32.mrf.mxu0
      %v433 = vpop.f32.mrf.mxu0
      %v434 = vadd.f32 %v319, %v433
      %v435 = vpop.f32.mrf.mxu0
      %436 = vdwg.mxu0
      %v437 = vld [vmem:[%s5] sm:$0x1]
      %v439 = vlaneseq
      %v440 = vshrl.u32 %v439, 7
      %v441 = vsub.s32 0, %v440
      %v442 = vrot.slane %v437, %v441
      %v444 = vadd.f32 %v407, %v442
      %v445 = vadd.f32 %v410, %v442
      %v446 = vadd.f32 %v415, %v442
      %v447 = vadd.f32 %v418, %v442
      %v448 = vadd.f32 %v423, %v442
      %v449 = vadd.f32 %v426, %v442
      %v450 = vadd.f32 %v431, %v442
      %v451 = vadd.f32 %v434, %v442
      %v452 = vtanh.pop %v444
      %v453 = vtanh.pop %v445
      %v454 = vtanh.pop %v446
      %v455 = vtanh.pop %v447
      %v456 = vtanh.pop %v448
      %v457 = vtanh.pop %v449
      %v458 = vtanh.pop %v450
      %v459 = vtanh.pop %v451
      %460 = vadd.xlane.f32.xlu0 %v452
      %v461 = vpop.xlane.xlu0 %460
      %462 = vadd.xlane.f32.xlu0 %v453
      %v463 = vpop.xlane.xlu0 %462
      %464 = vadd.xlane.f32.xlu0 %v454
      %v465 = vpop.xlane.xlu0 %464
      %466 = vadd.xlane.f32.xlu0 %v455
      %v467 = vpop.xlane.xlu0 %466
      %468 = vadd.xlane.f32.xlu0 %v456
      %v469 = vpop.xlane.xlu0 %468
      %470 = vadd.xlane.f32.xlu0 %v457
      %v471 = vpop.xlane.xlu0 %470
      %472 = vadd.xlane.f32.xlu0 %v458
      %v473 = vpop.xlane.xlu0 %472
      %474 = vadd.xlane.f32.xlu0 %v459
      %v475 = vpop.xlane.xlu0 %474
      %v484 = vlaneseq
      %v485 = vand.u32 %v484, 127
      %v486 = vlaneseq
      %v487 = vshrl.u32 %v486, 7
      %v488 = vsub.s32 %v485, %v487
      %v489 = vrot.slane %v461, %v488
      %v490 = vlaneseq
      %v491 = vshrl.u32 %v490, 7
      %v492 = vsub.s32 %v485, %v491
      %v493 = vrot.slane %v463, %v492
      %v494 = vlaneseq
      %v495 = vshrl.u32 %v494, 7
      %v496 = vsub.s32 %v485, %v495
      %v497 = vrot.slane %v465, %v496
      %v498 = vlaneseq
      %v499 = vshrl.u32 %v498, 7
      %v500 = vsub.s32 %v485, %v499
      %v501 = vrot.slane %v467, %v500
      %v502 = vlaneseq
      %v503 = vshrl.u32 %v502, 7
      %v504 = vsub.s32 %v485, %v503
      %v505 = vrot.slane %v469, %v504
      %v506 = vlaneseq
      %v507 = vshrl.u32 %v506, 7
      %v508 = vsub.s32 %v485, %v507
      %v509 = vrot.slane %v471, %v508
      %v510 = vlaneseq
      %v511 = vshrl.u32 %v510, 7
      %v512 = vsub.s32 %v485, %v511
      %v513 = vrot.slane %v473, %v512
      %v514 = vlaneseq
      %v515 = vshrl.u32 %v514, 7
      %v516 = vsub.s32 %v485, %v515
      %v517 = vrot.slane %v475, %v516
      %vm518 = vcmask 1041409
      %v519 = vsel %vm518, %v493, %v489
      %vm520 = vcmask 1042434
      %v521 = vsel %vm520, %v497, %v519
      %vm522 = vcmask 1043459
      %v523 = vsel %vm522, %v501, %v521
      %vm524 = vcmask 1044484
      %v525 = vsel %vm524, %v505, %v523
      %vm526 = vcmask 1045509
      %v527 = vsel %vm526, %v509, %v525
      %vm528 = vcmask 1046534
      %v529 = vsel %vm528, %v513, %v527
      %vm530 = vcmask 1047559
      %v531 = vsel %vm530, %v517, %v529
      %vm533 = vcmask 64512
      %v534 = vsel %vm533, %v531, -inf
      %535 = vmax.xlane.f32.xlu0 %v534
      %v536 = vpop.xlane.xlu0 %535
      %v538 = vlaneseq
      %v539 = vshrl.u32 %v538, 7
      %v540 = vsub.s32 0, %v539
      %v541 = vrot.slane %v536, %v540
      %v542 = vlaneseq
      %v543 = vshrl.u32 %v542, 7
      %v544 = vsub.s32 1, %v543
      %v545 = vrot.slane %v536, %v544
      %v546 = vlaneseq
      %v547 = vshrl.u32 %v546, 7
      %v548 = vsub.s32 2, %v547
      %v549 = vrot.slane %v536, %v548
      %v550 = vlaneseq
      %v551 = vshrl.u32 %v550, 7
      %v552 = vsub.s32 3, %v551
      %v553 = vrot.slane %v536, %v552
      %v554 = vlaneseq
      %v555 = vshrl.u32 %v554, 7
      %v556 = vsub.s32 4, %v555
      %v557 = vrot.slane %v536, %v556
      %v558 = vlaneseq
      %v559 = vshrl.u32 %v558, 7
      %v560 = vsub.s32 5, %v559
      %v561 = vrot.slane %v536, %v560
      %v562 = vlaneseq
      %v563 = vshrl.u32 %v562, 7
      %v564 = vsub.s32 6, %v563
      %v565 = vrot.slane %v536, %v564
      %v566 = vlaneseq
      %v567 = vshrl.u32 %v566, 7
      %v568 = vsub.s32 7, %v567
      %v569 = vrot.slane %v536, %v568
      %v578 = vsub.f32 %v461, %v541
      %v579 = vsub.f32 %v463, %v545
      %v580 = vsub.f32 %v465, %v549
      %v581 = vsub.f32 %v467, %v553
      %v582 = vsub.f32 %v469, %v557
      %v583 = vsub.f32 %v471, %v561
      %v584 = vsub.f32 %v473, %v565
      %v585 = vsub.f32 %v475, %v569
      %v586 = vmul.f32 %v578, 1.442695
      %v587 = vpow.pop %v586
      %v588 = vmul.f32 %v579, 1.442695
      %v589 = vpow.pop %v588
      %v590 = vmul.f32 %v580, 1.442695
      %v591 = vpow.pop %v590
      %v592 = vmul.f32 %v581, 1.442695
      %v593 = vpow.pop %v592
      %v594 = vmul.f32 %v582, 1.442695
      %v595 = vpow.pop %v594
      %v596 = vmul.f32 %v583, 1.442695
      %v597 = vpow.pop %v596
      %v598 = vmul.f32 %v584, 1.442695
      %v599 = vpow.pop %v598
      %v600 = vmul.f32 %v585, 1.442695
      %v601 = vpow.pop %v600
      %610 = vset.pattern.permute.xlu0 0
      %611 = vperm.xlu0 %610, %v587
      %v612 = vpop.permute.xlu0 %611
      %613 = vset.pattern.permute.xlu0 0
      %614 = vperm.xlu0 %613, %v589
      %v615 = vpop.permute.xlu0 %614
      %616 = vset.pattern.permute.xlu0 0
      %617 = vperm.xlu0 %616, %v591
      %v618 = vpop.permute.xlu0 %617
      %619 = vset.pattern.permute.xlu0 0
      %620 = vperm.xlu0 %619, %v593
      %v621 = vpop.permute.xlu0 %620
      %622 = vset.pattern.permute.xlu0 0
      %623 = vperm.xlu0 %622, %v595
      %v624 = vpop.permute.xlu0 %623
      %625 = vset.pattern.permute.xlu0 0
      %626 = vperm.xlu0 %625, %v597
      %v627 = vpop.permute.xlu0 %626
      %628 = vset.pattern.permute.xlu0 0
      %629 = vperm.xlu0 %628, %v599
      %v630 = vpop.permute.xlu0 %629
      %631 = vset.pattern.permute.xlu0 0
      %632 = vperm.xlu0 %631, %v601
      %v633 = vpop.permute.xlu0 %632
      %v634 = vlaneseq
      %v635 = vshrl.u32 %v634, 7
      %v636 = vsub.s32 %v485, %v635
      %v637 = vrot.slane %v612, %v636
      %v638 = vlaneseq
      %v639 = vshrl.u32 %v638, 7
      %v640 = vsub.s32 %v485, %v639
      %v641 = vrot.slane %v615, %v640
      %v642 = vlaneseq
      %v643 = vshrl.u32 %v642, 7
      %v644 = vsub.s32 %v485, %v643
      %v645 = vrot.slane %v618, %v644
      %v646 = vlaneseq
      %v647 = vshrl.u32 %v646, 7
      %v648 = vsub.s32 %v485, %v647
      %v649 = vrot.slane %v621, %v648
      %v650 = vlaneseq
      %v651 = vshrl.u32 %v650, 7
      %v652 = vsub.s32 %v485, %v651
      %v653 = vrot.slane %v624, %v652
      %v654 = vlaneseq
      %v655 = vshrl.u32 %v654, 7
      %v656 = vsub.s32 %v485, %v655
      %v657 = vrot.slane %v627, %v656
      %v658 = vlaneseq
      %v659 = vshrl.u32 %v658, 7
      %v660 = vsub.s32 %v485, %v659
      %v661 = vrot.slane %v630, %v660
      %v662 = vlaneseq
      %v663 = vshrl.u32 %v662, 7
      %v664 = vsub.s32 %v485, %v663
      %v665 = vrot.slane %v633, %v664
      %v666 = vsel %vm518, %v641, %v637
      %v667 = vsel %vm520, %v645, %v666
      %v668 = vsel %vm522, %v649, %v667
      %v669 = vsel %vm524, %v653, %v668
      %v670 = vsel %vm526, %v657, %v669
      %v671 = vsel %vm528, %v661, %v670
      %v672 = vsel %vm530, %v665, %v671
      %v674 = vsel %vm533, %v672, 0.0
      %675 = vadd.xlane.f32.xlu0 %v674
      %v676 = vpop.xlane.xlu0 %675
      %v677 = vrcp.pop %v676
      %v679 = vlaneseq
      %v680 = vshrl.u32 %v679, 7
      %v681 = vsub.s32 0, %v680
      %v682 = vrot.slane %v677, %v681
      %v683 = vlaneseq
      %v684 = vshrl.u32 %v683, 7
      %v685 = vsub.s32 1, %v684
      %v686 = vrot.slane %v677, %v685
      %v687 = vlaneseq
      %v688 = vshrl.u32 %v687, 7
      %v689 = vsub.s32 2, %v688
      %v690 = vrot.slane %v677, %v689
      %v691 = vlaneseq
      %v692 = vshrl.u32 %v691, 7
      %v693 = vsub.s32 3, %v692
      %v694 = vrot.slane %v677, %v693
      %v695 = vlaneseq
      %v696 = vshrl.u32 %v695, 7
      %v697 = vsub.s32 4, %v696
      %v698 = vrot.slane %v677, %v697
      %v699 = vlaneseq
      %v700 = vshrl.u32 %v699, 7
      %v701 = vsub.s32 5, %v700
      %v702 = vrot.slane %v677, %v701
      %v703 = vlaneseq
      %v704 = vshrl.u32 %v703, 7
      %v705 = vsub.s32 6, %v704
      %v706 = vrot.slane %v677, %v705
      %v707 = vlaneseq
      %v708 = vshrl.u32 %v707, 7
      %v709 = vsub.s32 7, %v708
      %v710 = vrot.slane %v677, %v709
      %v719 = vmul.f32 %v587, %v682
      %v720 = vmul.f32 %v589, %v686
      %v721 = vmul.f32 %v591, %v690
      %v722 = vmul.f32 %v593, %v694
      %v723 = vmul.f32 %v595, %v698
      %v724 = vmul.f32 %v597, %v702
      %v725 = vmul.f32 %v599, %v706
      %v726 = vmul.f32 %v601, %v710
      %728 = vset.pattern.permute.xlu0 0
      %729 = vperm.xlu0 %728, %v719
      %v730 = vpop.permute.xlu0 %729
      %733 = vset.pattern.permute.xlu0 0
      %734 = vperm.xlu0 %733, %v720
      %v735 = vpop.permute.xlu0 %734
      %738 = vset.pattern.permute.xlu0 0
      %739 = vperm.xlu0 %738, %v721
      %v740 = vpop.permute.xlu0 %739
      %743 = vset.pattern.permute.xlu0 0
      %744 = vperm.xlu0 %743, %v722
      %v745 = vpop.permute.xlu0 %744
      %748 = vset.pattern.permute.xlu0 0
      %749 = vperm.xlu0 %748, %v723
      %v750 = vpop.permute.xlu0 %749
      %753 = vset.pattern.permute.xlu0 0
      %754 = vperm.xlu0 %753, %v724
      %v755 = vpop.permute.xlu0 %754
      %758 = vset.pattern.permute.xlu0 0
      %759 = vperm.xlu0 %758, %v725
      %v760 = vpop.permute.xlu0 %759
      %763 = vset.pattern.permute.xlu0 0
      %764 = vperm.xlu0 %763, %v726
      %v765 = vpop.permute.xlu0 %764
      %v767 = vmul.f32 %v730, %v157
      %v768 = vmul.f32 %v735, %v158
      %v769 = vmul.f32 %v740, %v159
      %v770 = vmul.f32 %v745, %v160
      %v771 = vmul.f32 %v750, %v161
      %v772 = vmul.f32 %v755, %v162
      %v773 = vmul.f32 %v760, %v163
      %v774 = vmul.f32 %v765, %v164
      %v775 = vsel %vm182, %v767, 0.0
      %v776 = vrot.slane %v775, 4
      %v777 = vadd.f32 %v775, %v776
      %v778 = vrot.slane %v777, 2
      %v779 = vadd.f32 %v777, %v778
      %v780 = vrot.slane %v779, 1
      %v781 = vadd.f32 %v779, %v780
      %v782 = vsel %vm182, %v768, 0.0
      %v783 = vrot.slane %v782, 4
      %v784 = vadd.f32 %v782, %v783
      %v785 = vrot.slane %v784, 2
      %v786 = vadd.f32 %v784, %v785
      %v787 = vrot.slane %v786, 1
      %v788 = vadd.f32 %v786, %v787
      %v789 = vsel %vm182, %v769, 0.0
      %v790 = vrot.slane %v789, 4
      %v791 = vadd.f32 %v789, %v790
      %v792 = vrot.slane %v791, 2
      %v793 = vadd.f32 %v791, %v792
      %v794 = vrot.slane %v793, 1
      %v795 = vadd.f32 %v793, %v794
      %v796 = vsel %vm182, %v770, 0.0
      %v797 = vrot.slane %v796, 4
      %v798 = vadd.f32 %v796, %v797
      %v799 = vrot.slane %v798, 2
      %v800 = vadd.f32 %v798, %v799
      %v801 = vrot.slane %v800, 1
      %v802 = vadd.f32 %v800, %v801
      %v803 = vsel %vm182, %v771, 0.0
      %v804 = vrot.slane %v803, 4
      %v805 = vadd.f32 %v803, %v804
      %v806 = vrot.slane %v805, 2
      %v807 = vadd.f32 %v805, %v806
      %v808 = vrot.slane %v807, 1
      %v809 = vadd.f32 %v807, %v808
      %v810 = vsel %vm182, %v772, 0.0
      %v811 = vrot.slane %v810, 4
      %v812 = vadd.f32 %v810, %v811
      %v813 = vrot.slane %v812, 2
      %v814 = vadd.f32 %v812, %v813
      %v815 = vrot.slane %v814, 1
      %v816 = vadd.f32 %v814, %v815
      %v817 = vsel %vm182, %v773, 0.0
      %v818 = vrot.slane %v817, 4
      %v819 = vadd.f32 %v817, %v818
      %v820 = vrot.slane %v819, 2
      %v821 = vadd.f32 %v819, %v820
      %v822 = vrot.slane %v821, 1
      %v823 = vadd.f32 %v821, %v822
      %v824 = vsel %vm182, %v774, 0.0
      %v825 = vrot.slane %v824, 4
      %v826 = vadd.f32 %v824, %v825
      %v827 = vrot.slane %v826, 2
      %v828 = vadd.f32 %v826, %v827
      %v829 = vrot.slane %v828, 1
      %v830 = vadd.f32 %v828, %v829
      %v839 = vsel %vm518, %v788, %v781
      %v840 = vsel %vm520, %v795, %v839
      %v841 = vsel %vm522, %v802, %v840
      %v842 = vsel %vm524, %v809, %v841
      %v843 = vsel %vm526, %v816, %v842
      %v844 = vsel %vm528, %v823, %v843
      %v845 = vsel %vm530, %v830, %v844
      %846 = vrot.lane.b32.xlu0 %v845, 32
      %v847 = vpop.permute.xlu0 %846
      %v849 = vsel %vm182, %v155, %v847
      %v850 = vpack.c.bf16 %v849, %v849
      %v851 = vld [vmem:[#allocation14] sm:$0xf]
      %v852 = vld [vmem:[#allocation14 + $0x4] sm:$0xf]
      %v853 = vld [vmem:[#allocation14 + $0x8] sm:$0xf]
      %v854 = vld [vmem:[#allocation14 + $0xc] sm:$0xf]
      %v855 = vld [vmem:[#allocation14 + $0x10] sm:$0xf]
      %v856 = vld [vmem:[#allocation14 + $0x14] sm:$0xf]
      %v857 = vld [vmem:[#allocation14 + $0x18] sm:$0xf]
      %v858 = vld [vmem:[#allocation14 + $0x1c] sm:$0xf]
      %v859 = vld [vmem:[%s8] sm:$0x1]
      %v861 = vlaneseq
      %v862 = vshrl.u32 %v861, 7
      %v863 = vsub.s32 0, %v862
      %v864 = vrot.slane %v859, %v863
      %v874 = vunpack.c.l.b16 %v851
      %v875 = vunpack.c.l.b16 %v852
      %v876 = vunpack.c.l.b16 %v853
      %v877 = vunpack.c.l.b16 %v854
      %v878 = vunpack.c.l.b16 %v855
      %v879 = vunpack.c.l.b16 %v856
      %v880 = vunpack.c.l.b16 %v857
      %v881 = vunpack.c.l.b16 %v858
      %v882 = vpack.c.b16 %v875, %v874
      %v883 = vpack.c.b16 %v877, %v876
      %v884 = vpack.c.b16 %v879, %v878
      %v885 = vpack.c.b16 %v881, %v880
      %vm890 = vcmask 523264
      %v892 = vsel %vm890, %v850, 0
      %894 = vmatprep.subr.bf16.mxu0 0
      %895 = vmatpush1.bf16.msra.mxu0 0
      %896 = vmatprep.subr.bf16.mxu0 0
      %897 = vmatpush1.bf16.msra.mxu0 0
      %898 = vmatprep.subr.bf16.mxu0 0
      %899 = vmatpush1.bf16.msra.mxu0 0
      %900 = vmatprep.subr.bf16.mxu0 0
      %901 = vmatpush1.bf16.msra.mxu0 0
      %902 = vmatprep.subr.bf16.mxu0 0
      %903 = vmatpush1.bf16.msra.mxu0 %v885
      %904 = vmatprep.subr.bf16.mxu0 0
      %905 = vmatpush1.bf16.msra.mxu0 %v884
      %906 = vmatprep.subr.bf16.mxu0 0
      %907 = vmatpush1.bf16.msra.mxu0 %v883
      %908 = vmatprep.subr.bf16.mxu0 0
      %909 = vmatpush1.bf16.msra.mxu0 %v882
      %910 = vmatprep.subr.bf16.mxu0 0
      %911 = vmatpush2.bf16.msra.mxu0 0
      %912 = vmatprep.subr.bf16.mxu0 0
      %913 = vmatpush2.bf16.msra.mxu0 0
      %914 = vmatprep.subr.bf16.mxu0 0
      %915 = vmatpush2.bf16.msra.mxu0 0
      %916 = vmatprep.subr.bf16.mxu0 0
      %917 = vmatpush2.bf16.msra.mxu0 0
      %918 = vmatprep.subr.bf16.mxu0 0
      %919 = vmatpush2.bf16.msra.mxu0 0
      %920 = vmatprep.subr.bf16.mxu0 0
      %921 = vmatpush2.bf16.msra.mxu0 0
      %922 = vmatprep.subr.bf16.mxu0 0
      %923 = vmatpush2.bf16.msra.mxu0 0
      %924 = vmatprep.subr.bf16.mxu0 0
      %925 = vmatpush2.bf16.msra.mxu0 0
      %926 = vmatprep.mubr.bf16.mxu0 0
      %927 = vmatmul.mubr.bf16.gmra.mxu0 %v892
      %v928 = vpop.f32.mrf.mxu0
      %v929 = vadd.f32 %v864, %v928
      %v930 = vpop.f32.mrf.mxu0
      %v931 = vpop.f32.mrf.mxu0
      %v932 = vpop.f32.mrf.mxu0
      %933 = vdwg.mxu0
      %v934 = vld [vmem:[#allocation16] sm:$0xf]
      %v935 = vld [vmem:[#allocation16 + $0x4] sm:$0xf]
      %v936 = vld [vmem:[#allocation16 + $0x8] sm:$0xf]
      %v937 = vld [vmem:[#allocation16 + $0xc] sm:$0xf]
      %v938 = vld [vmem:[%s9] sm:$0x1]
      %v940 = vlaneseq
      %v941 = vshrl.u32 %v940, 7
      %v942 = vsub.s32 0, %v941
      %v943 = vrot.slane %v938, %v942
      %v949 = vunpack.c.l.b16 %v934
      %v950 = vunpack.c.l.b16 %v935
      %v951 = vunpack.c.l.b16 %v936
      %v952 = vunpack.c.l.b16 %v937
      %v953 = vpack.c.b16 %v950, %v949
      %v954 = vpack.c.b16 %v952, %v951
      %957 = vmatprep.subr.bf16.mxu0 0
      %958 = vmatpush1.bf16.msra.mxu0 0
      %959 = vmatprep.subr.bf16.mxu0 0
      %960 = vmatpush1.bf16.msra.mxu0 0
      %961 = vmatprep.subr.bf16.mxu0 0
      %962 = vmatpush1.bf16.msra.mxu0 0
      %963 = vmatprep.subr.bf16.mxu0 0
      %964 = vmatpush1.bf16.msra.mxu0 0
      %965 = vmatprep.subr.bf16.mxu0 0
      %966 = vmatpush1.bf16.msra.mxu0 0
      %967 = vmatprep.subr.bf16.mxu0 0
      %968 = vmatpush1.bf16.msra.mxu0 0
      %969 = vmatprep.subr.bf16.mxu0 0
      %970 = vmatpush1.bf16.msra.mxu0 %v954
      %971 = vmatprep.subr.bf16.mxu0 0
      %972 = vmatpush1.bf16.msra.mxu0 %v953
      %973 = vmatprep.subr.bf16.mxu0 0
      %974 = vmatpush2.bf16.msra.mxu0 0
      %975 = vmatprep.subr.bf16.mxu0 0
      %976 = vmatpush2.bf16.msra.mxu0 0
      %977 = vmatprep.subr.bf16.mxu0 0
      %978 = vmatpush2.bf16.msra.mxu0 0
      %979 = vmatprep.subr.bf16.mxu0 0
      %980 = vmatpush2.bf16.msra.mxu0 0
      %981 = vmatprep.subr.bf16.mxu0 0
      %982 = vmatpush2.bf16.msra.mxu0 0
      %983 = vmatprep.subr.bf16.mxu0 0
      %984 = vmatpush2.bf16.msra.mxu0 0
      %985 = vmatprep.subr.bf16.mxu0 0
      %986 = vmatpush2.bf16.msra.mxu0 0
      %987 = vmatprep.subr.bf16.mxu0 0
      %988 = vmatpush2.bf16.msra.mxu0 0
      %989 = vmatprep.mubr.bf16.mxu0 0
      %990 = vmatmul.mubr.bf16.gmra.mxu0 %v184
      %v991 = vpop.f32.mrf.mxu0
      %v992 = vadd.f32 %v943, %v991
      %v993 = vpop.f32.mrf.mxu0
      %v994 = vpop.f32.mrf.mxu0
      %v995 = vpop.f32.mrf.mxu0
      %996 = vdwg.mxu0
      %v997 = vadd.f32 %v929, %v992
      %v998 = vxor.u32 %v997, 2147483648
      %v999 = vmul.f32 %v998, 1.442695
      %v1000 = vpow.pop %v999
      %v1001 = vadd.f32 %v1000, 1.0
      %v1002 = vrcp.pop %v1001
      %v1003 = vmul.f32 1.0, %v1002
      %1005 = vrot.lane.b32.xlu0 %v992, 64
      %v1006 = vpop.permute.xlu0 %1005
      %v1008 = vmul.f32 %v1003, %v1006
      %1010 = vrot.lane.b32.xlu0 %v1008, 64
      %v1011 = vpop.permute.xlu0 %1010
      %v1013 = vadd.f32 %v929, %v1011
      %v1014 = vtanh.pop %v1013
      %v1015 = vsub.f32 1.0, %v1003
      %1017 = vrot.lane.b32.xlu0 %v1014, 96
      %v1018 = vpop.permute.xlu0 %1017
      %v1020 = vmul.f32 %v1015, %v1018
      %1022 = vrot.lane.b32.xlu0 %v156, 32
      %v1023 = vpop.permute.xlu0 %1022
      %v1025 = vmul.f32 %v1003, %v1023
      %v1026 = vadd.f32 %v1020, %v1025
      %1028 = vrot.lane.b32.xlu0 %v1026, 96
      %v1029 = vpop.permute.xlu0 %1028
      %1031 = vst.msk [vmem:[#allocation20] sm:$0xff] %vm182, %v1029
      %1033 = vrot.lane.b32.xlu0 %v155, 64
      %v1034 = vpop.permute.xlu0 %1033
      %v1036 = vsel %vm182, %v1029, %v847
      %v1037 = vsel %vm890, %v1036, %v1034
      %v1038 = vpack.c.bf16 %v1037, %v1037
      %vm1039 = vcmask 781312
      %1040 = vst.msk [vmem:[#allocation2] sm:$0xf] %vm1039, %v1038
      %vm1041 = vcmask 7168
      %1042 = vst.msk [vmem:[#allocation3] sm:$0xff] %vm1041, -1e+30
      %1043 = vst.msk [vmem:[#allocation4] sm:$0xff] %vm1041, 0.0
    $region85: #{tpu_custom_call.1} parent=1 // pred_fallthru
      _
    %v1044 = vld [vmem:[#allocation2] sm:$0xf]
    %v1045 = vld [vmem:[#allocation17] sm:$0xf]
    %v1046 = vld [vmem:[#allocation17 + $0x4] sm:$0xf]
    %v1047 = vld [vmem:[#allocation17 + $0x8] sm:$0xf]
    %v1048 = vld [vmem:[#allocation17 + $0xc] sm:$0xf]
    %v1049 = vld [vmem:[#allocation17 + $0x10] sm:$0xf]
    %v1050 = vld [vmem:[#allocation17 + $0x14] sm:$0xf]
    %v1051 = vld [vmem:[#allocation17 + $0x18] sm:$0xf]
    %v1052 = vld [vmem:[#allocation17 + $0x1c] sm:$0xf]
    %v1053 = vld [vmem:[#allocation17 + $0x20] sm:$0xf]
    %v1054 = vld [vmem:[#allocation17 + $0x24] sm:$0xf]
    %v1055 = vld [vmem:[#allocation17 + $0x28] sm:$0xf]
    %v1056 = vld [vmem:[#allocation17 + $0x2c] sm:$0xf]
    %v1057 = vld [vmem:[%s11] sm:$0x1]
    %v1059 = vlaneseq
    %v1060 = vshrl.u32 %v1059, 7
    %v1061 = vsub.s32 0, %v1060
    %v1062 = vrot.slane %v1057, %v1061
    %v1076 = vunpack.c.l.b16 %v1045
    %v1077 = vunpack.c.l.b16 %v1046
    %v1078 = vunpack.c.l.b16 %v1047
    %v1079 = vunpack.c.l.b16 %v1048
    %v1080 = vunpack.c.l.b16 %v1049
    %v1081 = vunpack.c.l.b16 %v1050
    %v1082 = vunpack.c.l.b16 %v1051
    %v1083 = vunpack.c.l.b16 %v1052
    %v1084 = vunpack.c.l.b16 %v1053
    %v1085 = vunpack.c.l.b16 %v1054
    %v1086 = vunpack.c.l.b16 %v1055
    %v1087 = vunpack.c.l.b16 %v1056
    %v1088 = vpack.c.b16 %v1077, %v1076
    %v1089 = vpack.c.b16 %v1079, %v1078
    %v1090 = vpack.c.b16 %v1081, %v1080
    %v1091 = vpack.c.b16 %v1083, %v1082
    %v1092 = vpack.c.b16 %v1085, %v1084
    %v1093 = vpack.c.b16 %v1087, %v1086
    %vm1100 = vcmask 785408
    %v1102 = vsel %vm1100, %v1044, 0
    %1104 = vmatprep.subr.bf16.mxu0 0
    %1105 = vmatpush1.bf16.msra.mxu0 0
    %1106 = vmatprep.subr.bf16.mxu0 0
    %1107 = vmatpush1.bf16.msra.mxu0 0
    %1108 = vmatprep.subr.bf16.mxu0 0
    %1109 = vmatpush1.bf16.msra.mxu0 %v1093
    %1110 = vmatprep.subr.bf16.mxu0 0
    %1111 = vmatpush1.bf16.msra.mxu0 %v1092
    %1112 = vmatprep.subr.bf16.mxu0 0
    %1113 = vmatpush1.bf16.msra.mxu0 %v1091
    %1114 = vmatprep.subr.bf16.mxu0 0
    %1115 = vmatpush1.bf16.msra.mxu0 %v1090
    %1116 = vmatprep.subr.bf16.mxu0 0
    %1117 = vmatpush1.bf16.msra.mxu0 %v1089
    %1118 = vmatprep.subr.bf16.mxu0 0
    %1119 = vmatpush1.bf16.msra.mxu0 %v1088
    %1120 = vmatprep.subr.bf16.mxu0 0
    %1121 = vmatpush2.bf16.msra.mxu0 0
    %1122 = vmatprep.subr.bf16.mxu0 0
    %1123 = vmatpush2.bf16.msra.mxu0 0
    %1124 = vmatprep.subr.bf16.mxu0 0
    %1125 = vmatpush2.bf16.msra.mxu0 0
    %1126 = vmatprep.subr.bf16.mxu0 0
    %1127 = vmatpush2.bf16.msra.mxu0 0
    %1128 = vmatprep.subr.bf16.mxu0 0
    %1129 = vmatpush2.bf16.msra.mxu0 0
    %1130 = vmatprep.subr.bf16.mxu0 0
    %1131 = vmatpush2.bf16.msra.mxu0 0
    %1132 = vmatprep.subr.bf16.mxu0 0
    %1133 = vmatpush2.bf16.msra.mxu0 0
    %1134 = vmatprep.subr.bf16.mxu0 0
    %1135 = vmatpush2.bf16.msra.mxu0 0
    %1136 = vmatprep.mubr.bf16.mxu0 0
    %1137 = vmatmul.mubr.bf16.gmra.mxu0 %v1102
    %v1138 = vpop.f32.mrf.mxu0
    %v1139 = vadd.f32 %v1062, %v1138
    %v1140 = vpop.f32.mrf.mxu0
    %v1141 = vpop.f32.mrf.mxu0
    %v1142 = vpop.f32.mrf.mxu0
    %1143 = vdwg.mxu0
    %s1144 = smul.u32 0, 128
    %s1145 = sshra.s32 %s1144, 7
    %s1146 = sand.u32 %s1144, 127
    %s1147 = scalar_lea.vmem [#allocation19], %s1145
    %1148 = vst [vmem:[%s1147] sm:$0xff] %v1139
    %v1149 = vld [vmem:[#allocation3] sm:$0xff]
    %1150 = vmax.xlane.f32.xlu0 %v1139
    %v1151 = vpop.xlane.xlu0 %1150
    %v1152 = vmax.f32 %v1149, %v1151
    %v1153 = vld [vmem:[#allocation4] sm:$0xff]
    %v1154 = vsub.f32 %v1149, %v1152
    %v1155 = vmul.f32 %v1154, 1.442695
    %v1156 = vpow.pop %v1155
    %v1157 = vmul.f32 %v1153, %v1156
    %1159 = vset.pattern.permute.xlu0 0
    %1160 = vperm.xlu0 %1159, %v1152
    %v1161 = vpop.permute.xlu0 %1160
    %v1163 = vsub.f32 %v1139, %v1161
    %v1164 = vmul.f32 %v1163, 1.442695
    %v1165 = vpow.pop %v1164
    %1166 = vadd.xlane.f32.xlu0 %v1165
    %v1167 = vpop.xlane.xlu0 %1166
    %v1168 = vadd.f32 %v1157, %v1167
    %vm1169 = vcmask 7168
    %1170 = vst.msk [vmem:[#allocation4] sm:$0xff] %vm1169, %v1168
    %1171 = vst.msk [vmem:[#allocation3] sm:$0xff] %vm1169, %v1152
    // Predicated region
    $region86: #{tpu_custom_call.1} parent=1 // pred_check
      %p1172 = pneg %p151
    $region87: #{tpu_custom_call.1} parent=1 // pred_check_branch
      %1174 = sbr.rel (%p1172) target = $region89
    $region88: #{tpu_custom_call.1} parent=1 // pred_region
      %v1175 = vld [vmem:[#allocation4] sm:$0xff]
      %v1176 = vrcp.pop %v1175
      %v1177 = vmul.f32 1.0, %v1176
      %v1178 = vld [vmem:[#allocation19] sm:$0xff]
      %v1179 = vld [vmem:[#allocation3] sm:$0xff]
      %1181 = vset.pattern.permute.xlu0 0
      %1182 = vperm.xlu0 %1181, %v1179
      %v1183 = vpop.permute.xlu0 %1182
      %v1185 = vsub.f32 %v1178, %v1183
      %v1186 = vmul.f32 %v1185, 1.442695
      %v1187 = vpow.pop %v1186
      %1189 = vset.pattern.permute.xlu0 0
      %1190 = vperm.xlu0 %1189, %v1177
      %v1191 = vpop.permute.xlu0 %1190
      %v1193 = vmul.f32 %v1187, %v1191
      %1194 = vst [vmem:[#allocation19] sm:$0xff] %v1193
    $region89: #{tpu_custom_call.1} parent=1 // pred_fallthru
      _
    // Predicated region
    $region90: #{tpu_custom_call.1} parent=1 // pred_check
      _
    $region91: #{tpu_custom_call.1} parent=1 // pred_check_branch
      %1196 = sbr.rel (0) target = $region93
    $region92: #{tpu_custom_call.1} parent=1 // pred_region
      %s1198 = ssub.s32 128, 128
      %1199 = vsyncadd [#allocation7], %s1198
      %s1201 = sshll.u32 [#allocation19], 4
      %s1202 = int_to_ptr.vmem [resolvable:$true] %s1201
      %1204 = dma.vmem_to_hbm [thread:$0]  %s1202, 128, %s12, [#allocation7]
    $region93: #{tpu_custom_call.1} parent=1 // pred_fallthru
      _
    // Predicated region
    $region94: #{tpu_custom_call.1} parent=1 // pred_check
      _
    $region95: #{tpu_custom_call.1} parent=1 // pred_check_branch
      %1206 = sbr.rel (0) target = $region97
    $region96: #{tpu_custom_call.1} parent=1 // pred_region
      %s1208 = ssub.s32 128, 128
      %1209 = vsyncadd [#allocation21], %s1208
      %s1211 = sshll.u32 [#allocation20], 4
      %s1212 = int_to_ptr.vmem [resolvable:$true] %s1211
      %1214 = dma.vmem_to_hbm [thread:$0]  %s1212, 128, %s13, [#allocation21]
    $region97: #{tpu_custom_call.1} parent=1 // pred_fallthru
      _
    // Predicated region
    $region98: #{tpu_custom_call.1} parent=1 // pred_check
      _
    $region99: #{tpu_custom_call.1} parent=1 // pred_check_branch
      %1216 = sbr.rel (0) target = $region101
    $region100: #{tpu_custom_call.1} parent=1 // pred_region
      %1217 = dma.done [#allocation7], 128
    $region101: #{tpu_custom_call.1} parent=1 // pred_fallthru
      _
    // Predicated region
    $region102: #{tpu_custom_call.1} parent=1 // pred_check
      _
    $region103: #{tpu_custom_call.1} parent=1 // pred_check_branch
      %1219 = sbr.rel (0) target = $region105
    $region104: #{tpu_custom_call.1} parent=1 // pred_region
      %1220 = dma.done [#allocation21], 128
    $region105: #{tpu_custom_call.1} parent=1 // pred_fallthru
      _
    %1221 = vsyncpa [#allocation6], 1
    %1222 = vsyncpa [#allocation9], 1
    %1223 = vsyncpa [#allocation12], 1
    %1224 = vsyncpa [#allocation15], 1
    %1225 = vsyncpa [#allocation18], 1
    %1226 = vsyncpa [#allocation7], 1
    %1227 = vsyncpa [#allocation21], 1

</llo_original>
